<compile_context>
chip_gen: v7x
topology: tpu7x:2x2x1
jax: 0.10.0
libtpu: 0.0.40
codegen_flags: <defaults>
</compile_context>

<pallas_src>
import functools
import math

import jax
import jax.numpy as jnp
from jax import lax
from jax.experimental import pallas as pl
from jax.experimental.pallas import tpu as pltpu

P = 128  # lane-padded feature width used for every matmul / store

# ----------------------------------------------------------------------------
# Config (small shapes, consistent with FAENet.__init__ signature)
# ----------------------------------------------------------------------------
CFG = dict(
    cutoff=6.0,
    num_gaussians=16,
    hidden_channels=32,
    num_filters=32,
    num_interactions=2,
    cgcnn_dim=16,
)

_VMEM = pl.BlockSpec(memory_space=pltpu.MemorySpace.VMEM)

# static slot indices into the packed weight / bias stacks
(_W_NODE_EMB, _W_LIN, _W_LIN2, _W_E1, _W_E2, _W_E3, _W_OUT1, _W_OUT2) = range(8)
_N_W_FIXED = 8
(_B_NODE_EMB, _B_LIN, _B_LIN2, _B_E12, _B_E3, _B_OUT1, _B_OUT2, _B_OFFSETS) = range(8)
_N_B_FIXED = 8
_W_PER_INT = 3   # lin_geom, lin_down, lin_up
_B_PER_INT = 6   # lg_b, ld_b, lu_b, gn_weight, gn_bias, gn_mean_scale


# ----------------------------------------------------------------------------
# Fused FAENet forward kernel
# ----------------------------------------------------------------------------
def _faenet_kernel(
    x_ref, pos_ref, row_ref, col_ref, batch_ref, w_ref, b_ref,   # inputs
    h_out, energy_out,                                            # outputs
    *, coeff, n_int, n_nodes, n_edges, n_graphs_pad,
):
    f32 = jnp.float32

    def swish(v):
        return v * jax.nn.sigmoid(v)

    def bias(k):                       # static row slice of the bias slab
        return b_ref[k:k + 1, :]

    def lin(v, wk, bk):
        return jnp.dot(v, w_ref[wk], preferred_element_type=f32) + bias(bk)

    # ---- one-hot gather / scatter / pool masks (in-VMEM, from int indices) --
    node_iota = lax.broadcasted_iota(jnp.int32, (n_edges, n_nodes), 1)    # (E,N)
    row_oh = (row_ref[...] == node_iota).astype(f32)                      # gather @ row
    col_oh = (col_ref[...] == node_iota).astype(f32)                      # scatter @ col
    graph_iota = lax.broadcasted_iota(jnp.int32, (n_graphs_pad, n_nodes), 0)
    pool_oh = (graph_iota == batch_ref[...]).astype(f32)                  # (Bp,N) pooling

    # ---- get_distances + GaussianSmearing (fused) ----------------------------
    # pos is lane-padded to 128, so rel_pos is lane-dense (only lanes 0..2 real)
    rel_pos = jnp.dot(row_oh - col_oh, pos_ref[...],
                      preferred_element_type=f32)                          # (E,P)
    d = jnp.sqrt(jnp.sum(rel_pos * rel_pos, axis=-1, keepdims=True))       # (E,1)
    diff = d - bias(_B_OFFSETS)                                            # (E,P)
    edge_attr = jnp.exp(coeff * diff * diff)   # garbage lanes >= ng are killed
                                               # by zero rows of W_E2

    # ---- EmbeddingBlock ------------------------------------------------------
    # cat(lin_e1(rel_pos), lin_e2(edge_attr)) as two zero-padded matmuls.
    e = (jnp.dot(rel_pos, w_ref[_W_E1], preferred_element_type=f32)
         + jnp.dot(edge_attr, w_ref[_W_E2], preferred_element_type=f32)
         + bias(_B_E12))
    e = swish(e)
    e = swish(lin(e, _W_E3, _B_E3))                                        # (E,P)

    h = lin(x_ref[...], _W_NODE_EMB, _B_NODE_EMB)
    h = swish(lin(h, _W_LIN, _B_LIN))
    h = swish(lin(h, _W_LIN2, _B_LIN2))                                    # (N,P)

    # ---- InteractionBlocks (residual added here, as in FAENet.forward) ------
    scat_dims = (((0,), (0,)), ((), ()))     # contract edge dim of both operands
    inv_n = 1.0 / n_nodes
    for i in range(n_int):
        wk = _N_W_FIXED + _W_PER_INT * i
        bk = _N_B_FIXED + _B_PER_INT * i
        e_w = swish(lin(e, wk + 0, bk + 0))                                # lin_geom
        hd = swish(lin(h, wk + 1, bk + 1))                                 # lin_down
        x_j = jnp.dot(row_oh, hd, preferred_element_type=f32)              # gather (E,P)
        # scatter-add into col: col_oh^T @ (x_j * e_w), no second one-hot mask
        agg = lax.dot_general(col_oh, x_j * e_w, scat_dims,
                              preferred_element_type=f32)                  # (N,P)
        # PyG GraphNorm (batch=None -> single group over all nodes), then swish
        mean = jnp.sum(agg, axis=0, keepdims=True) * inv_n
        centered = agg - mean * bias(bk + 5)                               # mean_scale
        var = jnp.sum(centered * centered, axis=0, keepdims=True) * inv_n
        gn = bias(bk + 3) * centered / jnp.sqrt(var + 1e-5) + bias(bk + 4)
        h = h + swish(lin(swish(gn), wk + 2, bk + 2))                      # lin_up + res

    h_out[...] = h                                                         # (N,P) lane-dense

    # ---- OutputBlock ("energy") + graph pooling ------------------------------
    h1 = swish(lin(h, _W_OUT1, _B_OUT1))
    h2 = lin(h1, _W_OUT2, _B_OUT2)                                         # (N,P), lane 0 real
    energy_out[...] = jnp.dot(pool_oh, h2, preferred_element_type=f32)     # (Bp,P)


# ----------------------------------------------------------------------------
# Deterministic parameter init (xavier_uniform weights, zero biases)
# ----------------------------------------------------------------------------
def _xavier(key, fan_in, fan_out):
    bound = math.sqrt(6.0 / (fan_in + fan_out))
    return jax.random.uniform(key, (fan_in, fan_out), jnp.float32, -bound, bound)


def init_params(key, cfg):
    hc = cfg["hidden_channels"]
    nf = cfg["num_filters"]
    ng = cfg["num_gaussians"]
    cg = cfg["cgcnn_dim"]
    keys = iter(jax.random.split(key, 64))

    def lin_p(fan_in, fan_out):
        return {"w": _xavier(next(keys), fan_in, fan_out),
                "b": jnp.zeros((fan_out,), jnp.float32)}

    params = {
        "node_emb": lin_p(cg, hc),
        "lin": lin_p(hc, hc),
        "lin_2": lin_p(hc, hc),
        "lin_e1": lin_p(3, nf // 2),
        "lin_e2": lin_p(ng, nf - nf // 2),
        "lin_e3": lin_p(nf, nf),
        "interactions": [],
        "out_lin1": lin_p(hc, hc // 2),
        "out_lin2": lin_p(hc // 2, 1),
    }
    for _ in range(cfg["num_interactions"]):
        params["interactions"].append({
            "lin_geom": lin_p(nf, nf),
            "lin_down": lin_p(hc, nf),
            "lin_up": lin_p(nf, hc),
            "gn_weight": jnp.ones((hc,), jnp.float32),
            "gn_bias": jnp.zeros((hc,), jnp.float32),
            "gn_mean_scale": jnp.ones((hc,), jnp.float32),
        })
    return params


# ----------------------------------------------------------------------------
# Wrapper helpers
# ----------------------------------------------------------------------------
def _pad_mat(w, r0=0, c0=0):
    out = jnp.zeros((P, P), jnp.float32)
    return out.at[r0:r0 + w.shape[0], c0:c0 + w.shape[1]].set(w)


def _pad_vec(v):
    out = jnp.zeros((P,), jnp.float32)
    return out.at[:v.shape[0]].set(v)


def _pick_vmem_limit():
    # ~48 MiB on v7x (64 MiB physical), 64 MiB on v5e/v6e (128 MiB physical).
    try:
        cap = int(pltpu.get_tpu_info().vmem_capacity_bytes)
    except Exception:
        cap = 64 * 1024 * 1024
    return int(min(64 * 1024 * 1024, (cap * 3) // 4))


# ----------------------------------------------------------------------------
# FAENet forward: one fused pallas_call
# ----------------------------------------------------------------------------
def faenet_forward(params, x, pos, edge_index, batch, num_graphs, cfg):
    n_nodes = x.shape[0]
    n_edges = edge_index.shape[1]
    hc = cfg["hidden_channels"]
    nf = cfg["num_filters"]
    ng = cfg["num_gaussians"]
    ni = cfg["num_interactions"]
    n_graphs_pad = max(8, ((num_graphs + 7) // 8) * 8)   # sublane-aligned output

    # GaussianSmearing constants (pure Python -> no device->host sync)
    step = cfg["cutoff"] / (ng - 1)
    coeff = -0.5 / (step * step)
    offsets = jnp.linspace(0.0, cfg["cutoff"], ng, dtype=jnp.float32)

    # ---- lane-pad node arrays so every matmul / store is 128-lane dense ------
    x_pad = jnp.zeros((n_nodes, P), jnp.float32).at[:, :x.shape[1]].set(x)
    pos_pad = jnp.zeros((n_nodes, P), jnp.float32).at[:, :3].set(pos)

    row = edge_index[0].astype(jnp.int32).reshape(n_edges, 1)
    col = edge_index[1].astype(jnp.int32).reshape(n_edges, 1)
    batch_t = batch.astype(jnp.int32).reshape(1, n_nodes)

    # ---- pack all weights into one stack, all biases/offsets/GN params into
    #      one slab: 2 weight DMAs instead of ~30 tiny operands ----------------
    half = nf // 2
    w_list = [
        _pad_mat(params["node_emb"]["w"]),
        _pad_mat(params["lin"]["w"]),
        _pad_mat(params["lin_2"]["w"]),
        _pad_mat(params["lin_e1"]["w"]),             # -> cols [0, nf//2)
        _pad_mat(params["lin_e2"]["w"], c0=half),    # -> cols [nf//2, nf)
        _pad_mat(params["lin_e3"]["w"]),
        _pad_mat(params["out_lin1"]["w"]),
        _pad_mat(params["out_lin2"]["w"]),
    ]
    b_list = [
        _pad_vec(params["node_emb"]["b"]),
        _pad_vec(params["lin"]["b"]),
        _pad_vec(params["lin_2"]["b"]),
        _pad_vec(jnp.concatenate([params["lin_e1"]["b"], params["lin_e2"]["b"]])),
        _pad_vec(params["lin_e3"]["b"]),
        _pad_vec(params["out_lin1"]["b"]),
        _pad_vec(params["out_lin2"]["b"]),
        _pad_vec(offsets),
    ]
    for ip in params["interactions"]:
        w_list += [_pad_mat(ip["lin_geom"]["w"]), _pad_mat(ip["lin_down"]["w"]),
                   _pad_mat(ip["lin_up"]["w"])]
        b_list += [_pad_vec(ip["lin_geom"]["b"]), _pad_vec(ip["lin_down"]["b"]),
                   _pad_vec(ip["lin_up"]["b"]), _pad_vec(ip["gn_weight"]),
                   _pad_vec(ip["gn_bias"]), _pad_vec(ip["gn_mean_scale"])]
    w_stack = jnp.stack(w_list)          # (8 + 3*ni, 128, 128)
    b_stack = jnp.stack(b_list)          # (8 + 6*ni, 128)

    args = (x_pad, pos_pad, row, col, batch_t, w_stack, b_stack)

    kernel = functools.partial(
        _faenet_kernel, coeff=float(coeff), n_int=ni,
        n_nodes=n_nodes, n_edges=n_edges, n_graphs_pad=n_graphs_pad)

    # advisory cost estimate for the XLA scheduler
    mm_flops = (2 * n_edges * n_nodes * P
                + 2 * n_edges * P * P * 3
                + 2 * n_nodes * P * P * 3
                + ni * (2 * n_edges * P * P + 4 * n_nodes * P * P
                        + 4 * n_edges * n_nodes * P)
                + 2 * n_nodes * P * P * 2
                + 2 * n_graphs_pad * n_nodes * P)
    transc = P * (5 * n_edges + 4 * n_nodes + ni * (2 * n_edges + 6 * n_nodes))
    bytes_acc = sum(int(a.size) * 4 for a in args) + (n_nodes + n_graphs_pad) * P * 4
    cost = pl.CostEstimate(flops=int(mm_flops), transcendentals=int(transc),
                           bytes_accessed=int(bytes_acc))

    h_pad, energy_pad = pl.pallas_call(
        kernel,
        out_shape=(jax.ShapeDtypeStruct((n_nodes, P), jnp.float32),
                   jax.ShapeDtypeStruct((n_graphs_pad, P), jnp.float32)),
        in_specs=[_VMEM] * len(args),
        out_specs=(_VMEM, _VMEM),
        compiler_params=pltpu.CompilerParams(vmem_limit_bytes=_pick_vmem_limit()),
        cost_estimate=cost,
    )(*args)

    # slice the real columns / graphs back out of the lane-dense slabs
    return {"hidden_state": h_pad[:, :hc], "energy": energy_pad[:num_graphs, :1]}


# ----------------------------------------------------------------------------
# Pure-JAX reference (for correctness check only)
# ----------------------------------------------------------------------------
def _swish(v):
    return v * jax.nn.sigmoid(v)


def reference_forward(params, x, pos, edge_index, batch, num_graphs, cfg):
    row, col = edge_index[0], edge_index[1]
    n_nodes = x.shape[0]
    rel_pos = pos[row] - pos[col]
    dist = jnp.linalg.norm(rel_pos, axis=-1)
    offsets = jnp.linspace(0.0, cfg["cutoff"], cfg["num_gaussians"], dtype=jnp.float32)
    step = cfg["cutoff"] / (cfg["num_gaussians"] - 1)
    coeff = -0.5 / (step * step)
    edge_attr = jnp.exp(coeff * (dist[:, None] - offsets[None, :]) ** 2)

    def lin(v, p):
        return v @ p["w"] + p["b"]

    rp = lin(rel_pos, params["lin_e1"])
    ea = lin(edge_attr, params["lin_e2"])
    e = _swish(jnp.concatenate([rp, ea], axis=1))
    e = _swish(lin(e, params["lin_e3"]))
    h = lin(x, params["node_emb"])
    h = _swish(lin(h, params["lin"]))
    h = _swish(lin(h, params["lin_2"]))

    for ip in params["interactions"]:
        e_w = _swish(lin(e, ip["lin_geom"]))
        hd = _swish(lin(h, ip["lin_down"]))
        msg = hd[row] * e_w
        agg = jax.ops.segment_sum(msg, col, num_segments=n_nodes)
        mean = jnp.mean(agg, axis=0, keepdims=True)
        centered = agg - mean * ip["gn_mean_scale"][None, :]
        var = jnp.mean(centered * centered, axis=0, keepdims=True)
        gn = (ip["gn_weight"][None, :] * centered / jnp.sqrt(var + 1e-5)
              + ip["gn_bias"][None, :])
        h = h + _swish(lin(_swish(gn), ip["lin_up"]))

    h1 = _swish(lin(h, params["out_lin1"]))
    h2 = lin(h1, params["out_lin2"])
    energy = jax.ops.segment_sum(h2, batch, num_segments=num_graphs)
    return {"hidden_state": h, "energy": energy}


# ----------------------------------------------------------------------------
if __name__ == "__main__":
    key = jax.random.PRNGKey(0)
    k_p, k_x, k_pos, k_row, k_col = jax.random.split(key, 5)

    num_graphs = 2
    n_nodes = 16          # 8 atoms per graph
    n_edges = 32

    params = init_params(k_p, CFG)

    x = jax.random.normal(k_x, (n_nodes, CFG["cgcnn_dim"]), jnp.float32)   # CGCNN features
    pos = jax.random.normal(k_pos, (n_nodes, 3), jnp.float32) * 2.0        # atom positions
    batch = jnp.repeat(jnp.arange(num_graphs, dtype=jnp.int32), n_nodes // num_graphs)
    # edges stay within each graph
    src = jax.random.randint(k_row, (n_edges,), 0, n_nodes // num_graphs)
    dst = jax.random.randint(k_col, (n_edges,), 0, n_nodes // num_graphs)
    graph_of_edge = jnp.repeat(jnp.arange(num_graphs), n_edges // num_graphs)
    edge_index = jnp.stack([src + graph_of_edge * (n_nodes // num_graphs),
                            dst + graph_of_edge * (n_nodes // num_graphs)]).astype(jnp.int32)

    preds = faenet_forward(params, x, pos, edge_index, batch, num_graphs, CFG)
    jax.block_until_ready(preds)

    ref = reference_forward(params, x, pos, edge_index, batch, num_graphs, CFG)
    assert jnp.allclose(preds["hidden_state"], ref["hidden_state"], atol=1e-4, rtol=1e-4)
    assert jnp.allclose(preds["energy"], ref["energy"], atol=1e-4, rtol=1e-4)
    assert preds["hidden_state"].shape == (n_nodes, CFG["hidden_channels"])
    assert preds["energy"].shape == (num_graphs, 1)

    print("KERNEL_OK")
</pallas_src>

<mosaic_0001>
module attributes {stable_mosaic.version = 11 : i64} {
  func.func @_faenet_kernel(%arg0: memref<16x128xf32, #tpu.memory_space<vmem>>, %arg1: memref<16x128xf32, #tpu.memory_space<vmem>>, %arg2: memref<32x1xi32, #tpu.memory_space<vmem>>, %arg3: memref<32x1xi32, #tpu.memory_space<vmem>>, %arg4: memref<1x16xi32, #tpu.memory_space<vmem>>, %arg5: memref<14x128x128xf32, #tpu.memory_space<vmem>>, %arg6: memref<20x128xf32, #tpu.memory_space<vmem>>, %arg7: memref<16x128xf32, #tpu.memory_space<vmem>>, %arg8: memref<8x128xf32, #tpu.memory_space<vmem>>) attributes {dimension_semantics = [], scalar_prefetch = 0 : i64, scratch_operands = 0 : i64, tpu.core_type = #tpu.core_type<tc>} {
    %0 = tpu.iota {dimensions = array<i32: 1>} : vector<32x16xi32>
    %c0 = arith.constant 0 : index
    %c0_0 = arith.constant 0 : index
    %1 = vector.load %arg2[%c0, %c0_0] : memref<32x1xi32, #tpu.memory_space<vmem>>, vector<32x1xi32>
    %2 = vector.broadcast %1 : vector<32x1xi32> to vector<32x16xi32>
    %3 = arith.cmpi eq, %2, %0 : vector<32x16xi32>
    %4 = arith.extui %3 : vector<32x16xi1> to vector<32x16xi32>
    %5 = arith.sitofp %4 : vector<32x16xi32> to vector<32x16xf32>
    %c0_1 = arith.constant 0 : index
    %c0_2 = arith.constant 0 : index
    %6 = vector.load %arg3[%c0_1, %c0_2] : memref<32x1xi32, #tpu.memory_space<vmem>>, vector<32x1xi32>
    %7 = vector.broadcast %6 : vector<32x1xi32> to vector<32x16xi32>
    %8 = arith.cmpi eq, %7, %0 : vector<32x16xi32>
    %9 = arith.extui %8 : vector<32x16xi1> to vector<32x16xi32>
    %10 = arith.sitofp %9 : vector<32x16xi32> to vector<32x16xf32>
    %11 = tpu.iota {dimensions = array<i32: 0>} : vector<8x16xi32>
    %c0_3 = arith.constant 0 : index
    %c0_4 = arith.constant 0 : index
    %12 = vector.load %arg4[%c0_3, %c0_4] : memref<1x16xi32, #tpu.memory_space<vmem>>, vector<1x16xi32>
    %13 = vector.broadcast %12 : vector<1x16xi32> to vector<8x16xi32>
    %14 = arith.cmpi eq, %11, %13 : vector<8x16xi32>
    %15 = arith.extui %14 : vector<8x16xi1> to vector<8x16xi32>
    %16 = arith.sitofp %15 : vector<8x16xi32> to vector<8x16xf32>
    %17 = arith.subf %5, %10 : vector<32x16xf32>
    %c0_5 = arith.constant 0 : index
    %c0_6 = arith.constant 0 : index
    %18 = vector.load %arg1[%c0_5, %c0_6] : memref<16x128xf32, #tpu.memory_space<vmem>>, vector<16x128xf32>
    %cst = arith.constant dense<0.000000e+00> : vector<32x128xf32>
    %19 = tpu.matmul %17, %18, %cst {dimension_numbers = #tpu.dot_dimension_numbers<[1], [0], [0], [1], [0, 0, 1, 1], [], []>} : vector<32x16xf32>, vector<16x128xf32>, vector<32x128xf32> -> vector<32x128xf32>
    %20 = arith.mulf %19, %19 : vector<32x128xf32>
    %cst_7 = arith.constant dense<0.000000e+00> : vector<32xf32>
    %21 = vector.multi_reduction <add>, %20, %cst_7 [1] : vector<32x128xf32> to vector<32xf32>
    %22 = vector.shape_cast %21 : vector<32xf32> to vector<32x1xf32>
    %23 = math.sqrt %22 : vector<32x1xf32>
    %c7 = arith.constant 7 : index
    %c0_8 = arith.constant 0 : index
    %24 = vector.load %arg6[%c7, %c0_8] : memref<20x128xf32, #tpu.memory_space<vmem>>, vector<1x128xf32>
    %25 = vector.broadcast %23 : vector<32x1xf32> to vector<32x128xf32>
    %26 = vector.broadcast %24 : vector<1x128xf32> to vector<32x128xf32>
    %27 = arith.subf %25, %26 : vector<32x128xf32>
    %cst_9 = arith.constant -3.125000e+00 : f32
    %28 = vector.broadcast %cst_9 : f32 to vector<32x128xf32>
    %29 = arith.mulf %28, %27 : vector<32x128xf32>
    %30 = arith.mulf %29, %27 : vector<32x128xf32>
    %31 = math.exp %30 : vector<32x128xf32>
    %c3 = arith.constant 3 : index
    %c0_10 = arith.constant 0 : index
    %c0_11 = arith.constant 0 : index
    %32 = vector.load %arg5[%c3, %c0_10, %c0_11] : memref<14x128x128xf32, #tpu.memory_space<vmem>>, vector<1x128x128xf32>
    %33 = vector.shape_cast %32 : vector<1x128x128xf32> to vector<128x128xf32>
    %cst_12 = arith.constant dense<0.000000e+00> : vector<32x128xf32>
    %34 = tpu.matmul %19, %33, %cst_12 {dimension_numbers = #tpu.dot_dimension_numbers<[1], [0], [0], [1], [0, 0, 1, 1], [], []>} : vector<32x128xf32>, vector<128x128xf32>, vector<32x128xf32> -> vector<32x128xf32>
    %c4 = arith.constant 4 : index
    %c0_13 = arith.constant 0 : index
    %c0_14 = arith.constant 0 : index
    %35 = vector.load %arg5[%c4, %c0_13, %c0_14] : memref<14x128x128xf32, #tpu.memory_space<vmem>>, vector<1x128x128xf32>
    %36 = vector.shape_cast %35 : vector<1x128x128xf32> to vector<128x128xf32>
    %cst_15 = arith.constant dense<0.000000e+00> : vector<32x128xf32>
    %37 = tpu.matmul %31, %36, %cst_15 {dimension_numbers = #tpu.dot_dimension_numbers<[1], [0], [0], [1], [0, 0, 1, 1], [], []>} : vector<32x128xf32>, vector<128x128xf32>, vector<32x128xf32> -> vector<32x128xf32>
    %38 = arith.addf %34, %37 : vector<32x128xf32>
    %c3_16 = arith.constant 3 : index
    %c0_17 = arith.constant 0 : index
    %39 = vector.load %arg6[%c3_16, %c0_17] : memref<20x128xf32, #tpu.memory_space<vmem>>, vector<1x128xf32>
    %40 = vector.broadcast %39 : vector<1x128xf32> to vector<32x128xf32>
    %41 = arith.addf %38, %40 : vector<32x128xf32>
    %42 = arith.negf %41 : vector<32x128xf32>
    %43 = math.exp %42 : vector<32x128xf32>
    %cst_18 = arith.constant 1.000000e+00 : f32
    %44 = vector.broadcast %cst_18 : f32 to vector<32x128xf32>
    %45 = arith.addf %44, %43 : vector<32x128xf32>
    %46 = arith.divf %44, %45 : vector<32x128xf32>
    %47 = arith.mulf %41, %46 : vector<32x128xf32>
    %c5 = arith.constant 5 : index
    %c0_19 = arith.constant 0 : index
    %c0_20 = arith.constant 0 : index
    %48 = vector.load %arg5[%c5, %c0_19, %c0_20] : memref<14x128x128xf32, #tpu.memory_space<vmem>>, vector<1x128x128xf32>
    %49 = vector.shape_cast %48 : vector<1x128x128xf32> to vector<128x128xf32>
    %cst_21 = arith.constant dense<0.000000e+00> : vector<32x128xf32>
    %50 = tpu.matmul %47, %49, %cst_21 {dimension_numbers = #tpu.dot_dimension_numbers<[1], [0], [0], [1], [0, 0, 1, 1], [], []>} : vector<32x128xf32>, vector<128x128xf32>, vector<32x128xf32> -> vector<32x128xf32>
    %c4_22 = arith.constant 4 : index
    %c0_23 = arith.constant 0 : index
    %51 = vector.load %arg6[%c4_22, %c0_23] : memref<20x128xf32, #tpu.memory_space<vmem>>, vector<1x128xf32>
    %52 = vector.broadcast %51 : vector<1x128xf32> to vector<32x128xf32>
    %53 = arith.addf %50, %52 : vector<32x128xf32>
    %54 = arith.negf %53 : vector<32x128xf32>
    %55 = math.exp %54 : vector<32x128xf32>
    %cst_24 = arith.constant 1.000000e+00 : f32
    %56 = vector.broadcast %cst_24 : f32 to vector<32x128xf32>
    %57 = arith.addf %56, %55 : vector<32x128xf32>
    %58 = arith.divf %56, %57 : vector<32x128xf32>
    %59 = arith.mulf %53, %58 : vector<32x128xf32>
    %c0_25 = arith.constant 0 : index
    %c0_26 = arith.constant 0 : index
    %60 = vector.load %arg0[%c0_25, %c0_26] : memref<16x128xf32, #tpu.memory_space<vmem>>, vector<16x128xf32>
    %c0_27 = arith.constant 0 : index
    %c0_28 = arith.constant 0 : index
    %c0_29 = arith.constant 0 : index
    %61 = vector.load %arg5[%c0_27, %c0_28, %c0_29] : memref<14x128x128xf32, #tpu.memory_space<vmem>>, vector<1x128x128xf32>
    %62 = vector.shape_cast %61 : vector<1x128x128xf32> to vector<128x128xf32>
    %cst_30 = arith.constant dense<0.000000e+00> : vector<16x128xf32>
    %63 = tpu.matmul %60, %62, %cst_30 {dimension_numbers = #tpu.dot_dimension_numbers<[1], [0], [0], [1], [0, 0, 1, 1], [], []>} : vector<16x128xf32>, vector<128x128xf32>, vector<16x128xf32> -> vector<16x128xf32>
    %c0_31 = arith.constant 0 : index
    %c0_32 = arith.constant 0 : index
    %64 = vector.load %arg6[%c0_31, %c0_32] : memref<20x128xf32, #tpu.memory_space<vmem>>, vector<1x128xf32>
    %65 = vector.broadcast %64 : vector<1x128xf32> to vector<16x128xf32>
    %66 = arith.addf %63, %65 : vector<16x128xf32>
    %c1 = arith.constant 1 : index
    %c0_33 = arith.constant 0 : index
    %c0_34 = arith.constant 0 : index
    %67 = vector.load %arg5[%c1, %c0_33, %c0_34] : memref<14x128x128xf32, #tpu.memory_space<vmem>>, vector<1x128x128xf32>
    %68 = vector.shape_cast %67 : vector<1x128x128xf32> to vector<128x128xf32>
    %cst_35 = arith.constant dense<0.000000e+00> : vector<16x128xf32>
    %69 = tpu.matmul %66, %68, %cst_35 {dimension_numbers = #tpu.dot_dimension_numbers<[1], [0], [0], [1], [0, 0, 1, 1], [], []>} : vector<16x128xf32>, vector<128x128xf32>, vector<16x128xf32> -> vector<16x128xf32>
    %c1_36 = arith.constant 1 : index
    %c0_37 = arith.constant 0 : index
    %70 = vector.load %arg6[%c1_36, %c0_37] : memref<20x128xf32, #tpu.memory_space<vmem>>, vector<1x128xf32>
    %71 = vector.broadcast %70 : vector<1x128xf32> to vector<16x128xf32>
    %72 = arith.addf %69, %71 : vector<16x128xf32>
    %73 = arith.negf %72 : vector<16x128xf32>
    %74 = math.exp %73 : vector<16x128xf32>
    %cst_38 = arith.constant 1.000000e+00 : f32
    %75 = vector.broadcast %cst_38 : f32 to vector<16x128xf32>
    %76 = arith.addf %75, %74 : vector<16x128xf32>
    %77 = arith.divf %75, %76 : vector<16x128xf32>
    %78 = arith.mulf %72, %77 : vector<16x128xf32>
    %c2 = arith.constant 2 : index
    %c0_39 = arith.constant 0 : index
    %c0_40 = arith.constant 0 : index
    %79 = vector.load %arg5[%c2, %c0_39, %c0_40] : memref<14x128x128xf32, #tpu.memory_space<vmem>>, vector<1x128x128xf32>
    %80 = vector.shape_cast %79 : vector<1x128x128xf32> to vector<128x128xf32>
    %cst_41 = arith.constant dense<0.000000e+00> : vector<16x128xf32>
    %81 = tpu.matmul %78, %80, %cst_41 {dimension_numbers = #tpu.dot_dimension_numbers<[1], [0], [0], [1], [0, 0, 1, 1], [], []>} : vector<16x128xf32>, vector<128x128xf32>, vector<16x128xf32> -> vector<16x128xf32>
    %c2_42 = arith.constant 2 : index
    %c0_43 = arith.constant 0 : index
    %82 = vector.load %arg6[%c2_42, %c0_43] : memref<20x128xf32, #tpu.memory_space<vmem>>, vector<1x128xf32>
    %83 = vector.broadcast %82 : vector<1x128xf32> to vector<16x128xf32>
    %84 = arith.addf %81, %83 : vector<16x128xf32>
    %85 = arith.negf %84 : vector<16x128xf32>
    %86 = math.exp %85 : vector<16x128xf32>
    %cst_44 = arith.constant 1.000000e+00 : f32
    %87 = vector.broadcast %cst_44 : f32 to vector<16x128xf32>
    %88 = arith.addf %87, %86 : vector<16x128xf32>
    %89 = arith.divf %87, %88 : vector<16x128xf32>
    %90 = arith.mulf %84, %89 : vector<16x128xf32>
    %c8 = arith.constant 8 : index
    %c0_45 = arith.constant 0 : index
    %c0_46 = arith.constant 0 : index
    %91 = vector.load %arg5[%c8, %c0_45, %c0_46] : memref<14x128x128xf32, #tpu.memory_space<vmem>>, vector<1x128x128xf32>
    %92 = vector.shape_cast %91 : vector<1x128x128xf32> to vector<128x128xf32>
    %cst_47 = arith.constant dense<0.000000e+00> : vector<32x128xf32>
    %93 = tpu.matmul %59, %92, %cst_47 {dimension_numbers = #tpu.dot_dimension_numbers<[1], [0], [0], [1], [0, 0, 1, 1], [], []>} : vector<32x128xf32>, vector<128x128xf32>, vector<32x128xf32> -> vector<32x128xf32>
    %c8_48 = arith.constant 8 : index
    %c0_49 = arith.constant 0 : index
    %94 = vector.load %arg6[%c8_48, %c0_49] : memref<20x128xf32, #tpu.memory_space<vmem>>, vector<1x128xf32>
    %95 = vector.broadcast %94 : vector<1x128xf32> to vector<32x128xf32>
    %96 = arith.addf %93, %95 : vector<32x128xf32>
    %97 = arith.negf %96 : vector<32x128xf32>
    %98 = math.exp %97 : vector<32x128xf32>
    %cst_50 = arith.constant 1.000000e+00 : f32
    %99 = vector.broadcast %cst_50 : f32 to vector<32x128xf32>
    %100 = arith.addf %99, %98 : vector<32x128xf32>
    %101 = arith.divf %99, %100 : vector<32x128xf32>
    %102 = arith.mulf %96, %101 : vector<32x128xf32>
    %c9 = arith.constant 9 : index
    %c0_51 = arith.constant 0 : index
    %c0_52 = arith.constant 0 : index
    %103 = vector.load %arg5[%c9, %c0_51, %c0_52] : memref<14x128x128xf32, #tpu.memory_space<vmem>>, vector<1x128x128xf32>
    %104 = vector.shape_cast %103 : vector<1x128x128xf32> to vector<128x128xf32>
    %cst_53 = arith.constant dense<0.000000e+00> : vector<16x128xf32>
    %105 = tpu.matmul %90, %104, %cst_53 {dimension_numbers = #tpu.dot_dimension_numbers<[1], [0], [0], [1], [0, 0, 1, 1], [], []>} : vector<16x128xf32>, vector<128x128xf32>, vector<16x128xf32> -> vector<16x128xf32>
    %c9_54 = arith.constant 9 : index
    %c0_55 = arith.constant 0 : index
    %106 = vector.load %arg6[%c9_54, %c0_55] : memref<20x128xf32, #tpu.memory_space<vmem>>, vector<1x128xf32>
    %107 = vector.broadcast %106 : vector<1x128xf32> to vector<16x128xf32>
    %108 = arith.addf %105, %107 : vector<16x128xf32>
    %109 = arith.negf %108 : vector<16x128xf32>
    %110 = math.exp %109 : vector<16x128xf32>
    %cst_56 = arith.constant 1.000000e+00 : f32
    %111 = vector.broadcast %cst_56 : f32 to vector<16x128xf32>
    %112 = arith.addf %111, %110 : vector<16x128xf32>
    %113 = arith.divf %111, %112 : vector<16x128xf32>
    %114 = arith.mulf %108, %113 : vector<16x128xf32>
    %cst_57 = arith.constant dense<0.000000e+00> : vector<32x128xf32>
    %115 = tpu.matmul %5, %114, %cst_57 {dimension_numbers = #tpu.dot_dimension_numbers<[1], [0], [0], [1], [0, 0, 1, 1], [], []>} : vector<32x16xf32>, vector<16x128xf32>, vector<32x128xf32> -> vector<32x128xf32>
    %116 = arith.mulf %115, %102 : vector<32x128xf32>
    %cst_58 = arith.constant dense<0.000000e+00> : vector<16x128xf32>
    %117 = tpu.matmul %10, %116, %cst_58 {dimension_numbers = #tpu.dot_dimension_numbers<[0], [0], [1], [1], [0, 1, 1, 1], [], []>} : vector<32x16xf32>, vector<32x128xf32>, vector<16x128xf32> -> vector<16x128xf32>
    %cst_59 = arith.constant dense<0.000000e+00> : vector<128xf32>
    %118 = vector.multi_reduction <add>, %117, %cst_59 [0] : vector<16x128xf32> to vector<128xf32>
    %119 = vector.shape_cast %118 : vector<128xf32> to vector<1x128xf32>
    %cst_60 = arith.constant 6.250000e-02 : f32
    %120 = vector.broadcast %cst_60 : f32 to vector<1x128xf32>
    %121 = arith.mulf %119, %120 : vector<1x128xf32>
    %c13 = arith.constant 13 : index
    %c0_61 = arith.constant 0 : index
    %122 = vector.load %arg6[%c13, %c0_61] : memref<20x128xf32, #tpu.memory_space<vmem>>, vector<1x128xf32>
    %123 = arith.mulf %121, %122 : vector<1x128xf32>
    %124 = vector.broadcast %123 : vector<1x128xf32> to vector<16x128xf32>
    %125 = arith.subf %117, %124 : vector<16x128xf32>
    %126 = arith.mulf %125, %125 : vector<16x128xf32>
    %cst_62 = arith.constant dense<0.000000e+00> : vector<128xf32>
    %127 = vector.multi_reduction <add>, %126, %cst_62 [0] : vector<16x128xf32> to vector<128xf32>
    %128 = vector.shape_cast %127 : vector<128xf32> to vector<1x128xf32>
    %cst_63 = arith.constant 6.250000e-02 : f32
    %129 = vector.broadcast %cst_63 : f32 to vector<1x128xf32>
    %130 = arith.mulf %128, %129 : vector<1x128xf32>
    %c11 = arith.constant 11 : index
    %c0_64 = arith.constant 0 : index
    %131 = vector.load %arg6[%c11, %c0_64] : memref<20x128xf32, #tpu.memory_space<vmem>>, vector<1x128xf32>
    %132 = vector.broadcast %131 : vector<1x128xf32> to vector<16x128xf32>
    %133 = arith.mulf %132, %125 : vector<16x128xf32>
    %cst_65 = arith.constant 9.99999974E-6 : f32
    %134 = vector.broadcast %cst_65 : f32 to vector<1x128xf32>
    %135 = arith.addf %130, %134 : vector<1x128xf32>
    %136 = math.sqrt %135 : vector<1x128xf32>
    %137 = vector.broadcast %136 : vector<1x128xf32> to vector<16x128xf32>
    %138 = arith.divf %133, %137 : vector<16x128xf32>
    %c12 = arith.constant 12 : index
    %c0_66 = arith.constant 0 : index
    %139 = vector.load %arg6[%c12, %c0_66] : memref<20x128xf32, #tpu.memory_space<vmem>>, vector<1x128xf32>
    %140 = vector.broadcast %139 : vector<1x128xf32> to vector<16x128xf32>
    %141 = arith.addf %138, %140 : vector<16x128xf32>
    %142 = arith.negf %141 : vector<16x128xf32>
    %143 = math.exp %142 : vector<16x128xf32>
    %cst_67 = arith.constant 1.000000e+00 : f32
    %144 = vector.broadcast %cst_67 : f32 to vector<16x128xf32>
    %145 = arith.addf %144, %143 : vector<16x128xf32>
    %146 = arith.divf %144, %145 : vector<16x128xf32>
    %147 = arith.mulf %141, %146 : vector<16x128xf32>
    %c10 = arith.constant 10 : index
    %c0_68 = arith.constant 0 : index
    %c0_69 = arith.constant 0 : index
    %148 = vector.load %arg5[%c10, %c0_68, %c0_69] : memref<14x128x128xf32, #tpu.memory_space<vmem>>, vector<1x128x128xf32>
    %149 = vector.shape_cast %148 : vector<1x128x128xf32> to vector<128x128xf32>
    %cst_70 = arith.constant dense<0.000000e+00> : vector<16x128xf32>
    %150 = tpu.matmul %147, %149, %cst_70 {dimension_numbers = #tpu.dot_dimension_numbers<[1], [0], [0], [1], [0, 0, 1, 1], [], []>} : vector<16x128xf32>, vector<128x128xf32>, vector<16x128xf32> -> vector<16x128xf32>
    %c10_71 = arith.constant 10 : index
    %c0_72 = arith.constant 0 : index
    %151 = vector.load %arg6[%c10_71, %c0_72] : memref<20x128xf32, #tpu.memory_space<vmem>>, vector<1x128xf32>
    %152 = vector.broadcast %151 : vector<1x128xf32> to vector<16x128xf32>
    %153 = arith.addf %150, %152 : vector<16x128xf32>
    %154 = arith.negf %153 : vector<16x128xf32>
    %155 = math.exp %154 : vector<16x128xf32>
    %cst_73 = arith.constant 1.000000e+00 : f32
    %156 = vector.broadcast %cst_73 : f32 to vector<16x128xf32>
    %157 = arith.addf %156, %155 : vector<16x128xf32>
    %158 = arith.divf %156, %157 : vector<16x128xf32>
    %159 = arith.mulf %153, %158 : vector<16x128xf32>
    %160 = arith.addf %90, %159 : vector<16x128xf32>
    %c11_74 = arith.constant 11 : index
    %c0_75 = arith.constant 0 : index
    %c0_76 = arith.constant 0 : index
    %161 = vector.load %arg5[%c11_74, %c0_75, %c0_76] : memref<14x128x128xf32, #tpu.memory_space<vmem>>, vector<1x128x128xf32>
    %162 = vector.shape_cast %161 : vector<1x128x128xf32> to vector<128x128xf32>
    %cst_77 = arith.constant dense<0.000000e+00> : vector<32x128xf32>
    %163 = tpu.matmul %59, %162, %cst_77 {dimension_numbers = #tpu.dot_dimension_numbers<[1], [0], [0], [1], [0, 0, 1, 1], [], []>} : vector<32x128xf32>, vector<128x128xf32>, vector<32x128xf32> -> vector<32x128xf32>
    %c14 = arith.constant 14 : index
    %c0_78 = arith.constant 0 : index
    %164 = vector.load %arg6[%c14, %c0_78] : memref<20x128xf32, #tpu.memory_space<vmem>>, vector<1x128xf32>
    %165 = vector.broadcast %164 : vector<1x128xf32> to vector<32x128xf32>
    %166 = arith.addf %163, %165 : vector<32x128xf32>
    %167 = arith.negf %166 : vector<32x128xf32>
    %168 = math.exp %167 : vector<32x128xf32>
    %cst_79 = arith.constant 1.000000e+00 : f32
    %169 = vector.broadcast %cst_79 : f32 to vector<32x128xf32>
    %170 = arith.addf %169, %168 : vector<32x128xf32>
    %171 = arith.divf %169, %170 : vector<32x128xf32>
    %172 = arith.mulf %166, %171 : vector<32x128xf32>
    %c12_80 = arith.constant 12 : index
    %c0_81 = arith.constant 0 : index
    %c0_82 = arith.constant 0 : index
    %173 = vector.load %arg5[%c12_80, %c0_81, %c0_82] : memref<14x128x128xf32, #tpu.memory_space<vmem>>, vector<1x128x128xf32>
    %174 = vector.shape_cast %173 : vector<1x128x128xf32> to vector<128x128xf32>
    %cst_83 = arith.constant dense<0.000000e+00> : vector<16x128xf32>
    %175 = tpu.matmul %160, %174, %cst_83 {dimension_numbers = #tpu.dot_dimension_numbers<[1], [0], [0], [1], [0, 0, 1, 1], [], []>} : vector<16x128xf32>, vector<128x128xf32>, vector<16x128xf32> -> vector<16x128xf32>
    %c15 = arith.constant 15 : index
    %c0_84 = arith.constant 0 : index
    %176 = vector.load %arg6[%c15, %c0_84] : memref<20x128xf32, #tpu.memory_space<vmem>>, vector<1x128xf32>
    %177 = vector.broadcast %176 : vector<1x128xf32> to vector<16x128xf32>
    %178 = arith.addf %175, %177 : vector<16x128xf32>
    %179 = arith.negf %178 : vector<16x128xf32>
    %180 = math.exp %179 : vector<16x128xf32>
    %cst_85 = arith.constant 1.000000e+00 : f32
    %181 = vector.broadcast %cst_85 : f32 to vector<16x128xf32>
    %182 = arith.addf %181, %180 : vector<16x128xf32>
    %183 = arith.divf %181, %182 : vector<16x128xf32>
    %184 = arith.mulf %178, %183 : vector<16x128xf32>
    %cst_86 = arith.constant dense<0.000000e+00> : vector<32x128xf32>
    %185 = tpu.matmul %5, %184, %cst_86 {dimension_numbers = #tpu.dot_dimension_numbers<[1], [0], [0], [1], [0, 0, 1, 1], [], []>} : vector<32x16xf32>, vector<16x128xf32>, vector<32x128xf32> -> vector<32x128xf32>
    %186 = arith.mulf %185, %172 : vector<32x128xf32>
    %cst_87 = arith.constant dense<0.000000e+00> : vector<16x128xf32>
    %187 = tpu.matmul %10, %186, %cst_87 {dimension_numbers = #tpu.dot_dimension_numbers<[0], [0], [1], [1], [0, 1, 1, 1], [], []>} : vector<32x16xf32>, vector<32x128xf32>, vector<16x128xf32> -> vector<16x128xf32>
    %cst_88 = arith.constant dense<0.000000e+00> : vector<128xf32>
    %188 = vector.multi_reduction <add>, %187, %cst_88 [0] : vector<16x128xf32> to vector<128xf32>
    %189 = vector.shape_cast %188 : vector<128xf32> to vector<1x128xf32>
    %cst_89 = arith.constant 6.250000e-02 : f32
    %190 = vector.broadcast %cst_89 : f32 to vector<1x128xf32>
    %191 = arith.mulf %189, %190 : vector<1x128xf32>
    %c19 = arith.constant 19 : index
    %c0_90 = arith.constant 0 : index
    %192 = vector.load %arg6[%c19, %c0_90] : memref<20x128xf32, #tpu.memory_space<vmem>>, vector<1x128xf32>
    %193 = arith.mulf %191, %192 : vector<1x128xf32>
    %194 = vector.broadcast %193 : vector<1x128xf32> to vector<16x128xf32>
    %195 = arith.subf %187, %194 : vector<16x128xf32>
    %196 = arith.mulf %195, %195 : vector<16x128xf32>
    %cst_91 = arith.constant dense<0.000000e+00> : vector<128xf32>
    %197 = vector.multi_reduction <add>, %196, %cst_91 [0] : vector<16x128xf32> to vector<128xf32>
    %198 = vector.shape_cast %197 : vector<128xf32> to vector<1x128xf32>
    %cst_92 = arith.constant 6.250000e-02 : f32
    %199 = vector.broadcast %cst_92 : f32 to vector<1x128xf32>
    %200 = arith.mulf %198, %199 : vector<1x128xf32>
    %c17 = arith.constant 17 : index
    %c0_93 = arith.constant 0 : index
    %201 = vector.load %arg6[%c17, %c0_93] : memref<20x128xf32, #tpu.memory_space<vmem>>, vector<1x128xf32>
    %202 = vector.broadcast %201 : vector<1x128xf32> to vector<16x128xf32>
    %203 = arith.mulf %202, %195 : vector<16x128xf32>
    %cst_94 = arith.constant 9.99999974E-6 : f32
    %204 = vector.broadcast %cst_94 : f32 to vector<1x128xf32>
    %205 = arith.addf %200, %204 : vector<1x128xf32>
    %206 = math.sqrt %205 : vector<1x128xf32>
    %207 = vector.broadcast %206 : vector<1x128xf32> to vector<16x128xf32>
    %208 = arith.divf %203, %207 : vector<16x128xf32>
    %c18 = arith.constant 18 : index
    %c0_95 = arith.constant 0 : index
    %209 = vector.load %arg6[%c18, %c0_95] : memref<20x128xf32, #tpu.memory_space<vmem>>, vector<1x128xf32>
    %210 = vector.broadcast %209 : vector<1x128xf32> to vector<16x128xf32>
    %211 = arith.addf %208, %210 : vector<16x128xf32>
    %212 = arith.negf %211 : vector<16x128xf32>
    %213 = math.exp %212 : vector<16x128xf32>
    %cst_96 = arith.constant 1.000000e+00 : f32
    %214 = vector.broadcast %cst_96 : f32 to vector<16x128xf32>
    %215 = arith.addf %214, %213 : vector<16x128xf32>
    %216 = arith.divf %214, %215 : vector<16x128xf32>
    %217 = arith.mulf %211, %216 : vector<16x128xf32>
    %c13_97 = arith.constant 13 : index
    %c0_98 = arith.constant 0 : index
    %c0_99 = arith.constant 0 : index
    %218 = vector.load %arg5[%c13_97, %c0_98, %c0_99] : memref<14x128x128xf32, #tpu.memory_space<vmem>>, vector<1x128x128xf32>
    %219 = vector.shape_cast %218 : vector<1x128x128xf32> to vector<128x128xf32>
    %cst_100 = arith.constant dense<0.000000e+00> : vector<16x128xf32>
    %220 = tpu.matmul %217, %219, %cst_100 {dimension_numbers = #tpu.dot_dimension_numbers<[1], [0], [0], [1], [0, 0, 1, 1], [], []>} : vector<16x128xf32>, vector<128x128xf32>, vector<16x128xf32> -> vector<16x128xf32>
    %c16 = arith.constant 16 : index
    %c0_101 = arith.constant 0 : index
    %221 = vector.load %arg6[%c16, %c0_101] : memref<20x128xf32, #tpu.memory_space<vmem>>, vector<1x128xf32>
    %222 = vector.broadcast %221 : vector<1x128xf32> to vector<16x128xf32>
    %223 = arith.addf %220, %222 : vector<16x128xf32>
    %224 = arith.negf %223 : vector<16x128xf32>
    %225 = math.exp %224 : vector<16x128xf32>
    %cst_102 = arith.constant 1.000000e+00 : f32
    %226 = vector.broadcast %cst_102 : f32 to vector<16x128xf32>
    %227 = arith.addf %226, %225 : vector<16x128xf32>
    %228 = arith.divf %226, %227 : vector<16x128xf32>
    %229 = arith.mulf %223, %228 : vector<16x128xf32>
    %230 = arith.addf %160, %229 : vector<16x128xf32>
    %c0_103 = arith.constant 0 : index
    %c0_104 = arith.constant 0 : index
    %231 = vector.load %arg7[%c0_103, %c0_104] : memref<16x128xf32, #tpu.memory_space<vmem>>, vector<16x128xf32>
    tpu.vector_store %arg7[%c0_103, %c0_104], %230 {strides = array<i32>} : memref<16x128xf32, #tpu.memory_space<vmem>>, vector<16x128xf32>,
    %c6 = arith.constant 6 : index
    %c0_105 = arith.constant 0 : index
    %c0_106 = arith.constant 0 : index
    %232 = vector.load %arg5[%c6, %c0_105, %c0_106] : memref<14x128x128xf32, #tpu.memory_space<vmem>>, vector<1x128x128xf32>
    %233 = vector.shape_cast %232 : vector<1x128x128xf32> to vector<128x128xf32>
    %cst_107 = arith.constant dense<0.000000e+00> : vector<16x128xf32>
    %234 = tpu.matmul %230, %233, %cst_107 {dimension_numbers = #tpu.dot_dimension_numbers<[1], [0], [0], [1], [0, 0, 1, 1], [], []>} : vector<16x128xf32>, vector<128x128xf32>, vector<16x128xf32> -> vector<16x128xf32>
    %c5_108 = arith.constant 5 : index
    %c0_109 = arith.constant 0 : index
    %235 = vector.load %arg6[%c5_108, %c0_109] : memref<20x128xf32, #tpu.memory_space<vmem>>, vector<1x128xf32>
    %236 = vector.broadcast %235 : vector<1x128xf32> to vector<16x128xf32>
    %237 = arith.addf %234, %236 : vector<16x128xf32>
    %238 = arith.negf %237 : vector<16x128xf32>
    %239 = math.exp %238 : vector<16x128xf32>
    %cst_110 = arith.constant 1.000000e+00 : f32
    %240 = vector.broadcast %cst_110 : f32 to vector<16x128xf32>
    %241 = arith.addf %240, %239 : vector<16x128xf32>
    %242 = arith.divf %240, %241 : vector<16x128xf32>
    %243 = arith.mulf %237, %242 : vector<16x128xf32>
    %c7_111 = arith.constant 7 : index
    %c0_112 = arith.constant 0 : index
    %c0_113 = arith.constant 0 : index
    %244 = vector.load %arg5[%c7_111, %c0_112, %c0_113] : memref<14x128x128xf32, #tpu.memory_space<vmem>>, vector<1x128x128xf32>
    %245 = vector.shape_cast %244 : vector<1x128x128xf32> to vector<128x128xf32>
    %cst_114 = arith.constant dense<0.000000e+00> : vector<16x128xf32>
    %246 = tpu.matmul %243, %245, %cst_114 {dimension_numbers = #tpu.dot_dimension_numbers<[1], [0], [0], [1], [0, 0, 1, 1], [], []>} : vector<16x128xf32>, vector<128x128xf32>, vector<16x128xf32> -> vector<16x128xf32>
    %c6_115 = arith.constant 6 : index
    %c0_116 = arith.constant 0 : index
    %247 = vector.load %arg6[%c6_115, %c0_116] : memref<20x128xf32, #tpu.memory_space<vmem>>, vector<1x128xf32>
    %248 = vector.broadcast %247 : vector<1x128xf32> to vector<16x128xf32>
    %249 = arith.addf %246, %248 : vector<16x128xf32>
    %cst_117 = arith.constant dense<0.000000e+00> : vector<8x128xf32>
    %250 = tpu.matmul %16, %249, %cst_117 {dimension_numbers = #tpu.dot_dimension_numbers<[1], [0], [0], [1], [0, 0, 1, 1], [], []>} : vector<8x16xf32>, vector<16x128xf32>, vector<8x128xf32> -> vector<8x128xf32>
    %c0_118 = arith.constant 0 : index
    %c0_119 = arith.constant 0 : index
    %251 = vector.load %arg8[%c0_118, %c0_119] : memref<8x128xf32, #tpu.memory_space<vmem>>, vector<8x128xf32>
    tpu.vector_store %arg8[%c0_118, %c0_119], %250 {strides = array<i32>} : memref<8x128xf32, #tpu.memory_space<vmem>>, vector<8x128xf32>,
    return
  }
}

</mosaic_0001>

<llo_original>
// kernel: tpu_custom_call.1
$region0: #{tpu_custom_call.1}
  #allocation0 [shape = 'u32[]', space=smem, size = 0x4, offset = 0x4, fixed_abs, tag = 'smem constant byte address 0x4 - core index']
  #allocation1 [shape = 'u32[144,128]{1,0:T(1,128)}', space=vmem, size = 0x12000, scoped, tag = 'internal scratch']
  %s0 = inlined_call_operand.vmem [shape: f32[16,128], index: 0, kind: input, shape index: {}]
  %s1 = inlined_call_operand.vmem [shape: f32[16,128], index: 1, kind: input, shape index: {}]
  %s2 = inlined_call_operand.vmem [shape: s32[32,1], index: 2, kind: input, shape index: {}]
  %s3 = inlined_call_operand.vmem [shape: s32[32,1], index: 3, kind: input, shape index: {}]
  %s4 = inlined_call_operand.vmem [shape: s32[1,16], index: 4, kind: input, shape index: {}]
  %s5 = inlined_call_operand.hbm [shape: f32[14,128,128], index: 5, kind: input, shape index: {}]
  %s6 = inlined_call_operand.vmem [shape: f32[20,128], index: 6, kind: input, shape index: {}]
  %s7 = inlined_call_operand.hbm [shape: f32[16,128], index: 7, kind: output, shape index: {0}]
  %s8 = inlined_call_operand.hbm [shape: f32[8,128], index: 8, kind: output, shape index: {1}]
  %9 = xla_tuple %s7, %s8
  %s10 = sld [smem:[#allocation0]]
  $region50: #{tpu_custom_call.1} parent=0
    _
  %s12 = ssub.s32 1, %s10
  %s13 = scalar_select 0, %s12, %s10
  $region1: #{tpu_custom_call.1} parent=0
    #allocation2 [shape = 'u8[917504]{0}', space=vmem, size = 0xe0000, scoped, tag = 'input window, operand 5, single buffered']
    #allocation3 [shape = 's32[1]{0}', space=sflag, size = 0x4, scoped, tag = 'scoped memory for tpu_custom_call.1']
    #allocation4 [shape = 's32[1]{0}', space=sflag, size = 0x4, scoped, tag = 'scoped memory for tpu_custom_call.1']
    #allocation5 [shape = 'u8[8192]{0}', space=vmem, size = 0x2000, scoped, tag = 'output window, operand 0, single buffered']
    #allocation6 [shape = 'u8[4096]{0}', space=vmem, size = 0x1000, scoped, tag = 'output window, operand 1, single buffered']
    #allocation7 [shape = 's32[1]{0}', space=sflag, size = 0x4, scoped, tag = 'scoped memory for tpu_custom_call.1']
    %14 = vsyncpa [#allocation3], 0
    %15 = vsyncpa [#allocation4], 0
    %16 = vsyncpa [#allocation7], 0
    // Predicated region
    $region2: #{tpu_custom_call.1} parent=1 // pred_check
      _
    $region3: #{tpu_custom_call.1} parent=1 // pred_check_branch
      %18 = sbr.rel (0) target = $region5
    $region4: #{tpu_custom_call.1} parent=1 // pred_region
      _
    $region5: #{tpu_custom_call.1} parent=1 // pred_fallthru
      _
    // Predicated region
    $region6: #{tpu_custom_call.1} parent=1 // pred_check
      _
    $region7: #{tpu_custom_call.1} parent=1 // pred_check_branch
      %20 = sbr.rel (0) target = $region9
    $region8: #{tpu_custom_call.1} parent=1 // pred_region
      _
    $region9: #{tpu_custom_call.1} parent=1 // pred_fallthru
      _
    // Predicated region
    $region10: #{tpu_custom_call.1} parent=1 // pred_check
      _
    $region11: #{tpu_custom_call.1} parent=1 // pred_check_branch
      %22 = sbr.rel (0) target = $region13
    $region12: #{tpu_custom_call.1} parent=1 // pred_region
      _
    $region13: #{tpu_custom_call.1} parent=1 // pred_fallthru
      _
    // Predicated region
    $region14: #{tpu_custom_call.1} parent=1 // pred_check
      _
    $region15: #{tpu_custom_call.1} parent=1 // pred_check_branch
      %24 = sbr.rel (0) target = $region17
    $region16: #{tpu_custom_call.1} parent=1 // pred_region
      _
    $region17: #{tpu_custom_call.1} parent=1 // pred_fallthru
      _
    // Predicated region
    $region18: #{tpu_custom_call.1} parent=1 // pred_check
      _
    $region19: #{tpu_custom_call.1} parent=1 // pred_check_branch
      %26 = sbr.rel (0) target = $region21
    $region20: #{tpu_custom_call.1} parent=1 // pred_region
      _
    $region21: #{tpu_custom_call.1} parent=1 // pred_fallthru
      _
    // Predicated region
    $region22: #{tpu_custom_call.1} parent=1 // pred_check
      _
    $region23: #{tpu_custom_call.1} parent=1 // pred_check_branch
      %28 = sbr.rel (0) target = $region25
    $region24: #{tpu_custom_call.1} parent=1 // pred_region
      %s30 = ssub.s32 28672, 28672
      %31 = vsyncadd [#allocation3], %s30
      %s32 = sshll.u32 [#allocation2], 4
      %s33 = int_to_ptr.vmem [resolvable:$true] %s32
      %38 = dma.hbm_to_vmem [thread:$0]  %s5, 28672, %s33, [#allocation3], 128, 128, 8
    $region25: #{tpu_custom_call.1} parent=1 // pred_fallthru
      _
    // Predicated region
    $region26: #{tpu_custom_call.1} parent=1 // pred_check
      _
    $region27: #{tpu_custom_call.1} parent=1 // pred_check_branch
      %40 = sbr.rel (0) target = $region29
    $region28: #{tpu_custom_call.1} parent=1 // pred_region
      _
    $region29: #{tpu_custom_call.1} parent=1 // pred_fallthru
      _
    // Predicated region
    $region30: #{tpu_custom_call.1} parent=1 // pred_check
      _
    $region31: #{tpu_custom_call.1} parent=1 // pred_check_branch
      %42 = sbr.rel (0) target = $region33
    $region32: #{tpu_custom_call.1} parent=1 // pred_region
      %43 = dma.done [#allocation3], 28672
    $region33: #{tpu_custom_call.1} parent=1 // pred_fallthru
      _
    %v44 = vlaneseq
    %v45 = vand.u32 %v44, 127
    %v46 = vld [vmem:[%s2] sm:$0xff]
    %v47 = vld [vmem:[%s2 + $0x8] sm:$0xff]
    %v48 = vld [vmem:[%s2 + $0x10] sm:$0xff]
    %v49 = vld [vmem:[%s2 + $0x18] sm:$0xff]
    %50 = vset.pattern.permute.xlu0 0
    %51 = vperm.xlu0 %50, %v46
    %v52 = vpop.permute.xlu0 %51
    %53 = vset.pattern.permute.xlu0 0
    %54 = vperm.xlu0 %53, %v47
    %v55 = vpop.permute.xlu0 %54
    %56 = vset.pattern.permute.xlu0 0
    %57 = vperm.xlu0 %56, %v48
    %v58 = vpop.permute.xlu0 %57
    %59 = vset.pattern.permute.xlu0 0
    %60 = vperm.xlu0 %59, %v49
    %v61 = vpop.permute.xlu0 %60
    %vm62 = vcmp.eq.s32.totalorder %v52, %v45
    %vm63 = vcmp.eq.s32.totalorder %v55, %v45
    %vm64 = vcmp.eq.s32.totalorder %v58, %v45
    %vm65 = vcmp.eq.s32.totalorder %v61, %v45
    %v66 = vsel %vm62, 1, 0
    %v67 = vsel %vm63, 1, 0
    %v68 = vsel %vm64, 1, 0
    %v69 = vsel %vm65, 1, 0
    %v70 = vcvt.s32.f32 %v66
    %v71 = vcvt.s32.f32 %v67
    %v72 = vcvt.s32.f32 %v68
    %v73 = vcvt.s32.f32 %v69
    %v74 = vld [vmem:[%s3] sm:$0xff]
    %v75 = vld [vmem:[%s3 + $0x8] sm:$0xff]
    %v76 = vld [vmem:[%s3 + $0x10] sm:$0xff]
    %v77 = vld [vmem:[%s3 + $0x18] sm:$0xff]
    %78 = vset.pattern.permute.xlu0 0
    %79 = vperm.xlu0 %78, %v74
    %v80 = vpop.permute.xlu0 %79
    %81 = vset.pattern.permute.xlu0 0
    %82 = vperm.xlu0 %81, %v75
    %v83 = vpop.permute.xlu0 %82
    %84 = vset.pattern.permute.xlu0 0
    %85 = vperm.xlu0 %84, %v76
    %v86 = vpop.permute.xlu0 %85
    %87 = vset.pattern.permute.xlu0 0
    %88 = vperm.xlu0 %87, %v77
    %v89 = vpop.permute.xlu0 %88
    %vm90 = vcmp.eq.s32.totalorder %v80, %v45
    %vm91 = vcmp.eq.s32.totalorder %v83, %v45
    %vm92 = vcmp.eq.s32.totalorder %v86, %v45
    %vm93 = vcmp.eq.s32.totalorder %v89, %v45
    %v94 = vsel %vm90, 1, 0
    %v95 = vsel %vm91, 1, 0
    %v96 = vsel %vm92, 1, 0
    %v97 = vsel %vm93, 1, 0
    %v98 = vcvt.s32.f32 %v94
    %v99 = vcvt.s32.f32 %v95
    %v100 = vcvt.s32.f32 %v96
    %v101 = vcvt.s32.f32 %v97
    %v102 = vlaneseq
    %v103 = vshrl.u32 %v102, 7
    %v104 = vld [vmem:[%s4] sm:$0x1]
    %v105 = vlaneseq
    %v106 = vshrl.u32 %v105, 7
    %v107 = vsub.s32 0, %v106
    %v108 = vrot.slane %v104, %v107
    %vm109 = vcmp.eq.s32.totalorder %v103, %v108
    %v110 = vsel %vm109, 1, 0
    %v111 = vcvt.s32.f32 %v110
    %v112 = vsub.f32 %v70, %v98
    %v113 = vsub.f32 %v71, %v99
    %v114 = vsub.f32 %v72, %v100
    %v115 = vsub.f32 %v73, %v101
    %v116 = vld [vmem:[%s1] sm:$0xff]
    %v117 = vld [vmem:[%s1 + $0x8] sm:$0xff]
    %vm118 = vcmask 130048
    %v120 = vsel %vm118, %v112, 0
    %v123 = vsel %vm118, %v113, 0
    %v126 = vsel %vm118, %v114, 0
    %v129 = vsel %vm118, %v115, 0
    %131 = vmatprep.subr.mxu0 0.0
    %132 = vmatpush1.msra.mxu0 %v116
    %133 = vmatprep.subr.mxu0 0.0
    %134 = vmatpush1.msra.mxu0 %v117
    %135 = vmatprep.subr.mxu0 0.0
    %136 = vmatpush1.msra.mxu0 0.0
    %137 = vmatprep.subr.mxu0 0.0
    %138 = vmatpush1.msra.mxu0 0.0
    %139 = vmatprep.subr.mxu0 0.0
    %140 = vmatpush1.msra.mxu0 0.0
    %141 = vmatprep.subr.mxu0 0.0
    %142 = vmatpush1.msra.mxu0 0.0
    %143 = vmatprep.subr.mxu0 0.0
    %144 = vmatpush1.msra.mxu0 0.0
    %145 = vmatprep.subr.mxu0 0.0
    %146 = vmatpush1.msra.mxu0 0.0
    %147 = vmatprep.subr.mxu0 0.0
    %148 = vmatpush1.msra.mxu0 0.0
    %149 = vmatprep.subr.mxu0 0.0
    %150 = vmatpush1.msra.mxu0 0.0
    %151 = vmatprep.subr.mxu0 0.0
    %152 = vmatpush1.msra.mxu0 0.0
    %153 = vmatprep.subr.mxu0 0.0
    %154 = vmatpush1.msra.mxu0 0.0
    %155 = vmatprep.subr.mxu0 0.0
    %156 = vmatpush1.msra.mxu0 0.0
    %157 = vmatprep.subr.mxu0 0.0
    %158 = vmatpush1.msra.mxu0 0.0
    %159 = vmatprep.subr.mxu0 0.0
    %160 = vmatpush1.msra.mxu0 0.0
    %161 = vmatprep.subr.mxu0 0.0
    %162 = vmatpush1.msra.mxu0 0.0
    %163 = vmatprep.subr.mxu0 0.0
    %164 = vmatpush1.msra.mxu0 0.0
    %165 = vmatprep.subr.mxu0 0.0
    %166 = vmatpush1.msra.mxu0 0.0
    %167 = vmatprep.subr.mxu0 0.0
    %168 = vmatpush1.msra.mxu0 0.0
    %169 = vmatprep.subr.mxu0 0.0
    %170 = vmatpush1.msra.mxu0 0.0
    %171 = vmatprep.subr.mxu0 0.0
    %172 = vmatpush1.msra.mxu0 0.0
    %173 = vmatprep.subr.mxu0 0.0
    %174 = vmatpush1.msra.mxu0 0.0
    %175 = vmatprep.subr.mxu0 0.0
    %176 = vmatpush1.msra.mxu0 0.0
    %177 = vmatprep.subr.mxu0 0.0
    %178 = vmatpush1.msra.mxu0 0.0
    %179 = vmatprep.subr.mxu0 0.0
    %180 = vmatpush1.msra.mxu0 0.0
    %181 = vmatprep.subr.mxu0 0.0
    %182 = vmatpush1.msra.mxu0 0.0
    %183 = vmatprep.subr.mxu0 0.0
    %184 = vmatpush1.msra.mxu0 0.0
    %185 = vmatprep.subr.mxu0 0.0
    %186 = vmatpush1.msra.mxu0 0.0
    %187 = vmatprep.subr.mxu0 0.0
    %188 = vmatpush1.msra.mxu0 0.0
    %189 = vmatprep.subr.mxu0 0.0
    %190 = vmatpush1.msra.mxu0 0.0
    %191 = vmatprep.subr.mxu0 0.0
    %192 = vmatpush1.msra.mxu0 0.0
    %193 = vmatprep.subr.mxu0 0.0
    %194 = vmatpush1.msra.mxu0 0.0
    %195 = vmatprep.mubr.f32.mxu0 0.0
    %196 = vmatmul.mubr.f32.gmra.mrb[0].mxu0 %v120
    %v197 = vpop.f32.mrb[0].mxu0
    %v198 = vadd.f32 0.0, %v197
    %v199 = vpop.f32.mrb[0].mxu0
    %200 = vmatprep.mubr.f32.mxu0 0.0
    %201 = vmatmul.mubr.f32.gmra.mrb[0].mxu0 %v123
    %v202 = vpop.f32.mrb[0].mxu0
    %v203 = vadd.f32 0.0, %v202
    %v204 = vpop.f32.mrb[0].mxu0
    %205 = vmatprep.mubr.f32.mxu0 0.0
    %206 = vmatmul.mubr.f32.gmra.mrb[0].mxu0 %v126
    %v207 = vpop.f32.mrb[0].mxu0
    %v208 = vadd.f32 0.0, %v207
    %v209 = vpop.f32.mrb[0].mxu0
    %210 = vmatprep.mubr.f32.mxu0 0.0
    %211 = vmatmul.mubr.f32.gmra.mrb[0].mxu0 %v129
    %v212 = vpop.f32.mrb[0].mxu0
    %v213 = vadd.f32 0.0, %v212
    %v214 = vpop.f32.mrb[0].mxu0
    %215 = vdwg.mxu0
    %v216 = vmul.f32 %v198, %v198
    %v217 = vmul.f32 %v203, %v203
    %v218 = vmul.f32 %v208, %v208
    %v219 = vmul.f32 %v213, %v213
    %220 = vadd.xlane.f32.xlu0 %v216
    %v221 = vpop.xlane.xlu0 %220
    %222 = vadd.xlane.f32.xlu0 %v217
    %v223 = vpop.xlane.xlu0 %222
    %224 = vadd.xlane.f32.xlu0 %v218
    %v225 = vpop.xlane.xlu0 %224
    %226 = vadd.xlane.f32.xlu0 %v219
    %v227 = vpop.xlane.xlu0 %226
    %v228 = vrsqrt.pop %v221
    %v229 = vmul.f32 %v221, %v228
    %vm230 = vcmp.eq.f32.partialorder %v221, inf
    %v231 = vsel %vm230, %v221, %v229
    %vm232 = vcmp.eq.f32.partialorder %v221, 0.0
    %v233 = vand.u32 %v221, 2147483648
    %v234 = vsel %vm232, %v233, %v231
    %v235 = vrsqrt.pop %v223
    %v236 = vmul.f32 %v223, %v235
    %vm237 = vcmp.eq.f32.partialorder %v223, inf
    %v238 = vsel %vm237, %v223, %v236
    %vm239 = vcmp.eq.f32.partialorder %v223, 0.0
    %v240 = vand.u32 %v223, 2147483648
    %v241 = vsel %vm239, %v240, %v238
    %v242 = vrsqrt.pop %v225
    %v243 = vmul.f32 %v225, %v242
    %vm244 = vcmp.eq.f32.partialorder %v225, inf
    %v245 = vsel %vm244, %v225, %v243
    %vm246 = vcmp.eq.f32.partialorder %v225, 0.0
    %v247 = vand.u32 %v225, 2147483648
    %v248 = vsel %vm246, %v247, %v245
    %v249 = vrsqrt.pop %v227
    %v250 = vmul.f32 %v227, %v249
    %vm251 = vcmp.eq.f32.partialorder %v227, inf
    %v252 = vsel %vm251, %v227, %v250
    %vm253 = vcmp.eq.f32.partialorder %v227, 0.0
    %v254 = vand.u32 %v227, 2147483648
    %v255 = vsel %vm253, %v254, %v252
    %v256 = vld [vmem:[%s6 + $0x7] sm:$0x1]
    %v257 = vlaneseq
    %v258 = vshrl.u32 %v257, 7
    %v259 = vsub.s32 0, %v258
    %v260 = vrot.slane %v256, %v259
    %v261 = vsub.f32 %v234, %v260
    %v262 = vsub.f32 %v241, %v260
    %v263 = vsub.f32 %v248, %v260
    %v264 = vsub.f32 %v255, %v260
    %v265 = vmul.f32 %v261, -3.125
    %v266 = vmul.f32 %v262, -3.125
    %v267 = vmul.f32 %v263, -3.125
    %v268 = vmul.f32 %v264, -3.125
    %v269 = vmul.f32 %v265, %v261
    %v270 = vmul.f32 %v266, %v262
    %v271 = vmul.f32 %v267, %v263
    %v272 = vmul.f32 %v268, %v264
    %v273 = vmul.f32 %v269, 1.442695
    %v274 = vpow.pop %v273
    %v275 = vmul.f32 %v270, 1.442695
    %v276 = vpow.pop %v275
    %v277 = vmul.f32 %v271, 1.442695
    %v278 = vpow.pop %v277
    %v279 = vmul.f32 %v272, 1.442695
    %v280 = vpow.pop %v279
    %s281 = scalar_lea.vmem [#allocation2], 384
    %v282 = vld [vmem:[%s281] sm:$0xff]
    %v283 = vld [vmem:[%s281 + $0x8] sm:$0xff]
    %v284 = vld [vmem:[%s281 + $0x10] sm:$0xff]
    %v285 = vld [vmem:[%s281 + $0x18] sm:$0xff]
    %v286 = vld [vmem:[%s281 + $0x20] sm:$0xff]
    %v287 = vld [vmem:[%s281 + $0x28] sm:$0xff]
    %v288 = vld [vmem:[%s281 + $0x30] sm:$0xff]
    %v289 = vld [vmem:[%s281 + $0x38] sm:$0xff]
    %v290 = vld [vmem:[%s281 + $0x40] sm:$0xff]
    %v291 = vld [vmem:[%s281 + $0x48] sm:$0xff]
    %v292 = vld [vmem:[%s281 + $0x50] sm:$0xff]
    %v293 = vld [vmem:[%s281 + $0x58] sm:$0xff]
    %v294 = vld [vmem:[%s281 + $0x60] sm:$0xff]
    %v295 = vld [vmem:[%s281 + $0x68] sm:$0xff]
    %v296 = vld [vmem:[%s281 + $0x70] sm:$0xff]
    %v297 = vld [vmem:[%s281 + $0x78] sm:$0xff]
    %s298 = scalar_lea.vmem [#allocation2], 512
    %v299 = vld [vmem:[%s298] sm:$0xff]
    %v300 = vld [vmem:[%s298 + $0x8] sm:$0xff]
    %v301 = vld [vmem:[%s298 + $0x10] sm:$0xff]
    %v302 = vld [vmem:[%s298 + $0x18] sm:$0xff]
    %v303 = vld [vmem:[%s298 + $0x20] sm:$0xff]
    %v304 = vld [vmem:[%s298 + $0x28] sm:$0xff]
    %v305 = vld [vmem:[%s298 + $0x30] sm:$0xff]
    %v306 = vld [vmem:[%s298 + $0x38] sm:$0xff]
    %v307 = vld [vmem:[%s298 + $0x40] sm:$0xff]
    %v308 = vld [vmem:[%s298 + $0x48] sm:$0xff]
    %v309 = vld [vmem:[%s298 + $0x50] sm:$0xff]
    %v310 = vld [vmem:[%s298 + $0x58] sm:$0xff]
    %v311 = vld [vmem:[%s298 + $0x60] sm:$0xff]
    %v312 = vld [vmem:[%s298 + $0x68] sm:$0xff]
    %v313 = vld [vmem:[%s298 + $0x70] sm:$0xff]
    %v314 = vld [vmem:[%s298 + $0x78] sm:$0xff]
    %315 = vmatprep.subr.mxu0 0.0
    %316 = vmatpush1.msra.mxu0 %v299
    %317 = vmatprep.subr.mxu0 0.0
    %318 = vmatpush1.msra.mxu0 %v300
    %319 = vmatprep.subr.mxu0 0.0
    %320 = vmatpush1.msra.mxu0 %v301
    %321 = vmatprep.subr.mxu0 0.0
    %322 = vmatpush1.msra.mxu0 %v302
    %323 = vmatprep.subr.mxu0 0.0
    %324 = vmatpush1.msra.mxu0 %v303
    %325 = vmatprep.subr.mxu0 0.0
    %326 = vmatpush1.msra.mxu0 %v304
    %327 = vmatprep.subr.mxu0 0.0
    %328 = vmatpush1.msra.mxu0 %v305
    %329 = vmatprep.subr.mxu0 0.0
    %330 = vmatpush1.msra.mxu0 %v306
    %331 = vmatprep.subr.mxu0 0.0
    %332 = vmatpush1.msra.mxu0 %v307
    %333 = vmatprep.subr.mxu0 0.0
    %334 = vmatpush1.msra.mxu0 %v308
    %335 = vmatprep.subr.mxu0 0.0
    %336 = vmatpush1.msra.mxu0 %v309
    %337 = vmatprep.subr.mxu0 0.0
    %338 = vmatpush1.msra.mxu0 %v310
    %339 = vmatprep.subr.mxu0 0.0
    %340 = vmatpush1.msra.mxu0 %v311
    %341 = vmatprep.subr.mxu0 0.0
    %342 = vmatpush1.msra.mxu0 %v312
    %343 = vmatprep.subr.mxu0 0.0
    %344 = vmatpush1.msra.mxu0 %v313
    %345 = vmatprep.subr.mxu0 0.0
    %346 = vmatpush1.msra.mxu0 %v314
    %347 = vmatprep.subr.mxu0 0.0
    %348 = vmatpush1.msra.mxu0 0.0
    %349 = vmatprep.subr.mxu0 0.0
    %350 = vmatpush1.msra.mxu0 0.0
    %351 = vmatprep.subr.mxu0 0.0
    %352 = vmatpush1.msra.mxu0 0.0
    %353 = vmatprep.subr.mxu0 0.0
    %354 = vmatpush1.msra.mxu0 0.0
    %355 = vmatprep.subr.mxu0 0.0
    %356 = vmatpush1.msra.mxu0 0.0
    %357 = vmatprep.subr.mxu0 0.0
    %358 = vmatpush1.msra.mxu0 0.0
    %359 = vmatprep.subr.mxu0 0.0
    %360 = vmatpush1.msra.mxu0 0.0
    %361 = vmatprep.subr.mxu0 0.0
    %362 = vmatpush1.msra.mxu0 0.0
    %363 = vmatprep.subr.mxu0 0.0
    %364 = vmatpush1.msra.mxu0 0.0
    %365 = vmatprep.subr.mxu0 0.0
    %366 = vmatpush1.msra.mxu0 0.0
    %367 = vmatprep.subr.mxu0 0.0
    %368 = vmatpush1.msra.mxu0 0.0
    %369 = vmatprep.subr.mxu0 0.0
    %370 = vmatpush1.msra.mxu0 0.0
    %371 = vmatprep.subr.mxu0 0.0
    %372 = vmatpush1.msra.mxu0 0.0
    %373 = vmatprep.subr.mxu0 0.0
    %374 = vmatpush1.msra.mxu0 0.0
    %375 = vmatprep.subr.mxu0 0.0
    %376 = vmatpush1.msra.mxu0 0.0
    %377 = vmatprep.subr.mxu0 0.0
    %378 = vmatpush1.msra.mxu0 0.0
    %379 = vmatprep.mubr.f32.mxu0 0.0
    %380 = vmatmul.mubr.f32.gmra.mrb[0].mxu0 %v274
    %v381 = vpop.f32.mrb[0].mxu0
    %v382 = vadd.f32 0.0, %v381
    %v383 = vpop.f32.mrb[0].mxu0
    %384 = vmatprep.mubr.f32.mxu0 0.0
    %385 = vmatmul.mubr.f32.gmra.mrb[0].mxu0 %v276
    %v386 = vpop.f32.mrb[0].mxu0
    %v387 = vadd.f32 0.0, %v386
    %v388 = vpop.f32.mrb[0].mxu0
    %389 = vmatprep.mubr.f32.mxu0 0.0
    %390 = vmatmul.mubr.f32.gmra.mrb[0].mxu0 %v278
    %v391 = vpop.f32.mrb[0].mxu0
    %v392 = vadd.f32 0.0, %v391
    %v393 = vpop.f32.mrb[0].mxu0
    %394 = vmatprep.mubr.f32.mxu0 0.0
    %395 = vmatmul.mubr.f32.gmra.mrb[0].mxu0 %v280
    %v396 = vpop.f32.mrb[0].mxu0
    %v397 = vadd.f32 0.0, %v396
    %v398 = vpop.f32.mrb[0].mxu0
    %399 = vdwg.mxu0
    %400 = vmatprep.subr.mxu0 0.0
    %401 = vmatpush1.msra.mxu0 %v282
    %402 = vmatprep.subr.mxu0 0.0
    %403 = vmatpush1.msra.mxu0 %v283
    %404 = vmatprep.subr.mxu0 0.0
    %405 = vmatpush1.msra.mxu0 %v284
    %406 = vmatprep.subr.mxu0 0.0
    %407 = vmatpush1.msra.mxu0 %v285
    %408 = vmatprep.subr.mxu0 0.0
    %409 = vmatpush1.msra.mxu0 %v286
    %410 = vmatprep.subr.mxu0 0.0
    %411 = vmatpush1.msra.mxu0 %v287
    %412 = vmatprep.subr.mxu0 0.0
    %413 = vmatpush1.msra.mxu0 %v288
    %414 = vmatprep.subr.mxu0 0.0
    %415 = vmatpush1.msra.mxu0 %v289
    %416 = vmatprep.subr.mxu0 0.0
    %417 = vmatpush1.msra.mxu0 %v290
    %418 = vmatprep.subr.mxu0 0.0
    %419 = vmatpush1.msra.mxu0 %v291
    %420 = vmatprep.subr.mxu0 0.0
    %421 = vmatpush1.msra.mxu0 %v292
    %422 = vmatprep.subr.mxu0 0.0
    %423 = vmatpush1.msra.mxu0 %v293
    %424 = vmatprep.subr.mxu0 0.0
    %425 = vmatpush1.msra.mxu0 %v294
    %426 = vmatprep.subr.mxu0 0.0
    %427 = vmatpush1.msra.mxu0 %v295
    %428 = vmatprep.subr.mxu0 0.0
    %429 = vmatpush1.msra.mxu0 %v296
    %430 = vmatprep.subr.mxu0 0.0
    %431 = vmatpush1.msra.mxu0 %v297
    %432 = vmatprep.subr.mxu0 0.0
    %433 = vmatpush1.msra.mxu0 0.0
    %434 = vmatprep.subr.mxu0 0.0
    %435 = vmatpush1.msra.mxu0 0.0
    %436 = vmatprep.subr.mxu0 0.0
    %437 = vmatpush1.msra.mxu0 0.0
    %438 = vmatprep.subr.mxu0 0.0
    %439 = vmatpush1.msra.mxu0 0.0
    %440 = vmatprep.subr.mxu0 0.0
    %441 = vmatpush1.msra.mxu0 0.0
    %442 = vmatprep.subr.mxu0 0.0
    %443 = vmatpush1.msra.mxu0 0.0
    %444 = vmatprep.subr.mxu0 0.0
    %445 = vmatpush1.msra.mxu0 0.0
    %446 = vmatprep.subr.mxu0 0.0
    %447 = vmatpush1.msra.mxu0 0.0
    %448 = vmatprep.subr.mxu0 0.0
    %449 = vmatpush1.msra.mxu0 0.0
    %450 = vmatprep.subr.mxu0 0.0
    %451 = vmatpush1.msra.mxu0 0.0
    %452 = vmatprep.subr.mxu0 0.0
    %453 = vmatpush1.msra.mxu0 0.0
    %454 = vmatprep.subr.mxu0 0.0
    %455 = vmatpush1.msra.mxu0 0.0
    %456 = vmatprep.subr.mxu0 0.0
    %457 = vmatpush1.msra.mxu0 0.0
    %458 = vmatprep.subr.mxu0 0.0
    %459 = vmatpush1.msra.mxu0 0.0
    %460 = vmatprep.subr.mxu0 0.0
    %461 = vmatpush1.msra.mxu0 0.0
    %462 = vmatprep.subr.mxu0 0.0
    %463 = vmatpush1.msra.mxu0 0.0
    %464 = vmatprep.mubr.f32.mxu0 0.0
    %465 = vmatmul.mubr.f32.gmra.mrb[0].mxu0 %v198
    %v466 = vpop.f32.mrb[0].mxu0
    %v467 = vadd.f32 %v382, %v466
    %v468 = vpop.f32.mrb[0].mxu0
    %469 = vmatprep.mubr.f32.mxu0 0.0
    %470 = vmatmul.mubr.f32.gmra.mrb[0].mxu0 %v203
    %v471 = vpop.f32.mrb[0].mxu0
    %v472 = vadd.f32 %v387, %v471
    %v473 = vpop.f32.mrb[0].mxu0
    %474 = vmatprep.mubr.f32.mxu0 0.0
    %475 = vmatmul.mubr.f32.gmra.mrb[0].mxu0 %v208
    %v476 = vpop.f32.mrb[0].mxu0
    %v477 = vadd.f32 %v392, %v476
    %v478 = vpop.f32.mrb[0].mxu0
    %479 = vmatprep.mubr.f32.mxu0 0.0
    %480 = vmatmul.mubr.f32.gmra.mrb[0].mxu0 %v213
    %v481 = vpop.f32.mrb[0].mxu0
    %v482 = vadd.f32 %v397, %v481
    %v483 = vpop.f32.mrb[0].mxu0
    %484 = vdwg.mxu0
    %v485 = vld [vmem:[%s6 + $0x3] sm:$0x1]
    %v486 = vlaneseq
    %v487 = vshrl.u32 %v486, 7
    %v488 = vsub.s32 0, %v487
    %v489 = vrot.slane %v485, %v488
    %v490 = vadd.f32 %v467, %v489
    %v491 = vadd.f32 %v472, %v489
    %v492 = vadd.f32 %v477, %v489
    %v493 = vadd.f32 %v482, %v489
    %v494 = vxor.u32 %v490, 2147483648
    %v495 = vxor.u32 %v491, 2147483648
    %v496 = vxor.u32 %v492, 2147483648
    %v497 = vxor.u32 %v493, 2147483648
    %v498 = vmul.f32 %v494, 1.442695
    %v499 = vpow.pop %v498
    %v500 = vmul.f32 %v495, 1.442695
    %v501 = vpow.pop %v500
    %v502 = vmul.f32 %v496, 1.442695
    %v503 = vpow.pop %v502
    %v504 = vmul.f32 %v497, 1.442695
    %v505 = vpow.pop %v504
    %v506 = vadd.f32 %v499, 1.0
    %v507 = vadd.f32 %v501, 1.0
    %v508 = vadd.f32 %v503, 1.0
    %v509 = vadd.f32 %v505, 1.0
    %v510 = vrcp.pop %v506
    %v511 = vmul.f32 1.0, %v510
    %v512 = vrcp.pop %v507
    %v513 = vmul.f32 1.0, %v512
    %v514 = vrcp.pop %v508
    %v515 = vmul.f32 1.0, %v514
    %v516 = vrcp.pop %v509
    %v517 = vmul.f32 1.0, %v516
    %v518 = vmul.f32 %v490, %v511
    %v519 = vmul.f32 %v491, %v513
    %v520 = vmul.f32 %v492, %v515
    %v521 = vmul.f32 %v493, %v517
    %s522 = scalar_lea.vmem [#allocation2], 640
    %v523 = vld [vmem:[%s522] sm:$0xff]
    %v524 = vld [vmem:[%s522 + $0x8] sm:$0xff]
    %v525 = vld [vmem:[%s522 + $0x10] sm:$0xff]
    %v526 = vld [vmem:[%s522 + $0x18] sm:$0xff]
    %v527 = vld [vmem:[%s522 + $0x20] sm:$0xff]
    %v528 = vld [vmem:[%s522 + $0x28] sm:$0xff]
    %v529 = vld [vmem:[%s522 + $0x30] sm:$0xff]
    %v530 = vld [vmem:[%s522 + $0x38] sm:$0xff]
    %v531 = vld [vmem:[%s522 + $0x40] sm:$0xff]
    %v532 = vld [vmem:[%s522 + $0x48] sm:$0xff]
    %v533 = vld [vmem:[%s522 + $0x50] sm:$0xff]
    %v534 = vld [vmem:[%s522 + $0x58] sm:$0xff]
    %v535 = vld [vmem:[%s522 + $0x60] sm:$0xff]
    %v536 = vld [vmem:[%s522 + $0x68] sm:$0xff]
    %v537 = vld [vmem:[%s522 + $0x70] sm:$0xff]
    %v538 = vld [vmem:[%s522 + $0x78] sm:$0xff]
    %v539 = vld [vmem:[%s6 + $0x4] sm:$0x1]
    %v540 = vlaneseq
    %v541 = vshrl.u32 %v540, 7
    %v542 = vsub.s32 0, %v541
    %v543 = vrot.slane %v539, %v542
    %544 = vmatprep.subr.mxu0 0.0
    %545 = vmatpush1.msra.mxu0 %v523
    %546 = vmatprep.subr.mxu0 0.0
    %547 = vmatpush1.msra.mxu0 %v524
    %548 = vmatprep.subr.mxu0 0.0
    %549 = vmatpush1.msra.mxu0 %v525
    %550 = vmatprep.subr.mxu0 0.0
    %551 = vmatpush1.msra.mxu0 %v526
    %552 = vmatprep.subr.mxu0 0.0
    %553 = vmatpush1.msra.mxu0 %v527
    %554 = vmatprep.subr.mxu0 0.0
    %555 = vmatpush1.msra.mxu0 %v528
    %556 = vmatprep.subr.mxu0 0.0
    %557 = vmatpush1.msra.mxu0 %v529
    %558 = vmatprep.subr.mxu0 0.0
    %559 = vmatpush1.msra.mxu0 %v530
    %560 = vmatprep.subr.mxu0 0.0
    %561 = vmatpush1.msra.mxu0 %v531
    %562 = vmatprep.subr.mxu0 0.0
    %563 = vmatpush1.msra.mxu0 %v532
    %564 = vmatprep.subr.mxu0 0.0
    %565 = vmatpush1.msra.mxu0 %v533
    %566 = vmatprep.subr.mxu0 0.0
    %567 = vmatpush1.msra.mxu0 %v534
    %568 = vmatprep.subr.mxu0 0.0
    %569 = vmatpush1.msra.mxu0 %v535
    %570 = vmatprep.subr.mxu0 0.0
    %571 = vmatpush1.msra.mxu0 %v536
    %572 = vmatprep.subr.mxu0 0.0
    %573 = vmatpush1.msra.mxu0 %v537
    %574 = vmatprep.subr.mxu0 0.0
    %575 = vmatpush1.msra.mxu0 %v538
    %576 = vmatprep.subr.mxu0 0.0
    %577 = vmatpush1.msra.mxu0 0.0
    %578 = vmatprep.subr.mxu0 0.0
    %579 = vmatpush1.msra.mxu0 0.0
    %580 = vmatprep.subr.mxu0 0.0
    %581 = vmatpush1.msra.mxu0 0.0
    %582 = vmatprep.subr.mxu0 0.0
    %583 = vmatpush1.msra.mxu0 0.0
    %584 = vmatprep.subr.mxu0 0.0
    %585 = vmatpush1.msra.mxu0 0.0
    %586 = vmatprep.subr.mxu0 0.0
    %587 = vmatpush1.msra.mxu0 0.0
    %588 = vmatprep.subr.mxu0 0.0
    %589 = vmatpush1.msra.mxu0 0.0
    %590 = vmatprep.subr.mxu0 0.0
    %591 = vmatpush1.msra.mxu0 0.0
    %592 = vmatprep.subr.mxu0 0.0
    %593 = vmatpush1.msra.mxu0 0.0
    %594 = vmatprep.subr.mxu0 0.0
    %595 = vmatpush1.msra.mxu0 0.0
    %596 = vmatprep.subr.mxu0 0.0
    %597 = vmatpush1.msra.mxu0 0.0
    %598 = vmatprep.subr.mxu0 0.0
    %599 = vmatpush1.msra.mxu0 0.0
    %600 = vmatprep.subr.mxu0 0.0
    %601 = vmatpush1.msra.mxu0 0.0
    %602 = vmatprep.subr.mxu0 0.0
    %603 = vmatpush1.msra.mxu0 0.0
    %604 = vmatprep.subr.mxu0 0.0
    %605 = vmatpush1.msra.mxu0 0.0
    %606 = vmatprep.subr.mxu0 0.0
    %607 = vmatpush1.msra.mxu0 0.0
    %608 = vmatprep.mubr.f32.mxu0 0.0
    %609 = vmatmul.mubr.f32.gmra.mrb[0].mxu0 %v518
    %v610 = vpop.f32.mrb[0].mxu0
    %v611 = vadd.f32 %v543, %v610
    %v612 = vpop.f32.mrb[0].mxu0
    %613 = vmatprep.mubr.f32.mxu0 0.0
    %614 = vmatmul.mubr.f32.gmra.mrb[0].mxu0 %v519
    %v615 = vpop.f32.mrb[0].mxu0
    %v616 = vadd.f32 %v543, %v615
    %v617 = vpop.f32.mrb[0].mxu0
    %618 = vmatprep.mubr.f32.mxu0 0.0
    %619 = vmatmul.mubr.f32.gmra.mrb[0].mxu0 %v520
    %v620 = vpop.f32.mrb[0].mxu0
    %v621 = vadd.f32 %v543, %v620
    %v622 = vpop.f32.mrb[0].mxu0
    %623 = vmatprep.mubr.f32.mxu0 0.0
    %624 = vmatmul.mubr.f32.gmra.mrb[0].mxu0 %v521
    %v625 = vpop.f32.mrb[0].mxu0
    %v626 = vadd.f32 %v543, %v625
    %v627 = vpop.f32.mrb[0].mxu0
    %628 = vdwg.mxu0
    %v629 = vxor.u32 %v611, 2147483648
    %v630 = vxor.u32 %v616, 2147483648
    %v631 = vxor.u32 %v621, 2147483648
    %v632 = vxor.u32 %v626, 2147483648
    %v633 = vmul.f32 %v629, 1.442695
    %v634 = vpow.pop %v633
    %v635 = vmul.f32 %v630, 1.442695
    %v636 = vpow.pop %v635
    %v637 = vmul.f32 %v631, 1.442695
    %v638 = vpow.pop %v637
    %v639 = vmul.f32 %v632, 1.442695
    %v640 = vpow.pop %v639
    %v641 = vadd.f32 %v634, 1.0
    %v642 = vadd.f32 %v636, 1.0
    %v643 = vadd.f32 %v638, 1.0
    %v644 = vadd.f32 %v640, 1.0
    %v645 = vrcp.pop %v641
    %v646 = vmul.f32 1.0, %v645
    %v647 = vrcp.pop %v642
    %v648 = vmul.f32 1.0, %v647
    %v649 = vrcp.pop %v643
    %v650 = vmul.f32 1.0, %v649
    %v651 = vrcp.pop %v644
    %v652 = vmul.f32 1.0, %v651
    %v653 = vmul.f32 %v611, %v646
    %v654 = vmul.f32 %v616, %v648
    %v655 = vmul.f32 %v621, %v650
    %v656 = vmul.f32 %v626, %v652
    %v657 = vld [vmem:[%s0] sm:$0xff]
    %v658 = vld [vmem:[%s0 + $0x8] sm:$0xff]
    %v659 = vld [vmem:[#allocation2] sm:$0xff]
    %v660 = vld [vmem:[#allocation2 + $0x8] sm:$0xff]
    %v661 = vld [vmem:[#allocation2 + $0x10] sm:$0xff]
    %v662 = vld [vmem:[#allocation2 + $0x18] sm:$0xff]
    %v663 = vld [vmem:[#allocation2 + $0x20] sm:$0xff]
    %v664 = vld [vmem:[#allocation2 + $0x28] sm:$0xff]
    %v665 = vld [vmem:[#allocation2 + $0x30] sm:$0xff]
    %v666 = vld [vmem:[#allocation2 + $0x38] sm:$0xff]
    %v667 = vld [vmem:[#allocation2 + $0x40] sm:$0xff]
    %v668 = vld [vmem:[#allocation2 + $0x48] sm:$0xff]
    %v669 = vld [vmem:[#allocation2 + $0x50] sm:$0xff]
    %v670 = vld [vmem:[#allocation2 + $0x58] sm:$0xff]
    %v671 = vld [vmem:[#allocation2 + $0x60] sm:$0xff]
    %v672 = vld [vmem:[#allocation2 + $0x68] sm:$0xff]
    %v673 = vld [vmem:[#allocation2 + $0x70] sm:$0xff]
    %v674 = vld [vmem:[#allocation2 + $0x78] sm:$0xff]
    %v675 = vld [vmem:[%s6] sm:$0x1]
    %v676 = vlaneseq
    %v677 = vshrl.u32 %v676, 7
    %v678 = vsub.s32 0, %v677
    %v679 = vrot.slane %v675, %v678
    %680 = vmatprep.subr.mxu0 0.0
    %681 = vmatpush1.msra.mxu0 %v659
    %682 = vmatprep.subr.mxu0 0.0
    %683 = vmatpush1.msra.mxu0 %v660
    %684 = vmatprep.subr.mxu0 0.0
    %685 = vmatpush1.msra.mxu0 %v661
    %686 = vmatprep.subr.mxu0 0.0
    %687 = vmatpush1.msra.mxu0 %v662
    %688 = vmatprep.subr.mxu0 0.0
    %689 = vmatpush1.msra.mxu0 %v663
    %690 = vmatprep.subr.mxu0 0.0
    %691 = vmatpush1.msra.mxu0 %v664
    %692 = vmatprep.subr.mxu0 0.0
    %693 = vmatpush1.msra.mxu0 %v665
    %694 = vmatprep.subr.mxu0 0.0
    %695 = vmatpush1.msra.mxu0 %v666
    %696 = vmatprep.subr.mxu0 0.0
    %697 = vmatpush1.msra.mxu0 %v667
    %698 = vmatprep.subr.mxu0 0.0
    %699 = vmatpush1.msra.mxu0 %v668
    %700 = vmatprep.subr.mxu0 0.0
    %701 = vmatpush1.msra.mxu0 %v669
    %702 = vmatprep.subr.mxu0 0.0
    %703 = vmatpush1.msra.mxu0 %v670
    %704 = vmatprep.subr.mxu0 0.0
    %705 = vmatpush1.msra.mxu0 %v671
    %706 = vmatprep.subr.mxu0 0.0
    %707 = vmatpush1.msra.mxu0 %v672
    %708 = vmatprep.subr.mxu0 0.0
    %709 = vmatpush1.msra.mxu0 %v673
    %710 = vmatprep.subr.mxu0 0.0
    %711 = vmatpush1.msra.mxu0 %v674
    %712 = vmatprep.subr.mxu0 0.0
    %713 = vmatpush1.msra.mxu0 0.0
    %714 = vmatprep.subr.mxu0 0.0
    %715 = vmatpush1.msra.mxu0 0.0
    %716 = vmatprep.subr.mxu0 0.0
    %717 = vmatpush1.msra.mxu0 0.0
    %718 = vmatprep.subr.mxu0 0.0
    %719 = vmatpush1.msra.mxu0 0.0
    %720 = vmatprep.subr.mxu0 0.0
    %721 = vmatpush1.msra.mxu0 0.0
    %722 = vmatprep.subr.mxu0 0.0
    %723 = vmatpush1.msra.mxu0 0.0
    %724 = vmatprep.subr.mxu0 0.0
    %725 = vmatpush1.msra.mxu0 0.0
    %726 = vmatprep.subr.mxu0 0.0
    %727 = vmatpush1.msra.mxu0 0.0
    %728 = vmatprep.subr.mxu0 0.0
    %729 = vmatpush1.msra.mxu0 0.0
    %730 = vmatprep.subr.mxu0 0.0
    %731 = vmatpush1.msra.mxu0 0.0
    %732 = vmatprep.subr.mxu0 0.0
    %733 = vmatpush1.msra.mxu0 0.0
    %734 = vmatprep.subr.mxu0 0.0
    %735 = vmatpush1.msra.mxu0 0.0
    %736 = vmatprep.subr.mxu0 0.0
    %737 = vmatpush1.msra.mxu0 0.0
    %738 = vmatprep.subr.mxu0 0.0
    %739 = vmatpush1.msra.mxu0 0.0
    %740 = vmatprep.subr.mxu0 0.0
    %741 = vmatpush1.msra.mxu0 0.0
    %742 = vmatprep.subr.mxu0 0.0
    %743 = vmatpush1.msra.mxu0 0.0
    %744 = vmatprep.mubr.f32.mxu0 0.0
    %745 = vmatmul.mubr.f32.gmra.mrb[0].mxu0 %v657
    %v746 = vpop.f32.mrb[0].mxu0
    %v747 = vadd.f32 %v679, %v746
    %v748 = vpop.f32.mrb[0].mxu0
    %749 = vmatprep.mubr.f32.mxu0 0.0
    %750 = vmatmul.mubr.f32.gmra.mrb[0].mxu0 %v658
    %v751 = vpop.f32.mrb[0].mxu0
    %v752 = vadd.f32 %v679, %v751
    %v753 = vpop.f32.mrb[0].mxu0
    %754 = vdwg.mxu0
    %s755 = scalar_lea.vmem [#allocation2], 128
    %v756 = vld [vmem:[%s755] sm:$0xff]
    %v757 = vld [vmem:[%s755 + $0x8] sm:$0xff]
    %v758 = vld [vmem:[%s755 + $0x10] sm:$0xff]
    %v759 = vld [vmem:[%s755 + $0x18] sm:$0xff]
    %v760 = vld [vmem:[%s755 + $0x20] sm:$0xff]
    %v761 = vld [vmem:[%s755 + $0x28] sm:$0xff]
    %v762 = vld [vmem:[%s755 + $0x30] sm:$0xff]
    %v763 = vld [vmem:[%s755 + $0x38] sm:$0xff]
    %v764 = vld [vmem:[%s755 + $0x40] sm:$0xff]
    %v765 = vld [vmem:[%s755 + $0x48] sm:$0xff]
    %v766 = vld [vmem:[%s755 + $0x50] sm:$0xff]
    %v767 = vld [vmem:[%s755 + $0x58] sm:$0xff]
    %v768 = vld [vmem:[%s755 + $0x60] sm:$0xff]
    %v769 = vld [vmem:[%s755 + $0x68] sm:$0xff]
    %v770 = vld [vmem:[%s755 + $0x70] sm:$0xff]
    %v771 = vld [vmem:[%s755 + $0x78] sm:$0xff]
    %v772 = vld [vmem:[%s6 + $0x1] sm:$0x1]
    %v773 = vlaneseq
    %v774 = vshrl.u32 %v773, 7
    %v775 = vsub.s32 0, %v774
    %v776 = vrot.slane %v772, %v775
    %777 = vmatprep.subr.mxu0 0.0
    %778 = vmatpush1.msra.mxu0 %v756
    %779 = vmatprep.subr.mxu0 0.0
    %780 = vmatpush1.msra.mxu0 %v757
    %781 = vmatprep.subr.mxu0 0.0
    %782 = vmatpush1.msra.mxu0 %v758
    %783 = vmatprep.subr.mxu0 0.0
    %784 = vmatpush1.msra.mxu0 %v759
    %785 = vmatprep.subr.mxu0 0.0
    %786 = vmatpush1.msra.mxu0 %v760
    %787 = vmatprep.subr.mxu0 0.0
    %788 = vmatpush1.msra.mxu0 %v761
    %789 = vmatprep.subr.mxu0 0.0
    %790 = vmatpush1.msra.mxu0 %v762
    %791 = vmatprep.subr.mxu0 0.0
    %792 = vmatpush1.msra.mxu0 %v763
    %793 = vmatprep.subr.mxu0 0.0
    %794 = vmatpush1.msra.mxu0 %v764
    %795 = vmatprep.subr.mxu0 0.0
    %796 = vmatpush1.msra.mxu0 %v765
    %797 = vmatprep.subr.mxu0 0.0
    %798 = vmatpush1.msra.mxu0 %v766
    %799 = vmatprep.subr.mxu0 0.0
    %800 = vmatpush1.msra.mxu0 %v767
    %801 = vmatprep.subr.mxu0 0.0
    %802 = vmatpush1.msra.mxu0 %v768
    %803 = vmatprep.subr.mxu0 0.0
    %804 = vmatpush1.msra.mxu0 %v769
    %805 = vmatprep.subr.mxu0 0.0
    %806 = vmatpush1.msra.mxu0 %v770
    %807 = vmatprep.subr.mxu0 0.0
    %808 = vmatpush1.msra.mxu0 %v771
    %809 = vmatprep.subr.mxu0 0.0
    %810 = vmatpush1.msra.mxu0 0.0
    %811 = vmatprep.subr.mxu0 0.0
    %812 = vmatpush1.msra.mxu0 0.0
    %813 = vmatprep.subr.mxu0 0.0
    %814 = vmatpush1.msra.mxu0 0.0
    %815 = vmatprep.subr.mxu0 0.0
    %816 = vmatpush1.msra.mxu0 0.0
    %817 = vmatprep.subr.mxu0 0.0
    %818 = vmatpush1.msra.mxu0 0.0
    %819 = vmatprep.subr.mxu0 0.0
    %820 = vmatpush1.msra.mxu0 0.0
    %821 = vmatprep.subr.mxu0 0.0
    %822 = vmatpush1.msra.mxu0 0.0
    %823 = vmatprep.subr.mxu0 0.0
    %824 = vmatpush1.msra.mxu0 0.0
    %825 = vmatprep.subr.mxu0 0.0
    %826 = vmatpush1.msra.mxu0 0.0
    %827 = vmatprep.subr.mxu0 0.0
    %828 = vmatpush1.msra.mxu0 0.0
    %829 = vmatprep.subr.mxu0 0.0
    %830 = vmatpush1.msra.mxu0 0.0
    %831 = vmatprep.subr.mxu0 0.0
    %832 = vmatpush1.msra.mxu0 0.0
    %833 = vmatprep.subr.mxu0 0.0
    %834 = vmatpush1.msra.mxu0 0.0
    %835 = vmatprep.subr.mxu0 0.0
    %836 = vmatpush1.msra.mxu0 0.0
    %837 = vmatprep.subr.mxu0 0.0
    %838 = vmatpush1.msra.mxu0 0.0
    %839 = vmatprep.subr.mxu0 0.0
    %840 = vmatpush1.msra.mxu0 0.0
    %841 = vmatprep.mubr.f32.mxu0 0.0
    %842 = vmatmul.mubr.f32.gmra.mrb[0].mxu0 %v747
    %v843 = vpop.f32.mrb[0].mxu0
    %v844 = vadd.f32 %v776, %v843
    %v845 = vpop.f32.mrb[0].mxu0
    %846 = vmatprep.mubr.f32.mxu0 0.0
    %847 = vmatmul.mubr.f32.gmra.mrb[0].mxu0 %v752
    %v848 = vpop.f32.mrb[0].mxu0
    %v849 = vadd.f32 %v776, %v848
    %v850 = vpop.f32.mrb[0].mxu0
    %851 = vdwg.mxu0
    %v852 = vxor.u32 %v844, 2147483648
    %v853 = vxor.u32 %v849, 2147483648
    %v854 = vmul.f32 %v852, 1.442695
    %v855 = vpow.pop %v854
    %v856 = vmul.f32 %v853, 1.442695
    %v857 = vpow.pop %v856
    %v858 = vadd.f32 %v855, 1.0
    %v859 = vadd.f32 %v857, 1.0
    %v860 = vrcp.pop %v858
    %v861 = vmul.f32 1.0, %v860
    %v862 = vrcp.pop %v859
    %v863 = vmul.f32 1.0, %v862
    %v864 = vmul.f32 %v844, %v861
    %v865 = vmul.f32 %v849, %v863
    %s866 = scalar_lea.vmem [#allocation2], 256
    %v867 = vld [vmem:[%s866] sm:$0xff]
    %v868 = vld [vmem:[%s866 + $0x8] sm:$0xff]
    %v869 = vld [vmem:[%s866 + $0x10] sm:$0xff]
    %v870 = vld [vmem:[%s866 + $0x18] sm:$0xff]
    %v871 = vld [vmem:[%s866 + $0x20] sm:$0xff]
    %v872 = vld [vmem:[%s866 + $0x28] sm:$0xff]
    %v873 = vld [vmem:[%s866 + $0x30] sm:$0xff]
    %v874 = vld [vmem:[%s866 + $0x38] sm:$0xff]
    %v875 = vld [vmem:[%s866 + $0x40] sm:$0xff]
    %v876 = vld [vmem:[%s866 + $0x48] sm:$0xff]
    %v877 = vld [vmem:[%s866 + $0x50] sm:$0xff]
    %v878 = vld [vmem:[%s866 + $0x58] sm:$0xff]
    %v879 = vld [vmem:[%s866 + $0x60] sm:$0xff]
    %v880 = vld [vmem:[%s866 + $0x68] sm:$0xff]
    %v881 = vld [vmem:[%s866 + $0x70] sm:$0xff]
    %v882 = vld [vmem:[%s866 + $0x78] sm:$0xff]
    %v883 = vld [vmem:[%s6 + $0x2] sm:$0x1]
    %v884 = vlaneseq
    %v885 = vshrl.u32 %v884, 7
    %v886 = vsub.s32 0, %v885
    %v887 = vrot.slane %v883, %v886
    %888 = vmatprep.subr.mxu0 0.0
    %889 = vmatpush1.msra.mxu0 %v867
    %890 = vmatprep.subr.mxu0 0.0
    %891 = vmatpush1.msra.mxu0 %v868
    %892 = vmatprep.subr.mxu0 0.0
    %893 = vmatpush1.msra.mxu0 %v869
    %894 = vmatprep.subr.mxu0 0.0
    %895 = vmatpush1.msra.mxu0 %v870
    %896 = vmatprep.subr.mxu0 0.0
    %897 = vmatpush1.msra.mxu0 %v871
    %898 = vmatprep.subr.mxu0 0.0
    %899 = vmatpush1.msra.mxu0 %v872
    %900 = vmatprep.subr.mxu0 0.0
    %901 = vmatpush1.msra.mxu0 %v873
    %902 = vmatprep.subr.mxu0 0.0
    %903 = vmatpush1.msra.mxu0 %v874
    %904 = vmatprep.subr.mxu0 0.0
    %905 = vmatpush1.msra.mxu0 %v875
    %906 = vmatprep.subr.mxu0 0.0
    %907 = vmatpush1.msra.mxu0 %v876
    %908 = vmatprep.subr.mxu0 0.0
    %909 = vmatpush1.msra.mxu0 %v877
    %910 = vmatprep.subr.mxu0 0.0
    %911 = vmatpush1.msra.mxu0 %v878
    %912 = vmatprep.subr.mxu0 0.0
    %913 = vmatpush1.msra.mxu0 %v879
    %914 = vmatprep.subr.mxu0 0.0
    %915 = vmatpush1.msra.mxu0 %v880
    %916 = vmatprep.subr.mxu0 0.0
    %917 = vmatpush1.msra.mxu0 %v881
    %918 = vmatprep.subr.mxu0 0.0
    %919 = vmatpush1.msra.mxu0 %v882
    %920 = vmatprep.subr.mxu0 0.0
    %921 = vmatpush1.msra.mxu0 0.0
    %922 = vmatprep.subr.mxu0 0.0
    %923 = vmatpush1.msra.mxu0 0.0
    %924 = vmatprep.subr.mxu0 0.0
    %925 = vmatpush1.msra.mxu0 0.0
    %926 = vmatprep.subr.mxu0 0.0
    %927 = vmatpush1.msra.mxu0 0.0
    %928 = vmatprep.subr.mxu0 0.0
    %929 = vmatpush1.msra.mxu0 0.0
    %930 = vmatprep.subr.mxu0 0.0
    %931 = vmatpush1.msra.mxu0 0.0
    %932 = vmatprep.subr.mxu0 0.0
    %933 = vmatpush1.msra.mxu0 0.0
    %934 = vmatprep.subr.mxu0 0.0
    %935 = vmatpush1.msra.mxu0 0.0
    %936 = vmatprep.subr.mxu0 0.0
    %937 = vmatpush1.msra.mxu0 0.0
    %938 = vmatprep.subr.mxu0 0.0
    %939 = vmatpush1.msra.mxu0 0.0
    %940 = vmatprep.subr.mxu0 0.0
    %941 = vmatpush1.msra.mxu0 0.0
    %942 = vmatprep.subr.mxu0 0.0
    %943 = vmatpush1.msra.mxu0 0.0
    %944 = vmatprep.subr.mxu0 0.0
    %945 = vmatpush1.msra.mxu0 0.0
    %946 = vmatprep.subr.mxu0 0.0
    %947 = vmatpush1.msra.mxu0 0.0
    %948 = vmatprep.subr.mxu0 0.0
    %949 = vmatpush1.msra.mxu0 0.0
    %950 = vmatprep.subr.mxu0 0.0
    %951 = vmatpush1.msra.mxu0 0.0
    %952 = vmatprep.mubr.f32.mxu0 0.0
    %953 = vmatmul.mubr.f32.gmra.mrb[0].mxu0 %v864
    %v954 = vpop.f32.mrb[0].mxu0
    %v955 = vadd.f32 %v887, %v954
    %v956 = vpop.f32.mrb[0].mxu0
    %957 = vmatprep.mubr.f32.mxu0 0.0
    %958 = vmatmul.mubr.f32.gmra.mrb[0].mxu0 %v865
    %v959 = vpop.f32.mrb[0].mxu0
    %v960 = vadd.f32 %v887, %v959
    %v961 = vpop.f32.mrb[0].mxu0
    %962 = vdwg.mxu0
    %v963 = vxor.u32 %v955, 2147483648
    %v964 = vxor.u32 %v960, 2147483648
    %v965 = vmul.f32 %v963, 1.442695
    %v966 = vpow.pop %v965
    %v967 = vmul.f32 %v964, 1.442695
    %v968 = vpow.pop %v967
    %v969 = vadd.f32 %v966, 1.0
    %v970 = vadd.f32 %v968, 1.0
    %v971 = vrcp.pop %v969
    %v972 = vmul.f32 1.0, %v971
    %v973 = vrcp.pop %v970
    %v974 = vmul.f32 1.0, %v973
    %v975 = vmul.f32 %v955, %v972
    %v976 = vmul.f32 %v960, %v974
    %s977 = scalar_lea.vmem [#allocation2], 1024
    %v978 = vld [vmem:[%s977] sm:$0xff]
    %v979 = vld [vmem:[%s977 + $0x8] sm:$0xff]
    %v980 = vld [vmem:[%s977 + $0x10] sm:$0xff]
    %v981 = vld [vmem:[%s977 + $0x18] sm:$0xff]
    %v982 = vld [vmem:[%s977 + $0x20] sm:$0xff]
    %v983 = vld [vmem:[%s977 + $0x28] sm:$0xff]
    %v984 = vld [vmem:[%s977 + $0x30] sm:$0xff]
    %v985 = vld [vmem:[%s977 + $0x38] sm:$0xff]
    %v986 = vld [vmem:[%s977 + $0x40] sm:$0xff]
    %v987 = vld [vmem:[%s977 + $0x48] sm:$0xff]
    %v988 = vld [vmem:[%s977 + $0x50] sm:$0xff]
    %v989 = vld [vmem:[%s977 + $0x58] sm:$0xff]
    %v990 = vld [vmem:[%s977 + $0x60] sm:$0xff]
    %v991 = vld [vmem:[%s977 + $0x68] sm:$0xff]
    %v992 = vld [vmem:[%s977 + $0x70] sm:$0xff]
    %v993 = vld [vmem:[%s977 + $0x78] sm:$0xff]
    %v994 = vld [vmem:[%s6 + $0x8] sm:$0x1]
    %v995 = vlaneseq
    %v996 = vshrl.u32 %v995, 7
    %v997 = vsub.s32 0, %v996
    %v998 = vrot.slane %v994, %v997
    %999 = vmatprep.subr.mxu0 0.0
    %1000 = vmatpush1.msra.mxu0 %v978
    %1001 = vmatprep.subr.mxu0 0.0
    %1002 = vmatpush1.msra.mxu0 %v979
    %1003 = vmatprep.subr.mxu0 0.0
    %1004 = vmatpush1.msra.mxu0 %v980
    %1005 = vmatprep.subr.mxu0 0.0
    %1006 = vmatpush1.msra.mxu0 %v981
    %1007 = vmatprep.subr.mxu0 0.0
    %1008 = vmatpush1.msra.mxu0 %v982
    %1009 = vmatprep.subr.mxu0 0.0
    %1010 = vmatpush1.msra.mxu0 %v983
    %1011 = vmatprep.subr.mxu0 0.0
    %1012 = vmatpush1.msra.mxu0 %v984
    %1013 = vmatprep.subr.mxu0 0.0
    %1014 = vmatpush1.msra.mxu0 %v985
    %1015 = vmatprep.subr.mxu0 0.0
    %1016 = vmatpush1.msra.mxu0 %v986
    %1017 = vmatprep.subr.mxu0 0.0
    %1018 = vmatpush1.msra.mxu0 %v987
    %1019 = vmatprep.subr.mxu0 0.0
    %1020 = vmatpush1.msra.mxu0 %v988
    %1021 = vmatprep.subr.mxu0 0.0
    %1022 = vmatpush1.msra.mxu0 %v989
    %1023 = vmatprep.subr.mxu0 0.0
    %1024 = vmatpush1.msra.mxu0 %v990
    %1025 = vmatprep.subr.mxu0 0.0
    %1026 = vmatpush1.msra.mxu0 %v991
    %1027 = vmatprep.subr.mxu0 0.0
    %1028 = vmatpush1.msra.mxu0 %v992
    %1029 = vmatprep.subr.mxu0 0.0
    %1030 = vmatpush1.msra.mxu0 %v993
    %1031 = vmatprep.subr.mxu0 0.0
    %1032 = vmatpush1.msra.mxu0 0.0
    %1033 = vmatprep.subr.mxu0 0.0
    %1034 = vmatpush1.msra.mxu0 0.0
    %1035 = vmatprep.subr.mxu0 0.0
    %1036 = vmatpush1.msra.mxu0 0.0
    %1037 = vmatprep.subr.mxu0 0.0
    %1038 = vmatpush1.msra.mxu0 0.0
    %1039 = vmatprep.subr.mxu0 0.0
    %1040 = vmatpush1.msra.mxu0 0.0
    %1041 = vmatprep.subr.mxu0 0.0
    %1042 = vmatpush1.msra.mxu0 0.0
    %1043 = vmatprep.subr.mxu0 0.0
    %1044 = vmatpush1.msra.mxu0 0.0
    %1045 = vmatprep.subr.mxu0 0.0
    %1046 = vmatpush1.msra.mxu0 0.0
    %1047 = vmatprep.subr.mxu0 0.0
    %1048 = vmatpush1.msra.mxu0 0.0
    %1049 = vmatprep.subr.mxu0 0.0
    %1050 = vmatpush1.msra.mxu0 0.0
    %1051 = vmatprep.subr.mxu0 0.0
    %1052 = vmatpush1.msra.mxu0 0.0
    %1053 = vmatprep.subr.mxu0 0.0
    %1054 = vmatpush1.msra.mxu0 0.0
    %1055 = vmatprep.subr.mxu0 0.0
    %1056 = vmatpush1.msra.mxu0 0.0
    %1057 = vmatprep.subr.mxu0 0.0
    %1058 = vmatpush1.msra.mxu0 0.0
    %1059 = vmatprep.subr.mxu0 0.0
    %1060 = vmatpush1.msra.mxu0 0.0
    %1061 = vmatprep.subr.mxu0 0.0
    %1062 = vmatpush1.msra.mxu0 0.0
    %1063 = vmatprep.mubr.f32.mxu0 0.0
    %1064 = vmatmul.mubr.f32.gmra.mrb[0].mxu0 %v653
    %v1065 = vpop.f32.mrb[0].mxu0
    %v1066 = vadd.f32 %v998, %v1065
    %v1067 = vpop.f32.mrb[0].mxu0
    %1068 = vmatprep.mubr.f32.mxu0 0.0
    %1069 = vmatmul.mubr.f32.gmra.mrb[0].mxu0 %v654
    %v1070 = vpop.f32.mrb[0].mxu0
    %v1071 = vadd.f32 %v998, %v1070
    %v1072 = vpop.f32.mrb[0].mxu0
    %1073 = vmatprep.mubr.f32.mxu0 0.0
    %1074 = vmatmul.mubr.f32.gmra.mrb[0].mxu0 %v655
    %v1075 = vpop.f32.mrb[0].mxu0
    %v1076 = vadd.f32 %v998, %v1075
    %v1077 = vpop.f32.mrb[0].mxu0
    %1078 = vmatprep.mubr.f32.mxu0 0.0
    %1079 = vmatmul.mubr.f32.gmra.mrb[0].mxu0 %v656
    %v1080 = vpop.f32.mrb[0].mxu0
    %v1081 = vadd.f32 %v998, %v1080
    %v1082 = vpop.f32.mrb[0].mxu0
    %1083 = vdwg.mxu0
    %v1084 = vxor.u32 %v1066, 2147483648
    %v1085 = vxor.u32 %v1071, 2147483648
    %v1086 = vxor.u32 %v1076, 2147483648
    %v1087 = vxor.u32 %v1081, 2147483648
    %v1088 = vmul.f32 %v1084, 1.442695
    %v1089 = vpow.pop %v1088
    %v1090 = vmul.f32 %v1085, 1.442695
    %v1091 = vpow.pop %v1090
    %v1092 = vmul.f32 %v1086, 1.442695
    %v1093 = vpow.pop %v1092
    %v1094 = vmul.f32 %v1087, 1.442695
    %v1095 = vpow.pop %v1094
    %v1096 = vadd.f32 %v1089, 1.0
    %v1097 = vadd.f32 %v1091, 1.0
    %v1098 = vadd.f32 %v1093, 1.0
    %v1099 = vadd.f32 %v1095, 1.0
    %v1100 = vrcp.pop %v1096
    %v1101 = vmul.f32 1.0, %v1100
    %v1102 = vrcp.pop %v1097
    %v1103 = vmul.f32 1.0, %v1102
    %v1104 = vrcp.pop %v1098
    %v1105 = vmul.f32 1.0, %v1104
    %v1106 = vrcp.pop %v1099
    %v1107 = vmul.f32 1.0, %v1106
    %v1108 = vmul.f32 %v1066, %v1101
    %v1109 = vmul.f32 %v1071, %v1103
    %v1110 = vmul.f32 %v1076, %v1105
    %v1111 = vmul.f32 %v1081, %v1107
    %s1112 = scalar_lea.vmem [#allocation2], 1152
    %v1113 = vld [vmem:[%s1112] sm:$0xff]
    %v1114 = vld [vmem:[%s1112 + $0x8] sm:$0xff]
    %v1115 = vld [vmem:[%s1112 + $0x10] sm:$0xff]
    %v1116 = vld [vmem:[%s1112 + $0x18] sm:$0xff]
    %v1117 = vld [vmem:[%s1112 + $0x20] sm:$0xff]
    %v1118 = vld [vmem:[%s1112 + $0x28] sm:$0xff]
    %v1119 = vld [vmem:[%s1112 + $0x30] sm:$0xff]
    %v1120 = vld [vmem:[%s1112 + $0x38] sm:$0xff]
    %v1121 = vld [vmem:[%s1112 + $0x40] sm:$0xff]
    %v1122 = vld [vmem:[%s1112 + $0x48] sm:$0xff]
    %v1123 = vld [vmem:[%s1112 + $0x50] sm:$0xff]
    %v1124 = vld [vmem:[%s1112 + $0x58] sm:$0xff]
    %v1125 = vld [vmem:[%s1112 + $0x60] sm:$0xff]
    %v1126 = vld [vmem:[%s1112 + $0x68] sm:$0xff]
    %v1127 = vld [vmem:[%s1112 + $0x70] sm:$0xff]
    %v1128 = vld [vmem:[%s1112 + $0x78] sm:$0xff]
    %v1129 = vld [vmem:[%s6 + $0x9] sm:$0x1]
    %v1130 = vlaneseq
    %v1131 = vshrl.u32 %v1130, 7
    %v1132 = vsub.s32 0, %v1131
    %v1133 = vrot.slane %v1129, %v1132
    %1134 = vmatprep.subr.mxu0 0.0
    %1135 = vmatpush1.msra.mxu0 %v1113
    %1136 = vmatprep.subr.mxu0 0.0
    %1137 = vmatpush1.msra.mxu0 %v1114
    %1138 = vmatprep.subr.mxu0 0.0
    %1139 = vmatpush1.msra.mxu0 %v1115
    %1140 = vmatprep.subr.mxu0 0.0
    %1141 = vmatpush1.msra.mxu0 %v1116
    %1142 = vmatprep.subr.mxu0 0.0
    %1143 = vmatpush1.msra.mxu0 %v1117
    %1144 = vmatprep.subr.mxu0 0.0
    %1145 = vmatpush1.msra.mxu0 %v1118
    %1146 = vmatprep.subr.mxu0 0.0
    %1147 = vmatpush1.msra.mxu0 %v1119
    %1148 = vmatprep.subr.mxu0 0.0
    %1149 = vmatpush1.msra.mxu0 %v1120
    %1150 = vmatprep.subr.mxu0 0.0
    %1151 = vmatpush1.msra.mxu0 %v1121
    %1152 = vmatprep.subr.mxu0 0.0
    %1153 = vmatpush1.msra.mxu0 %v1122
    %1154 = vmatprep.subr.mxu0 0.0
    %1155 = vmatpush1.msra.mxu0 %v1123
    %1156 = vmatprep.subr.mxu0 0.0
    %1157 = vmatpush1.msra.mxu0 %v1124
    %1158 = vmatprep.subr.mxu0 0.0
    %1159 = vmatpush1.msra.mxu0 %v1125
    %1160 = vmatprep.subr.mxu0 0.0
    %1161 = vmatpush1.msra.mxu0 %v1126
    %1162 = vmatprep.subr.mxu0 0.0
    %1163 = vmatpush1.msra.mxu0 %v1127
    %1164 = vmatprep.subr.mxu0 0.0
    %1165 = vmatpush1.msra.mxu0 %v1128
    %1166 = vmatprep.subr.mxu0 0.0
    %1167 = vmatpush1.msra.mxu0 0.0
    %1168 = vmatprep.subr.mxu0 0.0
    %1169 = vmatpush1.msra.mxu0 0.0
    %1170 = vmatprep.subr.mxu0 0.0
    %1171 = vmatpush1.msra.mxu0 0.0
    %1172 = vmatprep.subr.mxu0 0.0
    %1173 = vmatpush1.msra.mxu0 0.0
    %1174 = vmatprep.subr.mxu0 0.0
    %1175 = vmatpush1.msra.mxu0 0.0
    %1176 = vmatprep.subr.mxu0 0.0
    %1177 = vmatpush1.msra.mxu0 0.0
    %1178 = vmatprep.subr.mxu0 0.0
    %1179 = vmatpush1.msra.mxu0 0.0
    %1180 = vmatprep.subr.mxu0 0.0
    %1181 = vmatpush1.msra.mxu0 0.0
    %1182 = vmatprep.subr.mxu0 0.0
    %1183 = vmatpush1.msra.mxu0 0.0
    %1184 = vmatprep.subr.mxu0 0.0
    %1185 = vmatpush1.msra.mxu0 0.0
    %1186 = vmatprep.subr.mxu0 0.0
    %1187 = vmatpush1.msra.mxu0 0.0
    %1188 = vmatprep.subr.mxu0 0.0
    %1189 = vmatpush1.msra.mxu0 0.0
    %1190 = vmatprep.subr.mxu0 0.0
    %1191 = vmatpush1.msra.mxu0 0.0
    %1192 = vmatprep.subr.mxu0 0.0
    %1193 = vmatpush1.msra.mxu0 0.0
    %1194 = vmatprep.subr.mxu0 0.0
    %1195 = vmatpush1.msra.mxu0 0.0
    %1196 = vmatprep.subr.mxu0 0.0
    %1197 = vmatpush1.msra.mxu0 0.0
    %1198 = vmatprep.mubr.f32.mxu0 0.0
    %1199 = vmatmul.mubr.f32.gmra.mrb[0].mxu0 %v975
    %v1200 = vpop.f32.mrb[0].mxu0
    %v1201 = vadd.f32 %v1133, %v1200
    %v1202 = vpop.f32.mrb[0].mxu0
    %1203 = vmatprep.mubr.f32.mxu0 0.0
    %1204 = vmatmul.mubr.f32.gmra.mrb[0].mxu0 %v976
    %v1205 = vpop.f32.mrb[0].mxu0
    %v1206 = vadd.f32 %v1133, %v1205
    %v1207 = vpop.f32.mrb[0].mxu0
    %1208 = vdwg.mxu0
    %v1209 = vxor.u32 %v1201, 2147483648
    %v1210 = vxor.u32 %v1206, 2147483648
    %v1211 = vmul.f32 %v1209, 1.442695
    %v1212 = vpow.pop %v1211
    %v1213 = vmul.f32 %v1210, 1.442695
    %v1214 = vpow.pop %v1213
    %v1215 = vadd.f32 %v1212, 1.0
    %v1216 = vadd.f32 %v1214, 1.0
    %v1217 = vrcp.pop %v1215
    %v1218 = vmul.f32 1.0, %v1217
    %v1219 = vrcp.pop %v1216
    %v1220 = vmul.f32 1.0, %v1219
    %v1221 = vmul.f32 %v1201, %v1218
    %v1222 = vmul.f32 %v1206, %v1220
    %v1224 = vsel %vm118, %v70, 0
    %v1227 = vsel %vm118, %v71, 0
    %v1230 = vsel %vm118, %v72, 0
    %v1233 = vsel %vm118, %v73, 0
    %1235 = vmatprep.subr.mxu0 0.0
    %1236 = vmatpush1.msra.mxu0 %v1221
    %1237 = vmatprep.subr.mxu0 0.0
    %1238 = vmatpush1.msra.mxu0 %v1222
    %1239 = vmatprep.subr.mxu0 0.0
    %1240 = vmatpush1.msra.mxu0 0.0
    %1241 = vmatprep.subr.mxu0 0.0
    %1242 = vmatpush1.msra.mxu0 0.0
    %1243 = vmatprep.subr.mxu0 0.0
    %1244 = vmatpush1.msra.mxu0 0.0
    %1245 = vmatprep.subr.mxu0 0.0
    %1246 = vmatpush1.msra.mxu0 0.0
    %1247 = vmatprep.subr.mxu0 0.0
    %1248 = vmatpush1.msra.mxu0 0.0
    %1249 = vmatprep.subr.mxu0 0.0
    %1250 = vmatpush1.msra.mxu0 0.0
    %1251 = vmatprep.subr.mxu0 0.0
    %1252 = vmatpush1.msra.mxu0 0.0
    %1253 = vmatprep.subr.mxu0 0.0
    %1254 = vmatpush1.msra.mxu0 0.0
    %1255 = vmatprep.subr.mxu0 0.0
    %1256 = vmatpush1.msra.mxu0 0.0
    %1257 = vmatprep.subr.mxu0 0.0
    %1258 = vmatpush1.msra.mxu0 0.0
    %1259 = vmatprep.subr.mxu0 0.0
    %1260 = vmatpush1.msra.mxu0 0.0
    %1261 = vmatprep.subr.mxu0 0.0
    %1262 = vmatpush1.msra.mxu0 0.0
    %1263 = vmatprep.subr.mxu0 0.0
    %1264 = vmatpush1.msra.mxu0 0.0
    %1265 = vmatprep.subr.mxu0 0.0
    %1266 = vmatpush1.msra.mxu0 0.0
    %1267 = vmatprep.subr.mxu0 0.0
    %1268 = vmatpush1.msra.mxu0 0.0
    %1269 = vmatprep.subr.mxu0 0.0
    %1270 = vmatpush1.msra.mxu0 0.0
    %1271 = vmatprep.subr.mxu0 0.0
    %1272 = vmatpush1.msra.mxu0 0.0
    %1273 = vmatprep.subr.mxu0 0.0
    %1274 = vmatpush1.msra.mxu0 0.0
    %1275 = vmatprep.subr.mxu0 0.0
    %1276 = vmatpush1.msra.mxu0 0.0
    %1277 = vmatprep.subr.mxu0 0.0
    %1278 = vmatpush1.msra.mxu0 0.0
    %1279 = vmatprep.subr.mxu0 0.0
    %1280 = vmatpush1.msra.mxu0 0.0
    %1281 = vmatprep.subr.mxu0 0.0
    %1282 = vmatpush1.msra.mxu0 0.0
    %1283 = vmatprep.subr.mxu0 0.0
    %1284 = vmatpush1.msra.mxu0 0.0
    %1285 = vmatprep.subr.mxu0 0.0
    %1286 = vmatpush1.msra.mxu0 0.0
    %1287 = vmatprep.subr.mxu0 0.0
    %1288 = vmatpush1.msra.mxu0 0.0
    %1289 = vmatprep.subr.mxu0 0.0
    %1290 = vmatpush1.msra.mxu0 0.0
    %1291 = vmatprep.subr.mxu0 0.0
    %1292 = vmatpush1.msra.mxu0 0.0
    %1293 = vmatprep.subr.mxu0 0.0
    %1294 = vmatpush1.msra.mxu0 0.0
    %1295 = vmatprep.subr.mxu0 0.0
    %1296 = vmatpush1.msra.mxu0 0.0
    %1297 = vmatprep.subr.mxu0 0.0
    %1298 = vmatpush1.msra.mxu0 0.0
    %1299 = vmatprep.mubr.f32.mxu0 0.0
    %1300 = vmatmul.mubr.f32.gmra.mrb[0].mxu0 %v1224
    %v1301 = vpop.f32.mrb[0].mxu0
    %v1302 = vadd.f32 0.0, %v1301
    %v1303 = vpop.f32.mrb[0].mxu0
    %1304 = vmatprep.mubr.f32.mxu0 0.0
    %1305 = vmatmul.mubr.f32.gmra.mrb[0].mxu0 %v1227
    %v1306 = vpop.f32.mrb[0].mxu0
    %v1307 = vadd.f32 0.0, %v1306
    %v1308 = vpop.f32.mrb[0].mxu0
    %1309 = vmatprep.mubr.f32.mxu0 0.0
    %1310 = vmatmul.mubr.f32.gmra.mrb[0].mxu0 %v1230
    %v1311 = vpop.f32.mrb[0].mxu0
    %v1312 = vadd.f32 0.0, %v1311
    %v1313 = vpop.f32.mrb[0].mxu0
    %1314 = vmatprep.mubr.f32.mxu0 0.0
    %1315 = vmatmul.mubr.f32.gmra.mrb[0].mxu0 %v1233
    %v1316 = vpop.f32.mrb[0].mxu0
    %v1317 = vadd.f32 0.0, %v1316
    %v1318 = vpop.f32.mrb[0].mxu0
    %1319 = vdwg.mxu0
    %v1320 = vmul.f32 %v1302, %v1108
    %v1321 = vmul.f32 %v1307, %v1109
    %v1322 = vmul.f32 %v1312, %v1110
    %v1323 = vmul.f32 %v1317, %v1111
    %1324 = vxpose.xlu0.b32.start [1/16] %v98, 128
    %1325 = vxpose.xlu0.b32.cont [2/16] %v99, 128
    %1326 = vxpose.xlu0.b32.cont [3/16] %v100, 128
    %1327 = vxpose.xlu0.b32.cont [4/16] %v101, 128
    %1328 = vxpose.xlu0.b32.cont [5/16] 0.0, 128
    %1329 = vxpose.xlu0.b32.cont [6/16] 0.0, 128
    %1330 = vxpose.xlu0.b32.cont [7/16] 0.0, 128
    %1331 = vxpose.xlu0.b32.cont [8/16] 0.0, 128
    %1332 = vxpose.xlu0.b32.cont [9/16] 0.0, 128
    %1333 = vxpose.xlu0.b32.cont [10/16] 0.0, 128
    %1334 = vxpose.xlu0.b32.cont [11/16] 0.0, 128
    %1335 = vxpose.xlu0.b32.cont [12/16] 0.0, 128
    %1336 = vxpose.xlu0.b32.cont [13/16] 0.0, 128
    %1337 = vxpose.xlu0.b32.cont [14/16] 0.0, 128
    %1338 = vxpose.xlu0.b32.cont [15/16] 0.0, 128
    %1339 = vxpose.xlu0.b32.end [16/16] 0.0, 128
    %v1340 = vpop.trf.xlu0
    %v1341 = vpop.trf.xlu0
    %v1342 = vpop.trf.xlu0
    %v1343 = vpop.trf.xlu0
    %v1344 = vpop.trf.xlu0
    %v1345 = vpop.trf.xlu0
    %v1346 = vpop.trf.xlu0
    %v1347 = vpop.trf.xlu0
    %v1348 = vpop.trf.xlu0
    %v1349 = vpop.trf.xlu0
    %v1350 = vpop.trf.xlu0
    %v1351 = vpop.trf.xlu0
    %v1352 = vpop.trf.xlu0
    %v1353 = vpop.trf.xlu0
    %v1354 = vpop.trf.xlu0
    %v1355 = vpop.trf.xlu0
    %vm1356 = vcmask 261120
    %v1358 = vsel %vm1356, %v1340, 0
    %v1361 = vsel %vm1356, %v1341, 0
    %1363 = vmatprep.subr.mxu0 0.0
    %1364 = vmatpush1.msra.mxu0 %v1320
    %1365 = vmatprep.subr.mxu0 0.0
    %1366 = vmatpush1.msra.mxu0 %v1321
    %1367 = vmatprep.subr.mxu0 0.0
    %1368 = vmatpush1.msra.mxu0 %v1322
    %1369 = vmatprep.subr.mxu0 0.0
    %1370 = vmatpush1.msra.mxu0 %v1323
    %1371 = vmatprep.subr.mxu0 0.0
    %1372 = vmatpush1.msra.mxu0 0.0
    %1373 = vmatprep.subr.mxu0 0.0
    %1374 = vmatpush1.msra.mxu0 0.0
    %1375 = vmatprep.subr.mxu0 0.0
    %1376 = vmatpush1.msra.mxu0 0.0
    %1377 = vmatprep.subr.mxu0 0.0
    %1378 = vmatpush1.msra.mxu0 0.0
    %1379 = vmatprep.subr.mxu0 0.0
    %1380 = vmatpush1.msra.mxu0 0.0
    %1381 = vmatprep.subr.mxu0 0.0
    %1382 = vmatpush1.msra.mxu0 0.0
    %1383 = vmatprep.subr.mxu0 0.0
    %1384 = vmatpush1.msra.mxu0 0.0
    %1385 = vmatprep.subr.mxu0 0.0
    %1386 = vmatpush1.msra.mxu0 0.0
    %1387 = vmatprep.subr.mxu0 0.0
    %1388 = vmatpush1.msra.mxu0 0.0
    %1389 = vmatprep.subr.mxu0 0.0
    %1390 = vmatpush1.msra.mxu0 0.0
    %1391 = vmatprep.subr.mxu0 0.0
    %1392 = vmatpush1.msra.mxu0 0.0
    %1393 = vmatprep.subr.mxu0 0.0
    %1394 = vmatpush1.msra.mxu0 0.0
    %1395 = vmatprep.subr.mxu0 0.0
    %1396 = vmatpush1.msra.mxu0 0.0
    %1397 = vmatprep.subr.mxu0 0.0
    %1398 = vmatpush1.msra.mxu0 0.0
    %1399 = vmatprep.subr.mxu0 0.0
    %1400 = vmatpush1.msra.mxu0 0.0
    %1401 = vmatprep.subr.mxu0 0.0
    %1402 = vmatpush1.msra.mxu0 0.0
    %1403 = vmatprep.subr.mxu0 0.0
    %1404 = vmatpush1.msra.mxu0 0.0
    %1405 = vmatprep.subr.mxu0 0.0
    %1406 = vmatpush1.msra.mxu0 0.0
    %1407 = vmatprep.subr.mxu0 0.0
    %1408 = vmatpush1.msra.mxu0 0.0
    %1409 = vmatprep.subr.mxu0 0.0
    %1410 = vmatpush1.msra.mxu0 0.0
    %1411 = vmatprep.subr.mxu0 0.0
    %1412 = vmatpush1.msra.mxu0 0.0
    %1413 = vmatprep.subr.mxu0 0.0
    %1414 = vmatpush1.msra.mxu0 0.0
    %1415 = vmatprep.subr.mxu0 0.0
    %1416 = vmatpush1.msra.mxu0 0.0
    %1417 = vmatprep.subr.mxu0 0.0
    %1418 = vmatpush1.msra.mxu0 0.0
    %1419 = vmatprep.subr.mxu0 0.0
    %1420 = vmatpush1.msra.mxu0 0.0
    %1421 = vmatprep.subr.mxu0 0.0
    %1422 = vmatpush1.msra.mxu0 0.0
    %1423 = vmatprep.subr.mxu0 0.0
    %1424 = vmatpush1.msra.mxu0 0.0
    %1425 = vmatprep.subr.mxu0 0.0
    %1426 = vmatpush1.msra.mxu0 0.0
    %1427 = vmatprep.mubr.f32.mxu0 0.0
    %1428 = vmatmul.mubr.f32.gmra.mrb[0].mxu0 %v1358
    %v1429 = vpop.f32.mrb[0].mxu0
    %v1430 = vadd.f32 0.0, %v1429
    %v1431 = vpop.f32.mrb[0].mxu0
    %1432 = vmatprep.mubr.f32.mxu0 0.0
    %1433 = vmatmul.mubr.f32.gmra.mrb[0].mxu0 %v1361
    %v1434 = vpop.f32.mrb[0].mxu0
    %v1435 = vadd.f32 0.0, %v1434
    %v1436 = vpop.f32.mrb[0].mxu0
    %1437 = vdwg.mxu0
    %v1438 = vadd.f32 %v1430, %v1435
    %v1439 = vrot.slane %v1438, 4
    %v1440 = vadd.f32 %v1438, %v1439
    %v1441 = vrot.slane %v1440, 2
    %v1442 = vadd.f32 %v1440, %v1441
    %v1443 = vrot.slane %v1442, 1
    %v1444 = vadd.f32 %v1442, %v1443
    %v1445 = vmul.f32 %v1444, 0.0625
    %v1446 = vld [vmem:[%s6 + $0xd] sm:$0x1]
    %v1447 = vmul.f32 %v1445, %v1446
    %v1448 = vlaneseq
    %v1449 = vshrl.u32 %v1448, 7
    %v1450 = vsub.s32 0, %v1449
    %v1451 = vrot.slane %v1447, %v1450
    %v1452 = vsub.f32 %v1430, %v1451
    %v1453 = vsub.f32 %v1435, %v1451
    %v1454 = vmul.f32 %v1452, %v1452
    %v1455 = vmul.f32 %v1453, %v1453
    %v1456 = vadd.f32 %v1454, %v1455
    %v1457 = vrot.slane %v1456, 4
    %v1458 = vadd.f32 %v1456, %v1457
    %v1459 = vrot.slane %v1458, 2
    %v1460 = vadd.f32 %v1458, %v1459
    %v1461 = vrot.slane %v1460, 1
    %v1462 = vadd.f32 %v1460, %v1461
    %v1463 = vmul.f32 %v1462, 0.0625
    %v1464 = vld [vmem:[%s6 + $0xb] sm:$0x1]
    %v1465 = vlaneseq
    %v1466 = vshrl.u32 %v1465, 7
    %v1467 = vsub.s32 0, %v1466
    %v1468 = vrot.slane %v1464, %v1467
    %v1469 = vmul.f32 %v1468, %v1452
    %v1470 = vmul.f32 %v1468, %v1453
    %v1471 = vadd.f32 %v1463, 1e-05
    %v1472 = vrsqrt.pop %v1471
    %v1473 = vmul.f32 %v1471, %v1472
    %vm1474 = vcmp.eq.f32.partialorder %v1471, inf
    %v1475 = vsel %vm1474, %v1471, %v1473
    %vm1476 = vcmp.eq.f32.partialorder %v1471, 0.0
    %v1477 = vand.u32 %v1471, 2147483648
    %v1478 = vsel %vm1476, %v1477, %v1475
    %v1479 = vrcp.pop %v1478
    %v1480 = vmul.f32 %v1469, %v1479
    %v1481 = vmul.f32 %v1470, %v1479
    %v1482 = vld [vmem:[%s6 + $0xc] sm:$0x1]
    %v1483 = vlaneseq
    %v1484 = vshrl.u32 %v1483, 7
    %v1485 = vsub.s32 0, %v1484
    %v1486 = vrot.slane %v1482, %v1485
    %v1487 = vadd.f32 %v1480, %v1486
    %v1488 = vadd.f32 %v1481, %v1486
    %v1489 = vxor.u32 %v1487, 2147483648
    %v1490 = vxor.u32 %v1488, 2147483648
    %v1491 = vmul.f32 %v1489, 1.442695
    %v1492 = vpow.pop %v1491
    %v1493 = vmul.f32 %v1490, 1.442695
    %v1494 = vpow.pop %v1493
    %v1495 = vadd.f32 %v1492, 1.0
    %v1496 = vadd.f32 %v1494, 1.0
    %v1497 = vrcp.pop %v1495
    %v1498 = vmul.f32 1.0, %v1497
    %v1499 = vrcp.pop %v1496
    %v1500 = vmul.f32 1.0, %v1499
    %v1501 = vmul.f32 %v1487, %v1498
    %v1502 = vmul.f32 %v1488, %v1500
    %s1503 = scalar_lea.vmem [#allocation2], 1280
    %v1504 = vld [vmem:[%s1503] sm:$0xff]
    %v1505 = vld [vmem:[%s1503 + $0x8] sm:$0xff]
    %v1506 = vld [vmem:[%s1503 + $0x10] sm:$0xff]
    %v1507 = vld [vmem:[%s1503 + $0x18] sm:$0xff]
    %v1508 = vld [vmem:[%s1503 + $0x20] sm:$0xff]
    %v1509 = vld [vmem:[%s1503 + $0x28] sm:$0xff]
    %v1510 = vld [vmem:[%s1503 + $0x30] sm:$0xff]
    %v1511 = vld [vmem:[%s1503 + $0x38] sm:$0xff]
    %v1512 = vld [vmem:[%s1503 + $0x40] sm:$0xff]
    %v1513 = vld [vmem:[%s1503 + $0x48] sm:$0xff]
    %v1514 = vld [vmem:[%s1503 + $0x50] sm:$0xff]
    %v1515 = vld [vmem:[%s1503 + $0x58] sm:$0xff]
    %v1516 = vld [vmem:[%s1503 + $0x60] sm:$0xff]
    %v1517 = vld [vmem:[%s1503 + $0x68] sm:$0xff]
    %v1518 = vld [vmem:[%s1503 + $0x70] sm:$0xff]
    %v1519 = vld [vmem:[%s1503 + $0x78] sm:$0xff]
    %v1520 = vld [vmem:[%s6 + $0xa] sm:$0x1]
    %v1521 = vlaneseq
    %v1522 = vshrl.u32 %v1521, 7
    %v1523 = vsub.s32 0, %v1522
    %v1524 = vrot.slane %v1520, %v1523
    %1525 = vmatprep.subr.mxu0 0.0
    %1526 = vmatpush1.msra.mxu0 %v1504
    %1527 = vmatprep.subr.mxu0 0.0
    %1528 = vmatpush1.msra.mxu0 %v1505
    %1529 = vmatprep.subr.mxu0 0.0
    %1530 = vmatpush1.msra.mxu0 %v1506
    %1531 = vmatprep.subr.mxu0 0.0
    %1532 = vmatpush1.msra.mxu0 %v1507
    %1533 = vmatprep.subr.mxu0 0.0
    %1534 = vmatpush1.msra.mxu0 %v1508
    %1535 = vmatprep.subr.mxu0 0.0
    %1536 = vmatpush1.msra.mxu0 %v1509
    %1537 = vmatprep.subr.mxu0 0.0
    %1538 = vmatpush1.msra.mxu0 %v1510
    %1539 = vmatprep.subr.mxu0 0.0
    %1540 = vmatpush1.msra.mxu0 %v1511
    %1541 = vmatprep.subr.mxu0 0.0
    %1542 = vmatpush1.msra.mxu0 %v1512
    %1543 = vmatprep.subr.mxu0 0.0
    %1544 = vmatpush1.msra.mxu0 %v1513
    %1545 = vmatprep.subr.mxu0 0.0
    %1546 = vmatpush1.msra.mxu0 %v1514
    %1547 = vmatprep.subr.mxu0 0.0
    %1548 = vmatpush1.msra.mxu0 %v1515
    %1549 = vmatprep.subr.mxu0 0.0
    %1550 = vmatpush1.msra.mxu0 %v1516
    %1551 = vmatprep.subr.mxu0 0.0
    %1552 = vmatpush1.msra.mxu0 %v1517
    %1553 = vmatprep.subr.mxu0 0.0
    %1554 = vmatpush1.msra.mxu0 %v1518
    %1555 = vmatprep.subr.mxu0 0.0
    %1556 = vmatpush1.msra.mxu0 %v1519
    %1557 = vmatprep.subr.mxu0 0.0
    %1558 = vmatpush1.msra.mxu0 0.0
    %1559 = vmatprep.subr.mxu0 0.0
    %1560 = vmatpush1.msra.mxu0 0.0
    %1561 = vmatprep.subr.mxu0 0.0
    %1562 = vmatpush1.msra.mxu0 0.0
    %1563 = vmatprep.subr.mxu0 0.0
    %1564 = vmatpush1.msra.mxu0 0.0
    %1565 = vmatprep.subr.mxu0 0.0
    %1566 = vmatpush1.msra.mxu0 0.0
    %1567 = vmatprep.subr.mxu0 0.0
    %1568 = vmatpush1.msra.mxu0 0.0
    %1569 = vmatprep.subr.mxu0 0.0
    %1570 = vmatpush1.msra.mxu0 0.0
    %1571 = vmatprep.subr.mxu0 0.0
    %1572 = vmatpush1.msra.mxu0 0.0
    %1573 = vmatprep.subr.mxu0 0.0
    %1574 = vmatpush1.msra.mxu0 0.0
    %1575 = vmatprep.subr.mxu0 0.0
    %1576 = vmatpush1.msra.mxu0 0.0
    %1577 = vmatprep.subr.mxu0 0.0
    %1578 = vmatpush1.msra.mxu0 0.0
    %1579 = vmatprep.subr.mxu0 0.0
    %1580 = vmatpush1.msra.mxu0 0.0
    %1581 = vmatprep.subr.mxu0 0.0
    %1582 = vmatpush1.msra.mxu0 0.0
    %1583 = vmatprep.subr.mxu0 0.0
    %1584 = vmatpush1.msra.mxu0 0.0
    %1585 = vmatprep.subr.mxu0 0.0
    %1586 = vmatpush1.msra.mxu0 0.0
    %1587 = vmatprep.subr.mxu0 0.0
    %1588 = vmatpush1.msra.mxu0 0.0
    %1589 = vmatprep.mubr.f32.mxu0 0.0
    %1590 = vmatmul.mubr.f32.gmra.mrb[0].mxu0 %v1501
    %v1591 = vpop.f32.mrb[0].mxu0
    %v1592 = vadd.f32 %v1524, %v1591
    %v1593 = vpop.f32.mrb[0].mxu0
    %1594 = vmatprep.mubr.f32.mxu0 0.0
    %1595 = vmatmul.mubr.f32.gmra.mrb[0].mxu0 %v1502
    %v1596 = vpop.f32.mrb[0].mxu0
    %v1597 = vadd.f32 %v1524, %v1596
    %v1598 = vpop.f32.mrb[0].mxu0
    %1599 = vdwg.mxu0
    %v1600 = vxor.u32 %v1592, 2147483648
    %v1601 = vxor.u32 %v1597, 2147483648
    %v1602 = vmul.f32 %v1600, 1.442695
    %v1603 = vpow.pop %v1602
    %v1604 = vmul.f32 %v1601, 1.442695
    %v1605 = vpow.pop %v1604
    %v1606 = vadd.f32 %v1603, 1.0
    %v1607 = vadd.f32 %v1605, 1.0
    %v1608 = vrcp.pop %v1606
    %v1609 = vmul.f32 1.0, %v1608
    %v1610 = vrcp.pop %v1607
    %v1611 = vmul.f32 1.0, %v1610
    %v1612 = vmul.f32 %v1592, %v1609
    %v1613 = vmul.f32 %v1597, %v1611
    %v1614 = vadd.f32 %v975, %v1612
    %v1615 = vadd.f32 %v976, %v1613
    %s1616 = scalar_lea.vmem [#allocation2], 1408
    %v1617 = vld [vmem:[%s1616] sm:$0xff]
    %v1618 = vld [vmem:[%s1616 + $0x8] sm:$0xff]
    %v1619 = vld [vmem:[%s1616 + $0x10] sm:$0xff]
    %v1620 = vld [vmem:[%s1616 + $0x18] sm:$0xff]
    %v1621 = vld [vmem:[%s1616 + $0x20] sm:$0xff]
    %v1622 = vld [vmem:[%s1616 + $0x28] sm:$0xff]
    %v1623 = vld [vmem:[%s1616 + $0x30] sm:$0xff]
    %v1624 = vld [vmem:[%s1616 + $0x38] sm:$0xff]
    %v1625 = vld [vmem:[%s1616 + $0x40] sm:$0xff]
    %v1626 = vld [vmem:[%s1616 + $0x48] sm:$0xff]
    %v1627 = vld [vmem:[%s1616 + $0x50] sm:$0xff]
    %v1628 = vld [vmem:[%s1616 + $0x58] sm:$0xff]
    %v1629 = vld [vmem:[%s1616 + $0x60] sm:$0xff]
    %v1630 = vld [vmem:[%s1616 + $0x68] sm:$0xff]
    %v1631 = vld [vmem:[%s1616 + $0x70] sm:$0xff]
    %v1632 = vld [vmem:[%s1616 + $0x78] sm:$0xff]
    %v1633 = vld [vmem:[%s6 + $0xe] sm:$0x1]
    %v1634 = vlaneseq
    %v1635 = vshrl.u32 %v1634, 7
    %v1636 = vsub.s32 0, %v1635
    %v1637 = vrot.slane %v1633, %v1636
    %1638 = vmatprep.subr.mxu0 0.0
    %1639 = vmatpush1.msra.mxu0 %v1617
    %1640 = vmatprep.subr.mxu0 0.0
    %1641 = vmatpush1.msra.mxu0 %v1618
    %1642 = vmatprep.subr.mxu0 0.0
    %1643 = vmatpush1.msra.mxu0 %v1619
    %1644 = vmatprep.subr.mxu0 0.0
    %1645 = vmatpush1.msra.mxu0 %v1620
    %1646 = vmatprep.subr.mxu0 0.0
    %1647 = vmatpush1.msra.mxu0 %v1621
    %1648 = vmatprep.subr.mxu0 0.0
    %1649 = vmatpush1.msra.mxu0 %v1622
    %1650 = vmatprep.subr.mxu0 0.0
    %1651 = vmatpush1.msra.mxu0 %v1623
    %1652 = vmatprep.subr.mxu0 0.0
    %1653 = vmatpush1.msra.mxu0 %v1624
    %1654 = vmatprep.subr.mxu0 0.0
    %1655 = vmatpush1.msra.mxu0 %v1625
    %1656 = vmatprep.subr.mxu0 0.0
    %1657 = vmatpush1.msra.mxu0 %v1626
    %1658 = vmatprep.subr.mxu0 0.0
    %1659 = vmatpush1.msra.mxu0 %v1627
    %1660 = vmatprep.subr.mxu0 0.0
    %1661 = vmatpush1.msra.mxu0 %v1628
    %1662 = vmatprep.subr.mxu0 0.0
    %1663 = vmatpush1.msra.mxu0 %v1629
    %1664 = vmatprep.subr.mxu0 0.0
    %1665 = vmatpush1.msra.mxu0 %v1630
    %1666 = vmatprep.subr.mxu0 0.0
    %1667 = vmatpush1.msra.mxu0 %v1631
    %1668 = vmatprep.subr.mxu0 0.0
    %1669 = vmatpush1.msra.mxu0 %v1632
    %1670 = vmatprep.subr.mxu0 0.0
    %1671 = vmatpush1.msra.mxu0 0.0
    %1672 = vmatprep.subr.mxu0 0.0
    %1673 = vmatpush1.msra.mxu0 0.0
    %1674 = vmatprep.subr.mxu0 0.0
    %1675 = vmatpush1.msra.mxu0 0.0
    %1676 = vmatprep.subr.mxu0 0.0
    %1677 = vmatpush1.msra.mxu0 0.0
    %1678 = vmatprep.subr.mxu0 0.0
    %1679 = vmatpush1.msra.mxu0 0.0
    %1680 = vmatprep.subr.mxu0 0.0
    %1681 = vmatpush1.msra.mxu0 0.0
    %1682 = vmatprep.subr.mxu0 0.0
    %1683 = vmatpush1.msra.mxu0 0.0
    %1684 = vmatprep.subr.mxu0 0.0
    %1685 = vmatpush1.msra.mxu0 0.0
    %1686 = vmatprep.subr.mxu0 0.0
    %1687 = vmatpush1.msra.mxu0 0.0
    %1688 = vmatprep.subr.mxu0 0.0
    %1689 = vmatpush1.msra.mxu0 0.0
    %1690 = vmatprep.subr.mxu0 0.0
    %1691 = vmatpush1.msra.mxu0 0.0
    %1692 = vmatprep.subr.mxu0 0.0
    %1693 = vmatpush1.msra.mxu0 0.0
    %1694 = vmatprep.subr.mxu0 0.0
    %1695 = vmatpush1.msra.mxu0 0.0
    %1696 = vmatprep.subr.mxu0 0.0
    %1697 = vmatpush1.msra.mxu0 0.0
    %1698 = vmatprep.subr.mxu0 0.0
    %1699 = vmatpush1.msra.mxu0 0.0
    %1700 = vmatprep.subr.mxu0 0.0
    %1701 = vmatpush1.msra.mxu0 0.0
    %1702 = vmatprep.mubr.f32.mxu0 0.0
    %1703 = vmatmul.mubr.f32.gmra.mrb[0].mxu0 %v653
    %v1704 = vpop.f32.mrb[0].mxu0
    %v1705 = vadd.f32 %v1637, %v1704
    %v1706 = vpop.f32.mrb[0].mxu0
    %1707 = vmatprep.mubr.f32.mxu0 0.0
    %1708 = vmatmul.mubr.f32.gmra.mrb[0].mxu0 %v654
    %v1709 = vpop.f32.mrb[0].mxu0
    %v1710 = vadd.f32 %v1637, %v1709
    %v1711 = vpop.f32.mrb[0].mxu0
    %1712 = vmatprep.mubr.f32.mxu0 0.0
    %1713 = vmatmul.mubr.f32.gmra.mrb[0].mxu0 %v655
    %v1714 = vpop.f32.mrb[0].mxu0
    %v1715 = vadd.f32 %v1637, %v1714
    %v1716 = vpop.f32.mrb[0].mxu0
    %1717 = vmatprep.mubr.f32.mxu0 0.0
    %1718 = vmatmul.mubr.f32.gmra.mrb[0].mxu0 %v656
    %v1719 = vpop.f32.mrb[0].mxu0
    %v1720 = vadd.f32 %v1637, %v1719
    %v1721 = vpop.f32.mrb[0].mxu0
    %1722 = vdwg.mxu0
    %v1723 = vxor.u32 %v1705, 2147483648
    %v1724 = vxor.u32 %v1710, 2147483648
    %v1725 = vxor.u32 %v1715, 2147483648
    %v1726 = vxor.u32 %v1720, 2147483648
    %v1727 = vmul.f32 %v1723, 1.442695
    %v1728 = vpow.pop %v1727
    %v1729 = vmul.f32 %v1724, 1.442695
    %v1730 = vpow.pop %v1729
    %v1731 = vmul.f32 %v1725, 1.442695
    %v1732 = vpow.pop %v1731
    %v1733 = vmul.f32 %v1726, 1.442695
    %v1734 = vpow.pop %v1733
    %v1735 = vadd.f32 %v1728, 1.0
    %v1736 = vadd.f32 %v1730, 1.0
    %v1737 = vadd.f32 %v1732, 1.0
    %v1738 = vadd.f32 %v1734, 1.0
    %v1739 = vrcp.pop %v1735
    %v1740 = vmul.f32 1.0, %v1739
    %v1741 = vrcp.pop %v1736
    %v1742 = vmul.f32 1.0, %v1741
    %v1743 = vrcp.pop %v1737
    %v1744 = vmul.f32 1.0, %v1743
    %v1745 = vrcp.pop %v1738
    %v1746 = vmul.f32 1.0, %v1745
    %v1747 = vmul.f32 %v1705, %v1740
    %v1748 = vmul.f32 %v1710, %v1742
    %v1749 = vmul.f32 %v1715, %v1744
    %v1750 = vmul.f32 %v1720, %v1746
    %s1751 = scalar_lea.vmem [#allocation2], 1536
    %v1752 = vld [vmem:[%s1751] sm:$0xff]
    %v1753 = vld [vmem:[%s1751 + $0x8] sm:$0xff]
    %v1754 = vld [vmem:[%s1751 + $0x10] sm:$0xff]
    %v1755 = vld [vmem:[%s1751 + $0x18] sm:$0xff]
    %v1756 = vld [vmem:[%s1751 + $0x20] sm:$0xff]
    %v1757 = vld [vmem:[%s1751 + $0x28] sm:$0xff]
    %v1758 = vld [vmem:[%s1751 + $0x30] sm:$0xff]
    %v1759 = vld [vmem:[%s1751 + $0x38] sm:$0xff]
    %v1760 = vld [vmem:[%s1751 + $0x40] sm:$0xff]
    %v1761 = vld [vmem:[%s1751 + $0x48] sm:$0xff]
    %v1762 = vld [vmem:[%s1751 + $0x50] sm:$0xff]
    %v1763 = vld [vmem:[%s1751 + $0x58] sm:$0xff]
    %v1764 = vld [vmem:[%s1751 + $0x60] sm:$0xff]
    %v1765 = vld [vmem:[%s1751 + $0x68] sm:$0xff]
    %v1766 = vld [vmem:[%s1751 + $0x70] sm:$0xff]
    %v1767 = vld [vmem:[%s1751 + $0x78] sm:$0xff]
    %v1768 = vld [vmem:[%s6 + $0xf] sm:$0x1]
    %v1769 = vlaneseq
    %v1770 = vshrl.u32 %v1769, 7
    %v1771 = vsub.s32 0, %v1770
    %v1772 = vrot.slane %v1768, %v1771
    %1773 = vmatprep.subr.mxu0 0.0
    %1774 = vmatpush1.msra.mxu0 %v1752
    %1775 = vmatprep.subr.mxu0 0.0
    %1776 = vmatpush1.msra.mxu0 %v1753
    %1777 = vmatprep.subr.mxu0 0.0
    %1778 = vmatpush1.msra.mxu0 %v1754
    %1779 = vmatprep.subr.mxu0 0.0
    %1780 = vmatpush1.msra.mxu0 %v1755
    %1781 = vmatprep.subr.mxu0 0.0
    %1782 = vmatpush1.msra.mxu0 %v1756
    %1783 = vmatprep.subr.mxu0 0.0
    %1784 = vmatpush1.msra.mxu0 %v1757
    %1785 = vmatprep.subr.mxu0 0.0
    %1786 = vmatpush1.msra.mxu0 %v1758
    %1787 = vmatprep.subr.mxu0 0.0
    %1788 = vmatpush1.msra.mxu0 %v1759
    %1789 = vmatprep.subr.mxu0 0.0
    %1790 = vmatpush1.msra.mxu0 %v1760
    %1791 = vmatprep.subr.mxu0 0.0
    %1792 = vmatpush1.msra.mxu0 %v1761
    %1793 = vmatprep.subr.mxu0 0.0
    %1794 = vmatpush1.msra.mxu0 %v1762
    %1795 = vmatprep.subr.mxu0 0.0
    %1796 = vmatpush1.msra.mxu0 %v1763
    %1797 = vmatprep.subr.mxu0 0.0
    %1798 = vmatpush1.msra.mxu0 %v1764
    %1799 = vmatprep.subr.mxu0 0.0
    %1800 = vmatpush1.msra.mxu0 %v1765
    %1801 = vmatprep.subr.mxu0 0.0
    %1802 = vmatpush1.msra.mxu0 %v1766
    %1803 = vmatprep.subr.mxu0 0.0
    %1804 = vmatpush1.msra.mxu0 %v1767
    %1805 = vmatprep.subr.mxu0 0.0
    %1806 = vmatpush1.msra.mxu0 0.0
    %1807 = vmatprep.subr.mxu0 0.0
    %1808 = vmatpush1.msra.mxu0 0.0
    %1809 = vmatprep.subr.mxu0 0.0
    %1810 = vmatpush1.msra.mxu0 0.0
    %1811 = vmatprep.subr.mxu0 0.0
    %1812 = vmatpush1.msra.mxu0 0.0
    %1813 = vmatprep.subr.mxu0 0.0
    %1814 = vmatpush1.msra.mxu0 0.0
    %1815 = vmatprep.subr.mxu0 0.0
    %1816 = vmatpush1.msra.mxu0 0.0
    %1817 = vmatprep.subr.mxu0 0.0
    %1818 = vmatpush1.msra.mxu0 0.0
    %1819 = vmatprep.subr.mxu0 0.0
    %1820 = vmatpush1.msra.mxu0 0.0
    %1821 = vmatprep.subr.mxu0 0.0
    %1822 = vmatpush1.msra.mxu0 0.0
    %1823 = vmatprep.subr.mxu0 0.0
    %1824 = vmatpush1.msra.mxu0 0.0
    %1825 = vmatprep.subr.mxu0 0.0
    %1826 = vmatpush1.msra.mxu0 0.0
    %1827 = vmatprep.subr.mxu0 0.0
    %1828 = vmatpush1.msra.mxu0 0.0
    %1829 = vmatprep.subr.mxu0 0.0
    %1830 = vmatpush1.msra.mxu0 0.0
    %1831 = vmatprep.subr.mxu0 0.0
    %1832 = vmatpush1.msra.mxu0 0.0
    %1833 = vmatprep.subr.mxu0 0.0
    %1834 = vmatpush1.msra.mxu0 0.0
    %1835 = vmatprep.subr.mxu0 0.0
    %1836 = vmatpush1.msra.mxu0 0.0
    %1837 = vmatprep.mubr.f32.mxu0 0.0
    %1838 = vmatmul.mubr.f32.gmra.mrb[0].mxu0 %v1614
    %v1839 = vpop.f32.mrb[0].mxu0
    %v1840 = vadd.f32 %v1772, %v1839
    %v1841 = vpop.f32.mrb[0].mxu0
    %1842 = vmatprep.mubr.f32.mxu0 0.0
    %1843 = vmatmul.mubr.f32.gmra.mrb[0].mxu0 %v1615
    %v1844 = vpop.f32.mrb[0].mxu0
    %v1845 = vadd.f32 %v1772, %v1844
    %v1846 = vpop.f32.mrb[0].mxu0
    %1847 = vdwg.mxu0
    %v1848 = vxor.u32 %v1840, 2147483648
    %v1849 = vxor.u32 %v1845, 2147483648
    %v1850 = vmul.f32 %v1848, 1.442695
    %v1851 = vpow.pop %v1850
    %v1852 = vmul.f32 %v1849, 1.442695
    %v1853 = vpow.pop %v1852
    %v1854 = vadd.f32 %v1851, 1.0
    %v1855 = vadd.f32 %v1853, 1.0
    %v1856 = vrcp.pop %v1854
    %v1857 = vmul.f32 1.0, %v1856
    %v1858 = vrcp.pop %v1855
    %v1859 = vmul.f32 1.0, %v1858
    %v1860 = vmul.f32 %v1840, %v1857
    %v1861 = vmul.f32 %v1845, %v1859
    %1862 = vmatprep.subr.mxu0 0.0
    %1863 = vmatpush1.msra.mxu0 %v1860
    %1864 = vmatprep.subr.mxu0 0.0
    %1865 = vmatpush1.msra.mxu0 %v1861
    %1866 = vmatprep.subr.mxu0 0.0
    %1867 = vmatpush1.msra.mxu0 0.0
    %1868 = vmatprep.subr.mxu0 0.0
    %1869 = vmatpush1.msra.mxu0 0.0
    %1870 = vmatprep.subr.mxu0 0.0
    %1871 = vmatpush1.msra.mxu0 0.0
    %1872 = vmatprep.subr.mxu0 0.0
    %1873 = vmatpush1.msra.mxu0 0.0
    %1874 = vmatprep.subr.mxu0 0.0
    %1875 = vmatpush1.msra.mxu0 0.0
    %1876 = vmatprep.subr.mxu0 0.0
    %1877 = vmatpush1.msra.mxu0 0.0
    %1878 = vmatprep.subr.mxu0 0.0
    %1879 = vmatpush1.msra.mxu0 0.0
    %1880 = vmatprep.subr.mxu0 0.0
    %1881 = vmatpush1.msra.mxu0 0.0
    %1882 = vmatprep.subr.mxu0 0.0
    %1883 = vmatpush1.msra.mxu0 0.0
    %1884 = vmatprep.subr.mxu0 0.0
    %1885 = vmatpush1.msra.mxu0 0.0
    %1886 = vmatprep.subr.mxu0 0.0
    %1887 = vmatpush1.msra.mxu0 0.0
    %1888 = vmatprep.subr.mxu0 0.0
    %1889 = vmatpush1.msra.mxu0 0.0
    %1890 = vmatprep.subr.mxu0 0.0
    %1891 = vmatpush1.msra.mxu0 0.0
    %1892 = vmatprep.subr.mxu0 0.0
    %1893 = vmatpush1.msra.mxu0 0.0
    %1894 = vmatprep.subr.mxu0 0.0
    %1895 = vmatpush1.msra.mxu0 0.0
    %1896 = vmatprep.subr.mxu0 0.0
    %1897 = vmatpush1.msra.mxu0 0.0
    %1898 = vmatprep.subr.mxu0 0.0
    %1899 = vmatpush1.msra.mxu0 0.0
    %1900 = vmatprep.subr.mxu0 0.0
    %1901 = vmatpush1.msra.mxu0 0.0
    %1902 = vmatprep.subr.mxu0 0.0
    %1903 = vmatpush1.msra.mxu0 0.0
    %1904 = vmatprep.subr.mxu0 0.0
    %1905 = vmatpush1.msra.mxu0 0.0
    %1906 = vmatprep.subr.mxu0 0.0
    %1907 = vmatpush1.msra.mxu0 0.0
    %1908 = vmatprep.subr.mxu0 0.0
    %1909 = vmatpush1.msra.mxu0 0.0
    %1910 = vmatprep.subr.mxu0 0.0
    %1911 = vmatpush1.msra.mxu0 0.0
    %1912 = vmatprep.subr.mxu0 0.0
    %1913 = vmatpush1.msra.mxu0 0.0
    %1914 = vmatprep.subr.mxu0 0.0
    %1915 = vmatpush1.msra.mxu0 0.0
    %1916 = vmatprep.subr.mxu0 0.0
    %1917 = vmatpush1.msra.mxu0 0.0
    %1918 = vmatprep.subr.mxu0 0.0
    %1919 = vmatpush1.msra.mxu0 0.0
    %1920 = vmatprep.subr.mxu0 0.0
    %1921 = vmatpush1.msra.mxu0 0.0
    %1922 = vmatprep.subr.mxu0 0.0
    %1923 = vmatpush1.msra.mxu0 0.0
    %1924 = vmatprep.subr.mxu0 0.0
    %1925 = vmatpush1.msra.mxu0 0.0
    %1926 = vmatprep.mubr.f32.mxu0 0.0
    %1927 = vmatmul.mubr.f32.gmra.mrb[0].mxu0 %v1224
    %v1928 = vpop.f32.mrb[0].mxu0
    %v1929 = vadd.f32 0.0, %v1928
    %v1930 = vpop.f32.mrb[0].mxu0
    %1931 = vmatprep.mubr.f32.mxu0 0.0
    %1932 = vmatmul.mubr.f32.gmra.mrb[0].mxu0 %v1227
    %v1933 = vpop.f32.mrb[0].mxu0
    %v1934 = vadd.f32 0.0, %v1933
    %v1935 = vpop.f32.mrb[0].mxu0
    %1936 = vmatprep.mubr.f32.mxu0 0.0
    %1937 = vmatmul.mubr.f32.gmra.mrb[0].mxu0 %v1230
    %v1938 = vpop.f32.mrb[0].mxu0
    %v1939 = vadd.f32 0.0, %v1938
    %v1940 = vpop.f32.mrb[0].mxu0
    %1941 = vmatprep.mubr.f32.mxu0 0.0
    %1942 = vmatmul.mubr.f32.gmra.mrb[0].mxu0 %v1233
    %v1943 = vpop.f32.mrb[0].mxu0
    %v1944 = vadd.f32 0.0, %v1943
    %v1945 = vpop.f32.mrb[0].mxu0
    %1946 = vdwg.mxu0
    %v1947 = vmul.f32 %v1929, %v1747
    %v1948 = vmul.f32 %v1934, %v1748
    %v1949 = vmul.f32 %v1939, %v1749
    %v1950 = vmul.f32 %v1944, %v1750
    %1951 = vmatprep.subr.mxu0 0.0
    %1952 = vmatpush1.msra.mxu0 %v1947
    %1953 = vmatprep.subr.mxu0 0.0
    %1954 = vmatpush1.msra.mxu0 %v1948
    %1955 = vmatprep.subr.mxu0 0.0
    %1956 = vmatpush1.msra.mxu0 %v1949
    %1957 = vmatprep.subr.mxu0 0.0
    %1958 = vmatpush1.msra.mxu0 %v1950
    %1959 = vmatprep.subr.mxu0 0.0
    %1960 = vmatpush1.msra.mxu0 0.0
    %1961 = vmatprep.subr.mxu0 0.0
    %1962 = vmatpush1.msra.mxu0 0.0
    %1963 = vmatprep.subr.mxu0 0.0
    %1964 = vmatpush1.msra.mxu0 0.0
    %1965 = vmatprep.subr.mxu0 0.0
    %1966 = vmatpush1.msra.mxu0 0.0
    %1967 = vmatprep.subr.mxu0 0.0
    %1968 = vmatpush1.msra.mxu0 0.0
    %1969 = vmatprep.subr.mxu0 0.0
    %1970 = vmatpush1.msra.mxu0 0.0
    %1971 = vmatprep.subr.mxu0 0.0
    %1972 = vmatpush1.msra.mxu0 0.0
    %1973 = vmatprep.subr.mxu0 0.0
    %1974 = vmatpush1.msra.mxu0 0.0
    %1975 = vmatprep.subr.mxu0 0.0
    %1976 = vmatpush1.msra.mxu0 0.0
    %1977 = vmatprep.subr.mxu0 0.0
    %1978 = vmatpush1.msra.mxu0 0.0
    %1979 = vmatprep.subr.mxu0 0.0
    %1980 = vmatpush1.msra.mxu0 0.0
    %1981 = vmatprep.subr.mxu0 0.0
    %1982 = vmatpush1.msra.mxu0 0.0
    %1983 = vmatprep.subr.mxu0 0.0
    %1984 = vmatpush1.msra.mxu0 0.0
    %1985 = vmatprep.subr.mxu0 0.0
    %1986 = vmatpush1.msra.mxu0 0.0
    %1987 = vmatprep.subr.mxu0 0.0
    %1988 = vmatpush1.msra.mxu0 0.0
    %1989 = vmatprep.subr.mxu0 0.0
    %1990 = vmatpush1.msra.mxu0 0.0
    %1991 = vmatprep.subr.mxu0 0.0
    %1992 = vmatpush1.msra.mxu0 0.0
    %1993 = vmatprep.subr.mxu0 0.0
    %1994 = vmatpush1.msra.mxu0 0.0
    %1995 = vmatprep.subr.mxu0 0.0
    %1996 = vmatpush1.msra.mxu0 0.0
    %1997 = vmatprep.subr.mxu0 0.0
    %1998 = vmatpush1.msra.mxu0 0.0
    %1999 = vmatprep.subr.mxu0 0.0
    %2000 = vmatpush1.msra.mxu0 0.0
    %2001 = vmatprep.subr.mxu0 0.0
    %2002 = vmatpush1.msra.mxu0 0.0
    %2003 = vmatprep.subr.mxu0 0.0
    %2004 = vmatpush1.msra.mxu0 0.0
    %2005 = vmatprep.subr.mxu0 0.0
    %2006 = vmatpush1.msra.mxu0 0.0
    %2007 = vmatprep.subr.mxu0 0.0
    %2008 = vmatpush1.msra.mxu0 0.0
    %2009 = vmatprep.subr.mxu0 0.0
    %2010 = vmatpush1.msra.mxu0 0.0
    %2011 = vmatprep.subr.mxu0 0.0
    %2012 = vmatpush1.msra.mxu0 0.0
    %2013 = vmatprep.subr.mxu0 0.0
    %2014 = vmatpush1.msra.mxu0 0.0
    %2015 = vmatprep.mubr.f32.mxu0 0.0
    %2016 = vmatmul.mubr.f32.gmra.mrb[0].mxu0 %v1358
    %v2017 = vpop.f32.mrb[0].mxu0
    %v2018 = vadd.f32 0.0, %v2017
    %v2019 = vpop.f32.mrb[0].mxu0
    %2020 = vmatprep.mubr.f32.mxu0 0.0
    %2021 = vmatmul.mubr.f32.gmra.mrb[0].mxu0 %v1361
    %v2022 = vpop.f32.mrb[0].mxu0
    %v2023 = vadd.f32 0.0, %v2022
    %v2024 = vpop.f32.mrb[0].mxu0
    %2025 = vdwg.mxu0
    %v2026 = vadd.f32 %v2018, %v2023
    %v2027 = vrot.slane %v2026, 4
    %v2028 = vadd.f32 %v2026, %v2027
    %v2029 = vrot.slane %v2028, 2
    %v2030 = vadd.f32 %v2028, %v2029
    %v2031 = vrot.slane %v2030, 1
    %v2032 = vadd.f32 %v2030, %v2031
    %v2033 = vmul.f32 %v2032, 0.0625
    %v2034 = vld [vmem:[%s6 + $0x13] sm:$0x1]
    %v2035 = vmul.f32 %v2033, %v2034
    %v2036 = vlaneseq
    %v2037 = vshrl.u32 %v2036, 7
    %v2038 = vsub.s32 0, %v2037
    %v2039 = vrot.slane %v2035, %v2038
    %v2040 = vsub.f32 %v2018, %v2039
    %v2041 = vsub.f32 %v2023, %v2039
    %v2042 = vmul.f32 %v2040, %v2040
    %v2043 = vmul.f32 %v2041, %v2041
    %v2044 = vadd.f32 %v2042, %v2043
    %v2045 = vrot.slane %v2044, 4
    %v2046 = vadd.f32 %v2044, %v2045
    %v2047 = vrot.slane %v2046, 2
    %v2048 = vadd.f32 %v2046, %v2047
    %v2049 = vrot.slane %v2048, 1
    %v2050 = vadd.f32 %v2048, %v2049
    %v2051 = vmul.f32 %v2050, 0.0625
    %v2052 = vld [vmem:[%s6 + $0x11] sm:$0x1]
    %v2053 = vlaneseq
    %v2054 = vshrl.u32 %v2053, 7
    %v2055 = vsub.s32 0, %v2054
    %v2056 = vrot.slane %v2052, %v2055
    %v2057 = vmul.f32 %v2056, %v2040
    %v2058 = vmul.f32 %v2056, %v2041
    %v2059 = vadd.f32 %v2051, 1e-05
    %v2060 = vrsqrt.pop %v2059
    %v2061 = vmul.f32 %v2059, %v2060
    %vm2062 = vcmp.eq.f32.partialorder %v2059, inf
    %v2063 = vsel %vm2062, %v2059, %v2061
    %vm2064 = vcmp.eq.f32.partialorder %v2059, 0.0
    %v2065 = vand.u32 %v2059, 2147483648
    %v2066 = vsel %vm2064, %v2065, %v2063
    %v2067 = vrcp.pop %v2066
    %v2068 = vmul.f32 %v2057, %v2067
    %v2069 = vmul.f32 %v2058, %v2067
    %v2070 = vld [vmem:[%s6 + $0x12] sm:$0x1]
    %v2071 = vlaneseq
    %v2072 = vshrl.u32 %v2071, 7
    %v2073 = vsub.s32 0, %v2072
    %v2074 = vrot.slane %v2070, %v2073
    %v2075 = vadd.f32 %v2068, %v2074
    %v2076 = vadd.f32 %v2069, %v2074
    %v2077 = vxor.u32 %v2075, 2147483648
    %v2078 = vxor.u32 %v2076, 2147483648
    %v2079 = vmul.f32 %v2077, 1.442695
    %v2080 = vpow.pop %v2079
    %v2081 = vmul.f32 %v2078, 1.442695
    %v2082 = vpow.pop %v2081
    %v2083 = vadd.f32 %v2080, 1.0
    %v2084 = vadd.f32 %v2082, 1.0
    %v2085 = vrcp.pop %v2083
    %v2086 = vmul.f32 1.0, %v2085
    %v2087 = vrcp.pop %v2084
    %v2088 = vmul.f32 1.0, %v2087
    %v2089 = vmul.f32 %v2075, %v2086
    %v2090 = vmul.f32 %v2076, %v2088
    %s2091 = scalar_lea.vmem [#allocation2], 1664
    %v2092 = vld [vmem:[%s2091] sm:$0xff]
    %v2093 = vld [vmem:[%s2091 + $0x8] sm:$0xff]
    %v2094 = vld [vmem:[%s2091 + $0x10] sm:$0xff]
    %v2095 = vld [vmem:[%s2091 + $0x18] sm:$0xff]
    %v2096 = vld [vmem:[%s2091 + $0x20] sm:$0xff]
    %v2097 = vld [vmem:[%s2091 + $0x28] sm:$0xff]
    %v2098 = vld [vmem:[%s2091 + $0x30] sm:$0xff]
    %v2099 = vld [vmem:[%s2091 + $0x38] sm:$0xff]
    %v2100 = vld [vmem:[%s2091 + $0x40] sm:$0xff]
    %v2101 = vld [vmem:[%s2091 + $0x48] sm:$0xff]
    %v2102 = vld [vmem:[%s2091 + $0x50] sm:$0xff]
    %v2103 = vld [vmem:[%s2091 + $0x58] sm:$0xff]
    %v2104 = vld [vmem:[%s2091 + $0x60] sm:$0xff]
    %v2105 = vld [vmem:[%s2091 + $0x68] sm:$0xff]
    %v2106 = vld [vmem:[%s2091 + $0x70] sm:$0xff]
    %v2107 = vld [vmem:[%s2091 + $0x78] sm:$0xff]
    %v2108 = vld [vmem:[%s6 + $0x10] sm:$0x1]
    %v2109 = vlaneseq
    %v2110 = vshrl.u32 %v2109, 7
    %v2111 = vsub.s32 0, %v2110
    %v2112 = vrot.slane %v2108, %v2111
    %2113 = vmatprep.subr.mxu0 0.0
    %2114 = vmatpush1.msra.mxu0 %v2092
    %2115 = vmatprep.subr.mxu0 0.0
    %2116 = vmatpush1.msra.mxu0 %v2093
    %2117 = vmatprep.subr.mxu0 0.0
    %2118 = vmatpush1.msra.mxu0 %v2094
    %2119 = vmatprep.subr.mxu0 0.0
    %2120 = vmatpush1.msra.mxu0 %v2095
    %2121 = vmatprep.subr.mxu0 0.0
    %2122 = vmatpush1.msra.mxu0 %v2096
    %2123 = vmatprep.subr.mxu0 0.0
    %2124 = vmatpush1.msra.mxu0 %v2097
    %2125 = vmatprep.subr.mxu0 0.0
    %2126 = vmatpush1.msra.mxu0 %v2098
    %2127 = vmatprep.subr.mxu0 0.0
    %2128 = vmatpush1.msra.mxu0 %v2099
    %2129 = vmatprep.subr.mxu0 0.0
    %2130 = vmatpush1.msra.mxu0 %v2100
    %2131 = vmatprep.subr.mxu0 0.0
    %2132 = vmatpush1.msra.mxu0 %v2101
    %2133 = vmatprep.subr.mxu0 0.0
    %2134 = vmatpush1.msra.mxu0 %v2102
    %2135 = vmatprep.subr.mxu0 0.0
    %2136 = vmatpush1.msra.mxu0 %v2103
    %2137 = vmatprep.subr.mxu0 0.0
    %2138 = vmatpush1.msra.mxu0 %v2104
    %2139 = vmatprep.subr.mxu0 0.0
    %2140 = vmatpush1.msra.mxu0 %v2105
    %2141 = vmatprep.subr.mxu0 0.0
    %2142 = vmatpush1.msra.mxu0 %v2106
    %2143 = vmatprep.subr.mxu0 0.0
    %2144 = vmatpush1.msra.mxu0 %v2107
    %2145 = vmatprep.subr.mxu0 0.0
    %2146 = vmatpush1.msra.mxu0 0.0
    %2147 = vmatprep.subr.mxu0 0.0
    %2148 = vmatpush1.msra.mxu0 0.0
    %2149 = vmatprep.subr.mxu0 0.0
    %2150 = vmatpush1.msra.mxu0 0.0
    %2151 = vmatprep.subr.mxu0 0.0
    %2152 = vmatpush1.msra.mxu0 0.0
    %2153 = vmatprep.subr.mxu0 0.0
    %2154 = vmatpush1.msra.mxu0 0.0
    %2155 = vmatprep.subr.mxu0 0.0
    %2156 = vmatpush1.msra.mxu0 0.0
    %2157 = vmatprep.subr.mxu0 0.0
    %2158 = vmatpush1.msra.mxu0 0.0
    %2159 = vmatprep.subr.mxu0 0.0
    %2160 = vmatpush1.msra.mxu0 0.0
    %2161 = vmatprep.subr.mxu0 0.0
    %2162 = vmatpush1.msra.mxu0 0.0
    %2163 = vmatprep.subr.mxu0 0.0
    %2164 = vmatpush1.msra.mxu0 0.0
    %2165 = vmatprep.subr.mxu0 0.0
    %2166 = vmatpush1.msra.mxu0 0.0
    %2167 = vmatprep.subr.mxu0 0.0
    %2168 = vmatpush1.msra.mxu0 0.0
    %2169 = vmatprep.subr.mxu0 0.0
    %2170 = vmatpush1.msra.mxu0 0.0
    %2171 = vmatprep.subr.mxu0 0.0
    %2172 = vmatpush1.msra.mxu0 0.0
    %2173 = vmatprep.subr.mxu0 0.0
    %2174 = vmatpush1.msra.mxu0 0.0
    %2175 = vmatprep.subr.mxu0 0.0
    %2176 = vmatpush1.msra.mxu0 0.0
    %2177 = vmatprep.mubr.f32.mxu0 0.0
    %2178 = vmatmul.mubr.f32.gmra.mrb[0].mxu0 %v2089
    %v2179 = vpop.f32.mrb[0].mxu0
    %v2180 = vadd.f32 %v2112, %v2179
    %v2181 = vpop.f32.mrb[0].mxu0
    %2182 = vmatprep.mubr.f32.mxu0 0.0
    %2183 = vmatmul.mubr.f32.gmra.mrb[0].mxu0 %v2090
    %v2184 = vpop.f32.mrb[0].mxu0
    %v2185 = vadd.f32 %v2112, %v2184
    %v2186 = vpop.f32.mrb[0].mxu0
    %2187 = vdwg.mxu0
    %v2188 = vxor.u32 %v2180, 2147483648
    %v2189 = vxor.u32 %v2185, 2147483648
    %v2190 = vmul.f32 %v2188, 1.442695
    %v2191 = vpow.pop %v2190
    %v2192 = vmul.f32 %v2189, 1.442695
    %v2193 = vpow.pop %v2192
    %v2194 = vadd.f32 %v2191, 1.0
    %v2195 = vadd.f32 %v2193, 1.0
    %v2196 = vrcp.pop %v2194
    %v2197 = vmul.f32 1.0, %v2196
    %v2198 = vrcp.pop %v2195
    %v2199 = vmul.f32 1.0, %v2198
    %v2200 = vmul.f32 %v2180, %v2197
    %v2201 = vmul.f32 %v2185, %v2199
    %v2202 = vadd.f32 %v1614, %v2200
    %v2203 = vadd.f32 %v1615, %v2201
    %2204 = vst [vmem:[#allocation5] sm:$0xff] %v2202
    %2205 = vst [vmem:[#allocation5 + $0x8] sm:$0xff] %v2203
    %s2206 = scalar_lea.vmem [#allocation2], 768
    %v2207 = vld [vmem:[%s2206] sm:$0xff]
    %v2208 = vld [vmem:[%s2206 + $0x8] sm:$0xff]
    %v2209 = vld [vmem:[%s2206 + $0x10] sm:$0xff]
    %v2210 = vld [vmem:[%s2206 + $0x18] sm:$0xff]
    %v2211 = vld [vmem:[%s2206 + $0x20] sm:$0xff]
    %v2212 = vld [vmem:[%s2206 + $0x28] sm:$0xff]
    %v2213 = vld [vmem:[%s2206 + $0x30] sm:$0xff]
    %v2214 = vld [vmem:[%s2206 + $0x38] sm:$0xff]
    %v2215 = vld [vmem:[%s2206 + $0x40] sm:$0xff]
    %v2216 = vld [vmem:[%s2206 + $0x48] sm:$0xff]
    %v2217 = vld [vmem:[%s2206 + $0x50] sm:$0xff]
    %v2218 = vld [vmem:[%s2206 + $0x58] sm:$0xff]
    %v2219 = vld [vmem:[%s2206 + $0x60] sm:$0xff]
    %v2220 = vld [vmem:[%s2206 + $0x68] sm:$0xff]
    %v2221 = vld [vmem:[%s2206 + $0x70] sm:$0xff]
    %v2222 = vld [vmem:[%s2206 + $0x78] sm:$0xff]
    %v2223 = vld [vmem:[%s6 + $0x5] sm:$0x1]
    %v2224 = vlaneseq
    %v2225 = vshrl.u32 %v2224, 7
    %v2226 = vsub.s32 0, %v2225
    %v2227 = vrot.slane %v2223, %v2226
    %2228 = vmatprep.subr.mxu0 0.0
    %2229 = vmatpush1.msra.mxu0 %v2207
    %2230 = vmatprep.subr.mxu0 0.0
    %2231 = vmatpush1.msra.mxu0 %v2208
    %2232 = vmatprep.subr.mxu0 0.0
    %2233 = vmatpush1.msra.mxu0 %v2209
    %2234 = vmatprep.subr.mxu0 0.0
    %2235 = vmatpush1.msra.mxu0 %v2210
    %2236 = vmatprep.subr.mxu0 0.0
    %2237 = vmatpush1.msra.mxu0 %v2211
    %2238 = vmatprep.subr.mxu0 0.0
    %2239 = vmatpush1.msra.mxu0 %v2212
    %2240 = vmatprep.subr.mxu0 0.0
    %2241 = vmatpush1.msra.mxu0 %v2213
    %2242 = vmatprep.subr.mxu0 0.0
    %2243 = vmatpush1.msra.mxu0 %v2214
    %2244 = vmatprep.subr.mxu0 0.0
    %2245 = vmatpush1.msra.mxu0 %v2215
    %2246 = vmatprep.subr.mxu0 0.0
    %2247 = vmatpush1.msra.mxu0 %v2216
    %2248 = vmatprep.subr.mxu0 0.0
    %2249 = vmatpush1.msra.mxu0 %v2217
    %2250 = vmatprep.subr.mxu0 0.0
    %2251 = vmatpush1.msra.mxu0 %v2218
    %2252 = vmatprep.subr.mxu0 0.0
    %2253 = vmatpush1.msra.mxu0 %v2219
    %2254 = vmatprep.subr.mxu0 0.0
    %2255 = vmatpush1.msra.mxu0 %v2220
    %2256 = vmatprep.subr.mxu0 0.0
    %2257 = vmatpush1.msra.mxu0 %v2221
    %2258 = vmatprep.subr.mxu0 0.0
    %2259 = vmatpush1.msra.mxu0 %v2222
    %2260 = vmatprep.subr.mxu0 0.0
    %2261 = vmatpush1.msra.mxu0 0.0
    %2262 = vmatprep.subr.mxu0 0.0
    %2263 = vmatpush1.msra.mxu0 0.0
    %2264 = vmatprep.subr.mxu0 0.0
    %2265 = vmatpush1.msra.mxu0 0.0
    %2266 = vmatprep.subr.mxu0 0.0
    %2267 = vmatpush1.msra.mxu0 0.0
    %2268 = vmatprep.subr.mxu0 0.0
    %2269 = vmatpush1.msra.mxu0 0.0
    %2270 = vmatprep.subr.mxu0 0.0
    %2271 = vmatpush1.msra.mxu0 0.0
    %2272 = vmatprep.subr.mxu0 0.0
    %2273 = vmatpush1.msra.mxu0 0.0
    %2274 = vmatprep.subr.mxu0 0.0
    %2275 = vmatpush1.msra.mxu0 0.0
    %2276 = vmatprep.subr.mxu0 0.0
    %2277 = vmatpush1.msra.mxu0 0.0
    %2278 = vmatprep.subr.mxu0 0.0
    %2279 = vmatpush1.msra.mxu0 0.0
    %2280 = vmatprep.subr.mxu0 0.0
    %2281 = vmatpush1.msra.mxu0 0.0
    %2282 = vmatprep.subr.mxu0 0.0
    %2283 = vmatpush1.msra.mxu0 0.0
    %2284 = vmatprep.subr.mxu0 0.0
    %2285 = vmatpush1.msra.mxu0 0.0
    %2286 = vmatprep.subr.mxu0 0.0
    %2287 = vmatpush1.msra.mxu0 0.0
    %2288 = vmatprep.subr.mxu0 0.0
    %2289 = vmatpush1.msra.mxu0 0.0
    %2290 = vmatprep.subr.mxu0 0.0
    %2291 = vmatpush1.msra.mxu0 0.0
    %2292 = vmatprep.mubr.f32.mxu0 0.0
    %2293 = vmatmul.mubr.f32.gmra.mrb[0].mxu0 %v2202
    %v2294 = vpop.f32.mrb[0].mxu0
    %v2295 = vadd.f32 %v2227, %v2294
    %v2296 = vpop.f32.mrb[0].mxu0
    %2297 = vmatprep.mubr.f32.mxu0 0.0
    %2298 = vmatmul.mubr.f32.gmra.mrb[0].mxu0 %v2203
    %v2299 = vpop.f32.mrb[0].mxu0
    %v2300 = vadd.f32 %v2227, %v2299
    %v2301 = vpop.f32.mrb[0].mxu0
    %2302 = vdwg.mxu0
    %v2303 = vxor.u32 %v2295, 2147483648
    %v2304 = vxor.u32 %v2300, 2147483648
    %v2305 = vmul.f32 %v2303, 1.442695
    %v2306 = vpow.pop %v2305
    %v2307 = vmul.f32 %v2304, 1.442695
    %v2308 = vpow.pop %v2307
    %v2309 = vadd.f32 %v2306, 1.0
    %v2310 = vadd.f32 %v2308, 1.0
    %v2311 = vrcp.pop %v2309
    %v2312 = vmul.f32 1.0, %v2311
    %v2313 = vrcp.pop %v2310
    %v2314 = vmul.f32 1.0, %v2313
    %v2315 = vmul.f32 %v2295, %v2312
    %v2316 = vmul.f32 %v2300, %v2314
    %s2317 = scalar_lea.vmem [#allocation2], 896
    %v2318 = vld [vmem:[%s2317] sm:$0xff]
    %v2319 = vld [vmem:[%s2317 + $0x8] sm:$0xff]
    %v2320 = vld [vmem:[%s2317 + $0x10] sm:$0xff]
    %v2321 = vld [vmem:[%s2317 + $0x18] sm:$0xff]
    %v2322 = vld [vmem:[%s2317 + $0x20] sm:$0xff]
    %v2323 = vld [vmem:[%s2317 + $0x28] sm:$0xff]
    %v2324 = vld [vmem:[%s2317 + $0x30] sm:$0xff]
    %v2325 = vld [vmem:[%s2317 + $0x38] sm:$0xff]
    %v2326 = vld [vmem:[%s2317 + $0x40] sm:$0xff]
    %v2327 = vld [vmem:[%s2317 + $0x48] sm:$0xff]
    %v2328 = vld [vmem:[%s2317 + $0x50] sm:$0xff]
    %v2329 = vld [vmem:[%s2317 + $0x58] sm:$0xff]
    %v2330 = vld [vmem:[%s2317 + $0x60] sm:$0xff]
    %v2331 = vld [vmem:[%s2317 + $0x68] sm:$0xff]
    %v2332 = vld [vmem:[%s2317 + $0x70] sm:$0xff]
    %v2333 = vld [vmem:[%s2317 + $0x78] sm:$0xff]
    %v2334 = vld [vmem:[%s6 + $0x6] sm:$0x1]
    %v2335 = vlaneseq
    %v2336 = vshrl.u32 %v2335, 7
    %v2337 = vsub.s32 0, %v2336
    %v2338 = vrot.slane %v2334, %v2337
    %2339 = vmatprep.subr.mxu0 0.0
    %2340 = vmatpush1.msra.mxu0 %v2318
    %2341 = vmatprep.subr.mxu0 0.0
    %2342 = vmatpush1.msra.mxu0 %v2319
    %2343 = vmatprep.subr.mxu0 0.0
    %2344 = vmatpush1.msra.mxu0 %v2320
    %2345 = vmatprep.subr.mxu0 0.0
    %2346 = vmatpush1.msra.mxu0 %v2321
    %2347 = vmatprep.subr.mxu0 0.0
    %2348 = vmatpush1.msra.mxu0 %v2322
    %2349 = vmatprep.subr.mxu0 0.0
    %2350 = vmatpush1.msra.mxu0 %v2323
    %2351 = vmatprep.subr.mxu0 0.0
    %2352 = vmatpush1.msra.mxu0 %v2324
    %2353 = vmatprep.subr.mxu0 0.0
    %2354 = vmatpush1.msra.mxu0 %v2325
    %2355 = vmatprep.subr.mxu0 0.0
    %2356 = vmatpush1.msra.mxu0 %v2326
    %2357 = vmatprep.subr.mxu0 0.0
    %2358 = vmatpush1.msra.mxu0 %v2327
    %2359 = vmatprep.subr.mxu0 0.0
    %2360 = vmatpush1.msra.mxu0 %v2328
    %2361 = vmatprep.subr.mxu0 0.0
    %2362 = vmatpush1.msra.mxu0 %v2329
    %2363 = vmatprep.subr.mxu0 0.0
    %2364 = vmatpush1.msra.mxu0 %v2330
    %2365 = vmatprep.subr.mxu0 0.0
    %2366 = vmatpush1.msra.mxu0 %v2331
    %2367 = vmatprep.subr.mxu0 0.0
    %2368 = vmatpush1.msra.mxu0 %v2332
    %2369 = vmatprep.subr.mxu0 0.0
    %2370 = vmatpush1.msra.mxu0 %v2333
    %2371 = vmatprep.subr.mxu0 0.0
    %2372 = vmatpush1.msra.mxu0 0.0
    %2373 = vmatprep.subr.mxu0 0.0
    %2374 = vmatpush1.msra.mxu0 0.0
    %2375 = vmatprep.subr.mxu0 0.0
    %2376 = vmatpush1.msra.mxu0 0.0
    %2377 = vmatprep.subr.mxu0 0.0
    %2378 = vmatpush1.msra.mxu0 0.0
    %2379 = vmatprep.subr.mxu0 0.0
    %2380 = vmatpush1.msra.mxu0 0.0
    %2381 = vmatprep.subr.mxu0 0.0
    %2382 = vmatpush1.msra.mxu0 0.0
    %2383 = vmatprep.subr.mxu0 0.0
    %2384 = vmatpush1.msra.mxu0 0.0
    %2385 = vmatprep.subr.mxu0 0.0
    %2386 = vmatpush1.msra.mxu0 0.0
    %2387 = vmatprep.subr.mxu0 0.0
    %2388 = vmatpush1.msra.mxu0 0.0
    %2389 = vmatprep.subr.mxu0 0.0
    %2390 = vmatpush1.msra.mxu0 0.0
    %2391 = vmatprep.subr.mxu0 0.0
    %2392 = vmatpush1.msra.mxu0 0.0
    %2393 = vmatprep.subr.mxu0 0.0
    %2394 = vmatpush1.msra.mxu0 0.0
    %2395 = vmatprep.subr.mxu0 0.0
    %2396 = vmatpush1.msra.mxu0 0.0
    %2397 = vmatprep.subr.mxu0 0.0
    %2398 = vmatpush1.msra.mxu0 0.0
    %2399 = vmatprep.subr.mxu0 0.0
    %2400 = vmatpush1.msra.mxu0 0.0
    %2401 = vmatprep.subr.mxu0 0.0
    %2402 = vmatpush1.msra.mxu0 0.0
    %2403 = vmatprep.mubr.f32.mxu0 0.0
    %2404 = vmatmul.mubr.f32.gmra.mrb[0].mxu0 %v2315
    %v2405 = vpop.f32.mrb[0].mxu0
    %v2406 = vadd.f32 %v2338, %v2405
    %v2407 = vpop.f32.mrb[0].mxu0
    %2408 = vmatprep.mubr.f32.mxu0 0.0
    %2409 = vmatmul.mubr.f32.gmra.mrb[0].mxu0 %v2316
    %v2410 = vpop.f32.mrb[0].mxu0
    %v2411 = vadd.f32 %v2338, %v2410
    %v2412 = vpop.f32.mrb[0].mxu0
    %2413 = vdwg.mxu0
    %v2415 = vsel %vm118, %v111, 0
    %2417 = vmatprep.subr.mxu0 0.0
    %2418 = vmatpush1.msra.mxu0 %v2406
    %2419 = vmatprep.subr.mxu0 0.0
    %2420 = vmatpush1.msra.mxu0 %v2411
    %2421 = vmatprep.subr.mxu0 0.0
    %2422 = vmatpush1.msra.mxu0 0.0
    %2423 = vmatprep.subr.mxu0 0.0
    %2424 = vmatpush1.msra.mxu0 0.0
    %2425 = vmatprep.subr.mxu0 0.0
    %2426 = vmatpush1.msra.mxu0 0.0
    %2427 = vmatprep.subr.mxu0 0.0
    %2428 = vmatpush1.msra.mxu0 0.0
    %2429 = vmatprep.subr.mxu0 0.0
    %2430 = vmatpush1.msra.mxu0 0.0
    %2431 = vmatprep.subr.mxu0 0.0
    %2432 = vmatpush1.msra.mxu0 0.0
    %2433 = vmatprep.subr.mxu0 0.0
    %2434 = vmatpush1.msra.mxu0 0.0
    %2435 = vmatprep.subr.mxu0 0.0
    %2436 = vmatpush1.msra.mxu0 0.0
    %2437 = vmatprep.subr.mxu0 0.0
    %2438 = vmatpush1.msra.mxu0 0.0
    %2439 = vmatprep.subr.mxu0 0.0
    %2440 = vmatpush1.msra.mxu0 0.0
    %2441 = vmatprep.subr.mxu0 0.0
    %2442 = vmatpush1.msra.mxu0 0.0
    %2443 = vmatprep.subr.mxu0 0.0
    %2444 = vmatpush1.msra.mxu0 0.0
    %2445 = vmatprep.subr.mxu0 0.0
    %2446 = vmatpush1.msra.mxu0 0.0
    %2447 = vmatprep.subr.mxu0 0.0
    %2448 = vmatpush1.msra.mxu0 0.0
    %2449 = vmatprep.subr.mxu0 0.0
    %2450 = vmatpush1.msra.mxu0 0.0
    %2451 = vmatprep.subr.mxu0 0.0
    %2452 = vmatpush1.msra.mxu0 0.0
    %2453 = vmatprep.subr.mxu0 0.0
    %2454 = vmatpush1.msra.mxu0 0.0
    %2455 = vmatprep.subr.mxu0 0.0
    %2456 = vmatpush1.msra.mxu0 0.0
    %2457 = vmatprep.subr.mxu0 0.0
    %2458 = vmatpush1.msra.mxu0 0.0
    %2459 = vmatprep.subr.mxu0 0.0
    %2460 = vmatpush1.msra.mxu0 0.0
    %2461 = vmatprep.subr.mxu0 0.0
    %2462 = vmatpush1.msra.mxu0 0.0
    %2463 = vmatprep.subr.mxu0 0.0
    %2464 = vmatpush1.msra.mxu0 0.0
    %2465 = vmatprep.subr.mxu0 0.0
    %2466 = vmatpush1.msra.mxu0 0.0
    %2467 = vmatprep.subr.mxu0 0.0
    %2468 = vmatpush1.msra.mxu0 0.0
    %2469 = vmatprep.subr.mxu0 0.0
    %2470 = vmatpush1.msra.mxu0 0.0
    %2471 = vmatprep.subr.mxu0 0.0
    %2472 = vmatpush1.msra.mxu0 0.0
    %2473 = vmatprep.subr.mxu0 0.0
    %2474 = vmatpush1.msra.mxu0 0.0
    %2475 = vmatprep.subr.mxu0 0.0
    %2476 = vmatpush1.msra.mxu0 0.0
    %2477 = vmatprep.subr.mxu0 0.0
    %2478 = vmatpush1.msra.mxu0 0.0
    %2479 = vmatprep.subr.mxu0 0.0
    %2480 = vmatpush1.msra.mxu0 0.0
    %2481 = vmatprep.mubr.f32.mxu0 0.0
    %2482 = vmatmul.mubr.f32.gmra.mrb[0].mxu0 %v2415
    %v2483 = vpop.f32.mrb[0].mxu0
    %v2484 = vadd.f32 0.0, %v2483
    %v2485 = vpop.f32.mrb[0].mxu0
    %2486 = vdwg.mxu0
    %2487 = vst [vmem:[#allocation6] sm:$0xff] %v2484
    // Predicated region
    $region34: #{tpu_custom_call.1} parent=1 // pred_check
      _
    $region35: #{tpu_custom_call.1} parent=1 // pred_check_branch
      %2489 = sbr.rel (0) target = $region37
    $region36: #{tpu_custom_call.1} parent=1 // pred_region
      %s2491 = ssub.s32 256, 256
      %2492 = vsyncadd [#allocation4], %s2491
      %s2493 = sshll.u32 [#allocation5], 4
      %s2494 = int_to_ptr.vmem [resolvable:$true] %s2493
      %2499 = dma.vmem_to_hbm [thread:$0]  %s2494, 256, %s7, [#allocation4], 128, 128, 8
    $region37: #{tpu_custom_call.1} parent=1 // pred_fallthru
      _
    // Predicated region
    $region38: #{tpu_custom_call.1} parent=1 // pred_check
      _
    $region39: #{tpu_custom_call.1} parent=1 // pred_check_branch
      %2501 = sbr.rel (0) target = $region41
    $region40: #{tpu_custom_call.1} parent=1 // pred_region
      %s2503 = ssub.s32 128, 128
      %2504 = vsyncadd [#allocation7], %s2503
      %s2506 = sshll.u32 [#allocation6], 4
      %s2507 = int_to_ptr.vmem [resolvable:$true] %s2506
      %2509 = dma.vmem_to_hbm [thread:$0]  %s2507, 128, %s8, [#allocation7]
    $region41: #{tpu_custom_call.1} parent=1 // pred_fallthru
      _
    // Predicated region
    $region42: #{tpu_custom_call.1} parent=1 // pred_check
      _
    $region43: #{tpu_custom_call.1} parent=1 // pred_check_branch
      %2511 = sbr.rel (0) target = $region45
    $region44: #{tpu_custom_call.1} parent=1 // pred_region
      %2512 = dma.done [#allocation4], 256
    $region45: #{tpu_custom_call.1} parent=1 // pred_fallthru
      _
    // Predicated region
    $region46: #{tpu_custom_call.1} parent=1 // pred_check
      _
    $region47: #{tpu_custom_call.1} parent=1 // pred_check_branch
      %2514 = sbr.rel (0) target = $region49
    $region48: #{tpu_custom_call.1} parent=1 // pred_region
      %2515 = dma.done [#allocation7], 128
    $region49: #{tpu_custom_call.1} parent=1 // pred_fallthru
      _
    %2516 = vsyncpa [#allocation3], 1
    %2517 = vsyncpa [#allocation4], 1
    %2518 = vsyncpa [#allocation7], 1

</llo_original>
